<compile_context>
chip_gen: v7x
topology: tpu7x:2x2x1
jax: 0.10.0
libtpu: 0.0.40
codegen_flags: <defaults>
</compile_context>

<pallas_src>
import math
import numpy as np
import jax
import jax.numpy as jnp
from jax import lax
from jax.experimental import pallas as pl
from jax.experimental.pallas import tpu as pltpu

# ---- config matching the PyTorch module ------------------------------------
D_MODEL = 32
D_K = 64
D_V = 64
D_FF = 512
N_HEADS = 2    # TODO(synk): n_heads undefined in the reference snippet; use 2.
N_LAYERS = 2   # TODO(synk): n_layers undefined in the reference snippet; use 2.
LN_EPS = 1e-5

# fused QKV column offsets
QKV_Q_OFF = 0
QKV_K_OFF = N_HEADS * D_K
QKV_V_OFF = 2 * N_HEADS * D_K
QKV_WIDTH = 2 * N_HEADS * D_K + N_HEADS * D_V   # 384


def _layer_norm(h, gamma_row, beta_row):
    mu = jnp.mean(h, axis=-1, keepdims=True)
    var = jnp.mean((h - mu) ** 2, axis=-1, keepdims=True)
    return (h - mu) * lax.rsqrt(var + LN_EPS) * gamma_row + beta_row


# ---- Pallas kernel: full encoder (line + PE + N_LAYERS layers) per batch ----
def fused_encoder_kernel(x_ref, mask_ref, pe_ref, wline_ref,
                         wqkv_ref, wfc_ref, ln1_g_ref, ln1_b_ref,
                         w1_ref, w2_ref, ln2_g_ref, ln2_b_ref,
                         out_ref, attn_ref):
    x_in = x_ref[0]                  # (S, d_model)
    key_pad = mask_ref[0] != 0       # (1, S) bool, True == padded key

    # self.line (bias-free Linear) + positional encoding (dropout = identity in eval)
    h = jnp.dot(x_in, wline_ref[...],
                preferred_element_type=jnp.float32) + pe_ref[...]

    inv_sqrt_dk = np.float32(1.0 / math.sqrt(D_K))

    for l in range(N_LAYERS):        # static unroll: all weight indexing is static
        # ---- MultiHeadAttention with fused QKV projection ----
        qkv = jnp.dot(h, wqkv_ref[l],
                      preferred_element_type=jnp.float32)       # (S, 3*H*d_k)
        ctx_heads = []
        for hd in range(N_HEADS):
            q_h = qkv[:, QKV_Q_OFF + hd * D_K: QKV_Q_OFF + (hd + 1) * D_K]
            k_h = qkv[:, QKV_K_OFF + hd * D_K: QKV_K_OFF + (hd + 1) * D_K]
            v_h = qkv[:, QKV_V_OFF + hd * D_V: QKV_V_OFF + (hd + 1) * D_V]

            # scores = q_h @ k_h.T without materializing a transpose
            scores = lax.dot_general(
                q_h, k_h, (((1,), (1,)), ((), ())),
                preferred_element_type=jnp.float32) * inv_sqrt_dk
            scores = jnp.where(key_pad, -1e9, scores)           # (S, S)

            # numerically-stable softmax over keys
            m = jnp.max(scores, axis=-1, keepdims=True)
            p = jnp.exp(scores - m)
            denom = jnp.sum(p, axis=-1, keepdims=True)
            attn_h = p * pl.reciprocal(denom, approx=False)
            attn_ref[l, 0, hd, :, :] = attn_h

            ctx_heads.append(jnp.dot(attn_h, v_h,
                                     preferred_element_type=jnp.float32))

        context = jnp.concatenate(ctx_heads, axis=-1)           # (S, H*d_v)
        proj = jnp.dot(context, wfc_ref[l],
                       preferred_element_type=jnp.float32)
        h = _layer_norm(proj + h, ln1_g_ref[l], ln1_b_ref[l])

        # ---- PoswiseFeedForwardNet (Dropout identity in eval) ----
        f = jnp.maximum(
            jnp.dot(h, w1_ref[l], preferred_element_type=jnp.float32), 0.0)
        f = jnp.dot(f, w2_ref[l], preferred_element_type=jnp.float32)
        h = _layer_norm(f + h, ln2_g_ref[l], ln2_b_ref[l])

    out_ref[0] = h


# ---- glue: positional encoding, pad mask, parameters ------------------------
def positional_encoding(seq_len, d):
    # TODO(synk): reference builds PositionalEncoding(128) while d_model==32
    # (shape-incompatible in PyTorch); PE is built at d_model here.
    pos = np.arange(seq_len, dtype=np.float32)[:, None]
    div = np.exp(np.arange(0, d, 2, dtype=np.float32) * (-math.log(10000.0) / d))
    pe = np.zeros((seq_len, d), dtype=np.float32)
    pe[:, 0::2] = np.sin(pos * div)
    pe[:, 1::2] = np.cos(pos * div)
    return jnp.asarray(pe)


def get_phla_key_pad_mask(hla_lens, pep_lens, seq_len):
    # TODO(synk): get_phla_pad_mask_new is not defined in the reference; use the
    # standard key-padding mask: key k is padded iff k >= hla_len + pep_len.
    total = (hla_lens + pep_lens).astype(jnp.int32)              # (B,)
    k_idx = jnp.arange(seq_len, dtype=jnp.int32)[None, :]        # (1, S)
    pad = (k_idx >= total[:, None]).astype(jnp.int32)            # (B, S)
    return pad[:, None, :]                                       # (B, 1, S)


def init_params(key):
    def mat(k, shape, scale=0.05):
        return (scale * jax.random.normal(k, shape)).astype(jnp.float32)

    keys = jax.random.split(key, 1 + 6 * N_LAYERS)
    wq, wk, wv, wfc, w1, w2 = [], [], [], [], [], []
    ki = 1
    for _ in range(N_LAYERS):
        wq.append(mat(keys[ki + 0], (D_MODEL, N_HEADS * D_K)))
        wk.append(mat(keys[ki + 1], (D_MODEL, N_HEADS * D_K)))
        wv.append(mat(keys[ki + 2], (D_MODEL, N_HEADS * D_V)))
        wfc.append(mat(keys[ki + 3], (N_HEADS * D_V, D_MODEL)))
        w1.append(mat(keys[ki + 4], (D_MODEL, D_FF)))
        w2.append(mat(keys[ki + 5], (D_FF, D_MODEL)))
        ki += 6

    return {
        # TODO(synk): `self.line` is undefined in the reference module;
        # modeled as a bias-free Linear(d_model, d_model).
        "line": mat(keys[0], (D_MODEL, D_MODEL)),
        # stacked per-layer weights (layer axis first), QKV fused along columns
        "wqkv": jnp.stack([jnp.concatenate([q, k, v], axis=1)
                           for q, k, v in zip(wq, wk, wv)]),     # (L, 32, 384)
        "wfc": jnp.stack(wfc),                                   # (L, 128, 32)
        "w1": jnp.stack(w1),                                     # (L, 32, 512)
        "w2": jnp.stack(w2),                                     # (L, 512, 32)
        "ln1_g": jnp.ones((N_LAYERS, 1, D_MODEL), jnp.float32),
        "ln1_b": jnp.zeros((N_LAYERS, 1, D_MODEL), jnp.float32),
        "ln2_g": jnp.ones((N_LAYERS, 1, D_MODEL), jnp.float32),
        "ln2_b": jnp.zeros((N_LAYERS, 1, D_MODEL), jnp.float32),
    }


def phla_encoder(pha_features, hla_lens, pep_lens, params):
    x = pha_features.astype(jnp.float32)
    B, S, D = x.shape
    assert D == D_MODEL
    mask = get_phla_key_pad_mask(hla_lens, pep_lens, S)          # (B, 1, S) i32
    pe = positional_encoding(S, D_MODEL)                         # (S, D)

    def full_spec(shape):
        n = len(shape)
        return pl.BlockSpec(shape, lambda b, _n=n: (0,) * _n)

    in_specs = [
        pl.BlockSpec((1, S, D_MODEL), lambda b: (b, 0, 0)),      # x
        pl.BlockSpec((1, 1, S), lambda b: (b, 0, 0)),            # key-pad mask
        full_spec((S, D_MODEL)),                                 # positional encoding
        full_spec((D_MODEL, D_MODEL)),                           # self.line
        full_spec((N_LAYERS, D_MODEL, QKV_WIDTH)),               # fused W_Q|W_K|W_V
        full_spec((N_LAYERS, N_HEADS * D_V, D_MODEL)),           # fc
        full_spec((N_LAYERS, 1, D_MODEL)),                       # ln1 gamma
        full_spec((N_LAYERS, 1, D_MODEL)),                       # ln1 beta
        full_spec((N_LAYERS, D_MODEL, D_FF)),                    # ffn W1
        full_spec((N_LAYERS, D_FF, D_MODEL)),                    # ffn W2
        full_spec((N_LAYERS, 1, D_MODEL)),                       # ln2 gamma
        full_spec((N_LAYERS, 1, D_MODEL)),                       # ln2 beta
    ]
    out_specs = [
        pl.BlockSpec((1, S, D_MODEL), lambda b: (b, 0, 0)),
        pl.BlockSpec((N_LAYERS, 1, N_HEADS, S, S),
                     lambda b: (0, b, 0, 0, 0)),
    ]
    out_shape = [
        jax.ShapeDtypeStruct((B, S, D_MODEL), jnp.float32),
        jax.ShapeDtypeStruct((N_LAYERS, B, N_HEADS, S, S), jnp.float32),
    ]
    out, attn = pl.pallas_call(
        fused_encoder_kernel,
        grid=(B,),
        in_specs=in_specs,
        out_specs=out_specs,
        out_shape=out_shape,
        compiler_params=pltpu.CompilerParams(
            dimension_semantics=("parallel",)),                  # v7x: 2 TCs share B
    )(x, mask, pe, params["line"],
      params["wqkv"], params["wfc"], params["ln1_g"], params["ln1_b"],
      params["w1"], params["w2"], params["ln2_g"], params["ln2_b"])

    return out, [attn[l] for l in range(N_LAYERS)]


# ---- pure-JAX reference for verification -----------------------------------
def _ref_encoder(pha_features, hla_lens, pep_lens, params):
    def ln(h, g, b):
        mu = h.mean(-1, keepdims=True)
        var = ((h - mu) ** 2).mean(-1, keepdims=True)
        return (h - mu) * lax.rsqrt(var + LN_EPS) * g + b

    x = pha_features.astype(jnp.float32) @ params["line"]
    B, S, _ = x.shape
    x = x + positional_encoding(S, D_MODEL)[None, :, :]
    key_pad = get_phla_key_pad_mask(hla_lens, pep_lens, S).astype(bool)  # (B,1,S)
    mask_bool = jnp.broadcast_to(key_pad, (B, S, S))

    attns = []
    for l in range(N_LAYERS):
        wqkv = params["wqkv"][l]
        wq = wqkv[:, QKV_Q_OFF:QKV_K_OFF]
        wk = wqkv[:, QKV_K_OFF:QKV_V_OFF]
        wv = wqkv[:, QKV_V_OFF:]
        q = (x @ wq).reshape(B, S, N_HEADS, D_K).transpose(0, 2, 1, 3)
        k = (x @ wk).reshape(B, S, N_HEADS, D_K).transpose(0, 2, 1, 3)
        v = (x @ wv).reshape(B, S, N_HEADS, D_V).transpose(0, 2, 1, 3)
        scores = jnp.einsum('bhqd,bhkd->bhqk', q, k) / np.sqrt(D_K)
        scores = jnp.where(mask_bool[:, None, :, :], -1e9, scores)
        attn = jax.nn.softmax(scores, axis=-1)
        ctx = jnp.einsum('bhqk,bhkd->bhqd', attn, v).transpose(0, 2, 1, 3)
        ctx = ctx.reshape(B, S, N_HEADS * D_V)
        h = ln(ctx @ params["wfc"][l] + x,
               params["ln1_g"][l][0], params["ln1_b"][l][0])
        f = jnp.maximum(h @ params["w1"][l], 0.0) @ params["w2"][l]
        x = ln(f + h, params["ln2_g"][l][0], params["ln2_b"][l][0])
        attns.append(attn)
    return x, attns


if __name__ == "__main__":
    key = jax.random.PRNGKey(0)
    k_feat, k_par = jax.random.split(key)

    B, S = 2, 8
    pha_features = jax.random.normal(k_feat, (B, S, D_MODEL), jnp.float32)
    hla_lens = jnp.array([3, 4], jnp.int32)
    pep_lens = jnp.array([2, 3], jnp.int32)

    params = init_params(k_par)

    enc_out, enc_attns = phla_encoder(pha_features, hla_lens, pep_lens, params)
    enc_out = jax.block_until_ready(enc_out)
    enc_attns = [jax.block_until_ready(a) for a in enc_attns]

    ref_out, ref_attns = _ref_encoder(pha_features, hla_lens, pep_lens, params)
    np.testing.assert_allclose(np.asarray(enc_out), np.asarray(ref_out),
                               rtol=1e-4, atol=1e-4)
    for a, r in zip(enc_attns, ref_attns):
        np.testing.assert_allclose(np.asarray(a), np.asarray(r),
                                   rtol=1e-4, atol=1e-4)

    print("KERNEL_OK")
</pallas_src>

<mosaic_0001>
module attributes {stable_mosaic.version = 11 : i64} {
  func.func @fused_encoder_kernel(%arg0: i32, %arg1: memref<1x8x32xf32, #tpu.memory_space<vmem>>, %arg2: memref<1x1x8xi32, #tpu.memory_space<vmem>>, %arg3: memref<8x32xf32, #tpu.memory_space<vmem>>, %arg4: memref<32x32xf32, #tpu.memory_space<vmem>>, %arg5: memref<2x32x384xf32, #tpu.memory_space<vmem>>, %arg6: memref<2x128x32xf32, #tpu.memory_space<vmem>>, %arg7: memref<2x1x32xf32, #tpu.memory_space<vmem>>, %arg8: memref<2x1x32xf32, #tpu.memory_space<vmem>>, %arg9: memref<2x32x512xf32, #tpu.memory_space<vmem>>, %arg10: memref<2x512x32xf32, #tpu.memory_space<vmem>>, %arg11: memref<2x1x32xf32, #tpu.memory_space<vmem>>, %arg12: memref<2x1x32xf32, #tpu.memory_space<vmem>>, %arg13: memref<1x8x32xf32, #tpu.memory_space<vmem>>, %arg14: memref<2x1x2x8x8xf32, #tpu.memory_space<vmem>>) attributes {dimension_semantics = [#tpu.dimension_semantics<parallel>], iteration_bounds = array<i64: 2>, scalar_prefetch = 0 : i64, scratch_operands = 0 : i64, tpu.core_type = #tpu.core_type<tc>, window_params = [{transform_indices = @transform_0, window_bounds = array<i64: 1, 8, 32>}, {transform_indices = @transform_1, window_bounds = array<i64: 1, 1, 8>}, {pipeline_mode = #tpu.pipeline_mode<synchronous>, transform_indices = @transform_2, window_bounds = array<i64: 8, 32>}, {pipeline_mode = #tpu.pipeline_mode<synchronous>, transform_indices = @transform_3, window_bounds = array<i64: 32, 32>}, {pipeline_mode = #tpu.pipeline_mode<synchronous>, transform_indices = @transform_4, window_bounds = array<i64: 2, 32, 384>}, {pipeline_mode = #tpu.pipeline_mode<synchronous>, transform_indices = @transform_5, window_bounds = array<i64: 2, 128, 32>}, {pipeline_mode = #tpu.pipeline_mode<synchronous>, transform_indices = @transform_6, window_bounds = array<i64: 2, 1, 32>}, {pipeline_mode = #tpu.pipeline_mode<synchronous>, transform_indices = @transform_7, window_bounds = array<i64: 2, 1, 32>}, {pipeline_mode = #tpu.pipeline_mode<synchronous>, transform_indices = @transform_8, window_bounds = array<i64: 2, 32, 512>}, {pipeline_mode = #tpu.pipeline_mode<synchronous>, transform_indices = @transform_9, window_bounds = array<i64: 2, 512, 32>}, {pipeline_mode = #tpu.pipeline_mode<synchronous>, transform_indices = @transform_10, window_bounds = array<i64: 2, 1, 32>}, {pipeline_mode = #tpu.pipeline_mode<synchronous>, transform_indices = @transform_11, window_bounds = array<i64: 2, 1, 32>}, {transform_indices = @transform_12, window_bounds = array<i64: 1, 8, 32>}, {transform_indices = @transform_13, window_bounds = array<i64: 2, 1, 2, 8, 8>}]} {
    %c0 = arith.constant 0 : index
    %c0_0 = arith.constant 0 : index
    %c0_1 = arith.constant 0 : index
    %0 = vector.load %arg1[%c0, %c0_0, %c0_1] : memref<1x8x32xf32, #tpu.memory_space<vmem>>, vector<1x8x32xf32>
    %1 = vector.shape_cast %0 : vector<1x8x32xf32> to vector<8x32xf32>
    %c0_2 = arith.constant 0 : index
    %c0_3 = arith.constant 0 : index
    %c0_4 = arith.constant 0 : index
    %2 = vector.load %arg2[%c0_2, %c0_3, %c0_4] : memref<1x1x8xi32, #tpu.memory_space<vmem>>, vector<1x1x8xi32>
    %3 = vector.shape_cast %2 : vector<1x1x8xi32> to vector<1x8xi32>
    %c0_i32 = arith.constant 0 : i32
    %4 = vector.broadcast %c0_i32 : i32 to vector<1x8xi32>
    %5 = arith.cmpi ne, %3, %4 : vector<1x8xi32>
    %c0_5 = arith.constant 0 : index
    %c0_6 = arith.constant 0 : index
    %6 = vector.load %arg4[%c0_5, %c0_6] : memref<32x32xf32, #tpu.memory_space<vmem>>, vector<32x32xf32>
    %cst = arith.constant dense<0.000000e+00> : vector<8x32xf32>
    %7 = tpu.matmul %1, %6, %cst {dimension_numbers = #tpu.dot_dimension_numbers<[1], [0], [0], [1], [0, 0, 1, 1], [], []>} : vector<8x32xf32>, vector<32x32xf32>, vector<8x32xf32> -> vector<8x32xf32>
    %c0_7 = arith.constant 0 : index
    %c0_8 = arith.constant 0 : index
    %8 = vector.load %arg3[%c0_7, %c0_8] : memref<8x32xf32, #tpu.memory_space<vmem>>, vector<8x32xf32>
    %9 = arith.addf %7, %8 : vector<8x32xf32>
    %c0_9 = arith.constant 0 : index
    %c0_10 = arith.constant 0 : index
    %c0_11 = arith.constant 0 : index
    %10 = vector.load %arg5[%c0_9, %c0_10, %c0_11] : memref<2x32x384xf32, #tpu.memory_space<vmem>>, vector<1x32x384xf32>
    %11 = vector.shape_cast %10 : vector<1x32x384xf32> to vector<32x384xf32>
    %cst_12 = arith.constant dense<0.000000e+00> : vector<8x384xf32>
    %12 = tpu.matmul %9, %11, %cst_12 {dimension_numbers = #tpu.dot_dimension_numbers<[1], [0], [0], [1], [0, 0, 1, 1], [], []>} : vector<8x32xf32>, vector<32x384xf32>, vector<8x384xf32> -> vector<8x384xf32>
    %13 = vector.extract_strided_slice %12 {offsets = [0, 0], sizes = [8, 64], strides = [1, 1]} : vector<8x384xf32> to vector<8x64xf32>
    %14 = vector.extract_strided_slice %12 {offsets = [0, 128], sizes = [8, 64], strides = [1, 1]} : vector<8x384xf32> to vector<8x64xf32>
    %15 = vector.extract_strided_slice %12 {offsets = [0, 256], sizes = [8, 64], strides = [1, 1]} : vector<8x384xf32> to vector<8x64xf32>
    %cst_13 = arith.constant dense<0.000000e+00> : vector<8x8xf32>
    %16 = tpu.matmul %13, %14, %cst_13 {dimension_numbers = #tpu.dot_dimension_numbers<[1], [1], [0], [0], [0, 0, 1, 0], [], []>} : vector<8x64xf32>, vector<8x64xf32>, vector<8x8xf32> -> vector<8x8xf32>
    %cst_14 = arith.constant 1.250000e-01 : f32
    %17 = vector.broadcast %cst_14 : f32 to vector<8x8xf32>
    %18 = arith.mulf %16, %17 : vector<8x8xf32>
    %cst_15 = arith.constant -1.000000e+09 : f32
    %19 = vector.shape_cast %5 : vector<1x8xi1> to vector<1x8xi1>
    %20 = vector.broadcast %19 : vector<1x8xi1> to vector<8x8xi1>
    %21 = vector.broadcast %cst_15 : f32 to vector<8x8xf32>
    %22 = arith.select %20, %21, %18 : vector<8x8xi1>, vector<8x8xf32>
    %cst_16 = arith.constant dense<0xFF800000> : vector<8xf32>
    %23 = vector.multi_reduction <maximumf>, %22, %cst_16 [1] : vector<8x8xf32> to vector<8xf32>
    %24 = vector.shape_cast %23 : vector<8xf32> to vector<8x1xf32>
    %25 = vector.broadcast %24 : vector<8x1xf32> to vector<8x8xf32>
    %26 = arith.subf %22, %25 : vector<8x8xf32>
    %27 = math.exp %26 : vector<8x8xf32>
    %cst_17 = arith.constant dense<0.000000e+00> : vector<8xf32>
    %28 = vector.multi_reduction <add>, %27, %cst_17 [1] : vector<8x8xf32> to vector<8xf32>
    %29 = vector.shape_cast %28 : vector<8xf32> to vector<8x1xf32>
    %30 = tpu.reciprocal %29 : vector<8x1xf32> -> vector<8x1xf32>
    %31 = vector.broadcast %30 : vector<8x1xf32> to vector<8x8xf32>
    %32 = arith.mulf %27, %31 : vector<8x8xf32>
    %c0_18 = arith.constant 0 : index
    %c0_19 = arith.constant 0 : index
    %c0_20 = arith.constant 0 : index
    %c0_21 = arith.constant 0 : index
    %c0_22 = arith.constant 0 : index
    %33 = vector.load %arg14[%c0_18, %c0_19, %c0_20, %c0_21, %c0_22] : memref<2x1x2x8x8xf32, #tpu.memory_space<vmem>>, vector<1x1x1x8x8xf32>
    %34 = vector.shape_cast %33 : vector<1x1x1x8x8xf32> to vector<8x8xf32>
    %35 = vector.shape_cast %32 : vector<8x8xf32> to vector<1x1x1x8x8xf32>
    tpu.vector_store %arg14[%c0_18, %c0_19, %c0_20, %c0_21, %c0_22], %35 {strides = array<i32>} : memref<2x1x2x8x8xf32, #tpu.memory_space<vmem>>, vector<1x1x1x8x8xf32>,
    %cst_23 = arith.constant dense<0.000000e+00> : vector<8x64xf32>
    %36 = tpu.matmul %32, %15, %cst_23 {dimension_numbers = #tpu.dot_dimension_numbers<[1], [0], [0], [1], [0, 0, 1, 1], [], []>} : vector<8x8xf32>, vector<8x64xf32>, vector<8x64xf32> -> vector<8x64xf32>
    %37 = vector.extract_strided_slice %12 {offsets = [0, 64], sizes = [8, 64], strides = [1, 1]} : vector<8x384xf32> to vector<8x64xf32>
    %38 = vector.extract_strided_slice %12 {offsets = [0, 192], sizes = [8, 64], strides = [1, 1]} : vector<8x384xf32> to vector<8x64xf32>
    %39 = vector.extract_strided_slice %12 {offsets = [0, 320], sizes = [8, 64], strides = [1, 1]} : vector<8x384xf32> to vector<8x64xf32>
    %cst_24 = arith.constant dense<0.000000e+00> : vector<8x8xf32>
    %40 = tpu.matmul %37, %38, %cst_24 {dimension_numbers = #tpu.dot_dimension_numbers<[1], [1], [0], [0], [0, 0, 1, 0], [], []>} : vector<8x64xf32>, vector<8x64xf32>, vector<8x8xf32> -> vector<8x8xf32>
    %cst_25 = arith.constant 1.250000e-01 : f32
    %41 = vector.broadcast %cst_25 : f32 to vector<8x8xf32>
    %42 = arith.mulf %40, %41 : vector<8x8xf32>
    %cst_26 = arith.constant -1.000000e+09 : f32
    %43 = vector.shape_cast %5 : vector<1x8xi1> to vector<1x8xi1>
    %44 = vector.broadcast %43 : vector<1x8xi1> to vector<8x8xi1>
    %45 = vector.broadcast %cst_26 : f32 to vector<8x8xf32>
    %46 = arith.select %44, %45, %42 : vector<8x8xi1>, vector<8x8xf32>
    %cst_27 = arith.constant dense<0xFF800000> : vector<8xf32>
    %47 = vector.multi_reduction <maximumf>, %46, %cst_27 [1] : vector<8x8xf32> to vector<8xf32>
    %48 = vector.shape_cast %47 : vector<8xf32> to vector<8x1xf32>
    %49 = vector.broadcast %48 : vector<8x1xf32> to vector<8x8xf32>
    %50 = arith.subf %46, %49 : vector<8x8xf32>
    %51 = math.exp %50 : vector<8x8xf32>
    %cst_28 = arith.constant dense<0.000000e+00> : vector<8xf32>
    %52 = vector.multi_reduction <add>, %51, %cst_28 [1] : vector<8x8xf32> to vector<8xf32>
    %53 = vector.shape_cast %52 : vector<8xf32> to vector<8x1xf32>
    %54 = tpu.reciprocal %53 : vector<8x1xf32> -> vector<8x1xf32>
    %55 = vector.broadcast %54 : vector<8x1xf32> to vector<8x8xf32>
    %56 = arith.mulf %51, %55 : vector<8x8xf32>
    %c0_29 = arith.constant 0 : index
    %c0_30 = arith.constant 0 : index
    %c1 = arith.constant 1 : index
    %c0_31 = arith.constant 0 : index
    %c0_32 = arith.constant 0 : index
    %57 = vector.load %arg14[%c0_29, %c0_30, %c1, %c0_31, %c0_32] : memref<2x1x2x8x8xf32, #tpu.memory_space<vmem>>, vector<1x1x1x8x8xf32>
    %58 = vector.shape_cast %57 : vector<1x1x1x8x8xf32> to vector<8x8xf32>
    %59 = vector.shape_cast %56 : vector<8x8xf32> to vector<1x1x1x8x8xf32>
    tpu.vector_store %arg14[%c0_29, %c0_30, %c1, %c0_31, %c0_32], %59 {strides = array<i32>} : memref<2x1x2x8x8xf32, #tpu.memory_space<vmem>>, vector<1x1x1x8x8xf32>,
    %cst_33 = arith.constant dense<0.000000e+00> : vector<8x64xf32>
    %60 = tpu.matmul %56, %39, %cst_33 {dimension_numbers = #tpu.dot_dimension_numbers<[1], [0], [0], [1], [0, 0, 1, 1], [], []>} : vector<8x8xf32>, vector<8x64xf32>, vector<8x64xf32> -> vector<8x64xf32>
    %61 = tpu.concatenate %36, %60 in 1 : vector<8x64xf32>, vector<8x64xf32> -> vector<8x128xf32>
    %c0_34 = arith.constant 0 : index
    %c0_35 = arith.constant 0 : index
    %c0_36 = arith.constant 0 : index
    %62 = vector.load %arg6[%c0_34, %c0_35, %c0_36] : memref<2x128x32xf32, #tpu.memory_space<vmem>>, vector<1x128x32xf32>
    %63 = vector.shape_cast %62 : vector<1x128x32xf32> to vector<128x32xf32>
    %cst_37 = arith.constant dense<0.000000e+00> : vector<8x32xf32>
    %64 = tpu.matmul %61, %63, %cst_37 {dimension_numbers = #tpu.dot_dimension_numbers<[1], [0], [0], [1], [0, 0, 1, 1], [], []>} : vector<8x128xf32>, vector<128x32xf32>, vector<8x32xf32> -> vector<8x32xf32>
    %65 = arith.addf %64, %9 : vector<8x32xf32>
    %c0_38 = arith.constant 0 : index
    %c0_39 = arith.constant 0 : index
    %c0_40 = arith.constant 0 : index
    %66 = vector.load %arg7[%c0_38, %c0_39, %c0_40] : memref<2x1x32xf32, #tpu.memory_space<vmem>>, vector<1x1x32xf32>
    %67 = vector.shape_cast %66 : vector<1x1x32xf32> to vector<1x32xf32>
    %c0_41 = arith.constant 0 : index
    %c0_42 = arith.constant 0 : index
    %c0_43 = arith.constant 0 : index
    %68 = vector.load %arg8[%c0_41, %c0_42, %c0_43] : memref<2x1x32xf32, #tpu.memory_space<vmem>>, vector<1x1x32xf32>
    %69 = vector.shape_cast %68 : vector<1x1x32xf32> to vector<1x32xf32>
    %cst_44 = arith.constant dense<0.000000e+00> : vector<8xf32>
    %70 = vector.multi_reduction <add>, %65, %cst_44 [1] : vector<8x32xf32> to vector<8xf32>
    %71 = vector.shape_cast %70 : vector<8xf32> to vector<8x1xf32>
    %cst_45 = arith.constant 3.200000e+01 : f32
    %72 = vector.broadcast %cst_45 : f32 to vector<8x1xf32>
    %73 = arith.divf %71, %72 : vector<8x1xf32>
    %74 = vector.broadcast %73 : vector<8x1xf32> to vector<8x32xf32>
    %75 = arith.subf %65, %74 : vector<8x32xf32>
    %76 = arith.mulf %75, %75 : vector<8x32xf32>
    %cst_46 = arith.constant dense<0.000000e+00> : vector<8xf32>
    %77 = vector.multi_reduction <add>, %76, %cst_46 [1] : vector<8x32xf32> to vector<8xf32>
    %78 = vector.shape_cast %77 : vector<8xf32> to vector<8x1xf32>
    %cst_47 = arith.constant 3.200000e+01 : f32
    %79 = vector.broadcast %cst_47 : f32 to vector<8x1xf32>
    %80 = arith.divf %78, %79 : vector<8x1xf32>
    %81 = vector.broadcast %73 : vector<8x1xf32> to vector<8x32xf32>
    %82 = arith.subf %65, %81 : vector<8x32xf32>
    %cst_48 = arith.constant 9.99999974E-6 : f32
    %83 = vector.broadcast %cst_48 : f32 to vector<8x1xf32>
    %84 = arith.addf %80, %83 : vector<8x1xf32>
    %85 = math.rsqrt %84 : vector<8x1xf32>
    %86 = vector.broadcast %85 : vector<8x1xf32> to vector<8x32xf32>
    %87 = arith.mulf %82, %86 : vector<8x32xf32>
    %88 = vector.broadcast %67 : vector<1x32xf32> to vector<8x32xf32>
    %89 = arith.mulf %87, %88 : vector<8x32xf32>
    %90 = vector.broadcast %69 : vector<1x32xf32> to vector<8x32xf32>
    %91 = arith.addf %89, %90 : vector<8x32xf32>
    %c0_49 = arith.constant 0 : index
    %c0_50 = arith.constant 0 : index
    %c0_51 = arith.constant 0 : index
    %92 = vector.load %arg9[%c0_49, %c0_50, %c0_51] : memref<2x32x512xf32, #tpu.memory_space<vmem>>, vector<1x32x512xf32>
    %93 = vector.shape_cast %92 : vector<1x32x512xf32> to vector<32x512xf32>
    %cst_52 = arith.constant dense<0.000000e+00> : vector<8x512xf32>
    %94 = tpu.matmul %91, %93, %cst_52 {dimension_numbers = #tpu.dot_dimension_numbers<[1], [0], [0], [1], [0, 0, 1, 1], [], []>} : vector<8x32xf32>, vector<32x512xf32>, vector<8x512xf32> -> vector<8x512xf32>
    %cst_53 = arith.constant 0.000000e+00 : f32
    %95 = vector.broadcast %cst_53 : f32 to vector<8x512xf32>
    %96 = arith.maximumf %94, %95 : vector<8x512xf32>
    %c0_54 = arith.constant 0 : index
    %c0_55 = arith.constant 0 : index
    %c0_56 = arith.constant 0 : index
    %97 = vector.load %arg10[%c0_54, %c0_55, %c0_56] : memref<2x512x32xf32, #tpu.memory_space<vmem>>, vector<1x512x32xf32>
    %98 = vector.shape_cast %97 : vector<1x512x32xf32> to vector<512x32xf32>
    %cst_57 = arith.constant dense<0.000000e+00> : vector<8x32xf32>
    %99 = tpu.matmul %96, %98, %cst_57 {dimension_numbers = #tpu.dot_dimension_numbers<[1], [0], [0], [1], [0, 0, 1, 1], [], []>} : vector<8x512xf32>, vector<512x32xf32>, vector<8x32xf32> -> vector<8x32xf32>
    %100 = arith.addf %99, %91 : vector<8x32xf32>
    %c0_58 = arith.constant 0 : index
    %c0_59 = arith.constant 0 : index
    %c0_60 = arith.constant 0 : index
    %101 = vector.load %arg11[%c0_58, %c0_59, %c0_60] : memref<2x1x32xf32, #tpu.memory_space<vmem>>, vector<1x1x32xf32>
    %102 = vector.shape_cast %101 : vector<1x1x32xf32> to vector<1x32xf32>
    %c0_61 = arith.constant 0 : index
    %c0_62 = arith.constant 0 : index
    %c0_63 = arith.constant 0 : index
    %103 = vector.load %arg12[%c0_61, %c0_62, %c0_63] : memref<2x1x32xf32, #tpu.memory_space<vmem>>, vector<1x1x32xf32>
    %104 = vector.shape_cast %103 : vector<1x1x32xf32> to vector<1x32xf32>
    %cst_64 = arith.constant dense<0.000000e+00> : vector<8xf32>
    %105 = vector.multi_reduction <add>, %100, %cst_64 [1] : vector<8x32xf32> to vector<8xf32>
    %106 = vector.shape_cast %105 : vector<8xf32> to vector<8x1xf32>
    %cst_65 = arith.constant 3.200000e+01 : f32
    %107 = vector.broadcast %cst_65 : f32 to vector<8x1xf32>
    %108 = arith.divf %106, %107 : vector<8x1xf32>
    %109 = vector.broadcast %108 : vector<8x1xf32> to vector<8x32xf32>
    %110 = arith.subf %100, %109 : vector<8x32xf32>
    %111 = arith.mulf %110, %110 : vector<8x32xf32>
    %cst_66 = arith.constant dense<0.000000e+00> : vector<8xf32>
    %112 = vector.multi_reduction <add>, %111, %cst_66 [1] : vector<8x32xf32> to vector<8xf32>
    %113 = vector.shape_cast %112 : vector<8xf32> to vector<8x1xf32>
    %cst_67 = arith.constant 3.200000e+01 : f32
    %114 = vector.broadcast %cst_67 : f32 to vector<8x1xf32>
    %115 = arith.divf %113, %114 : vector<8x1xf32>
    %116 = vector.broadcast %108 : vector<8x1xf32> to vector<8x32xf32>
    %117 = arith.subf %100, %116 : vector<8x32xf32>
    %cst_68 = arith.constant 9.99999974E-6 : f32
    %118 = vector.broadcast %cst_68 : f32 to vector<8x1xf32>
    %119 = arith.addf %115, %118 : vector<8x1xf32>
    %120 = math.rsqrt %119 : vector<8x1xf32>
    %121 = vector.broadcast %120 : vector<8x1xf32> to vector<8x32xf32>
    %122 = arith.mulf %117, %121 : vector<8x32xf32>
    %123 = vector.broadcast %102 : vector<1x32xf32> to vector<8x32xf32>
    %124 = arith.mulf %122, %123 : vector<8x32xf32>
    %125 = vector.broadcast %104 : vector<1x32xf32> to vector<8x32xf32>
    %126 = arith.addf %124, %125 : vector<8x32xf32>
    %c1_69 = arith.constant 1 : index
    %c0_70 = arith.constant 0 : index
    %c0_71 = arith.constant 0 : index
    %127 = vector.load %arg5[%c1_69, %c0_70, %c0_71] : memref<2x32x384xf32, #tpu.memory_space<vmem>>, vector<1x32x384xf32>
    %128 = vector.shape_cast %127 : vector<1x32x384xf32> to vector<32x384xf32>
    %cst_72 = arith.constant dense<0.000000e+00> : vector<8x384xf32>
    %129 = tpu.matmul %126, %128, %cst_72 {dimension_numbers = #tpu.dot_dimension_numbers<[1], [0], [0], [1], [0, 0, 1, 1], [], []>} : vector<8x32xf32>, vector<32x384xf32>, vector<8x384xf32> -> vector<8x384xf32>
    %130 = vector.extract_strided_slice %129 {offsets = [0, 0], sizes = [8, 64], strides = [1, 1]} : vector<8x384xf32> to vector<8x64xf32>
    %131 = vector.extract_strided_slice %129 {offsets = [0, 128], sizes = [8, 64], strides = [1, 1]} : vector<8x384xf32> to vector<8x64xf32>
    %132 = vector.extract_strided_slice %129 {offsets = [0, 256], sizes = [8, 64], strides = [1, 1]} : vector<8x384xf32> to vector<8x64xf32>
    %cst_73 = arith.constant dense<0.000000e+00> : vector<8x8xf32>
    %133 = tpu.matmul %130, %131, %cst_73 {dimension_numbers = #tpu.dot_dimension_numbers<[1], [1], [0], [0], [0, 0, 1, 0], [], []>} : vector<8x64xf32>, vector<8x64xf32>, vector<8x8xf32> -> vector<8x8xf32>
    %cst_74 = arith.constant 1.250000e-01 : f32
    %134 = vector.broadcast %cst_74 : f32 to vector<8x8xf32>
    %135 = arith.mulf %133, %134 : vector<8x8xf32>
    %cst_75 = arith.constant -1.000000e+09 : f32
    %136 = vector.shape_cast %5 : vector<1x8xi1> to vector<1x8xi1>
    %137 = vector.broadcast %136 : vector<1x8xi1> to vector<8x8xi1>
    %138 = vector.broadcast %cst_75 : f32 to vector<8x8xf32>
    %139 = arith.select %137, %138, %135 : vector<8x8xi1>, vector<8x8xf32>
    %cst_76 = arith.constant dense<0xFF800000> : vector<8xf32>
    %140 = vector.multi_reduction <maximumf>, %139, %cst_76 [1] : vector<8x8xf32> to vector<8xf32>
    %141 = vector.shape_cast %140 : vector<8xf32> to vector<8x1xf32>
    %142 = vector.broadcast %141 : vector<8x1xf32> to vector<8x8xf32>
    %143 = arith.subf %139, %142 : vector<8x8xf32>
    %144 = math.exp %143 : vector<8x8xf32>
    %cst_77 = arith.constant dense<0.000000e+00> : vector<8xf32>
    %145 = vector.multi_reduction <add>, %144, %cst_77 [1] : vector<8x8xf32> to vector<8xf32>
    %146 = vector.shape_cast %145 : vector<8xf32> to vector<8x1xf32>
    %147 = tpu.reciprocal %146 : vector<8x1xf32> -> vector<8x1xf32>
    %148 = vector.broadcast %147 : vector<8x1xf32> to vector<8x8xf32>
    %149 = arith.mulf %144, %148 : vector<8x8xf32>
    %c1_78 = arith.constant 1 : index
    %c0_79 = arith.constant 0 : index
    %c0_80 = arith.constant 0 : index
    %c0_81 = arith.constant 0 : index
    %c0_82 = arith.constant 0 : index
    %150 = vector.load %arg14[%c1_78, %c0_79, %c0_80, %c0_81, %c0_82] : memref<2x1x2x8x8xf32, #tpu.memory_space<vmem>>, vector<1x1x1x8x8xf32>
    %151 = vector.shape_cast %150 : vector<1x1x1x8x8xf32> to vector<8x8xf32>
    %152 = vector.shape_cast %149 : vector<8x8xf32> to vector<1x1x1x8x8xf32>
    tpu.vector_store %arg14[%c1_78, %c0_79, %c0_80, %c0_81, %c0_82], %152 {strides = array<i32>} : memref<2x1x2x8x8xf32, #tpu.memory_space<vmem>>, vector<1x1x1x8x8xf32>,
    %cst_83 = arith.constant dense<0.000000e+00> : vector<8x64xf32>
    %153 = tpu.matmul %149, %132, %cst_83 {dimension_numbers = #tpu.dot_dimension_numbers<[1], [0], [0], [1], [0, 0, 1, 1], [], []>} : vector<8x8xf32>, vector<8x64xf32>, vector<8x64xf32> -> vector<8x64xf32>
    %154 = vector.extract_strided_slice %129 {offsets = [0, 64], sizes = [8, 64], strides = [1, 1]} : vector<8x384xf32> to vector<8x64xf32>
    %155 = vector.extract_strided_slice %129 {offsets = [0, 192], sizes = [8, 64], strides = [1, 1]} : vector<8x384xf32> to vector<8x64xf32>
    %156 = vector.extract_strided_slice %129 {offsets = [0, 320], sizes = [8, 64], strides = [1, 1]} : vector<8x384xf32> to vector<8x64xf32>
    %cst_84 = arith.constant dense<0.000000e+00> : vector<8x8xf32>
    %157 = tpu.matmul %154, %155, %cst_84 {dimension_numbers = #tpu.dot_dimension_numbers<[1], [1], [0], [0], [0, 0, 1, 0], [], []>} : vector<8x64xf32>, vector<8x64xf32>, vector<8x8xf32> -> vector<8x8xf32>
    %cst_85 = arith.constant 1.250000e-01 : f32
    %158 = vector.broadcast %cst_85 : f32 to vector<8x8xf32>
    %159 = arith.mulf %157, %158 : vector<8x8xf32>
    %cst_86 = arith.constant -1.000000e+09 : f32
    %160 = vector.shape_cast %5 : vector<1x8xi1> to vector<1x8xi1>
    %161 = vector.broadcast %160 : vector<1x8xi1> to vector<8x8xi1>
    %162 = vector.broadcast %cst_86 : f32 to vector<8x8xf32>
    %163 = arith.select %161, %162, %159 : vector<8x8xi1>, vector<8x8xf32>
    %cst_87 = arith.constant dense<0xFF800000> : vector<8xf32>
    %164 = vector.multi_reduction <maximumf>, %163, %cst_87 [1] : vector<8x8xf32> to vector<8xf32>
    %165 = vector.shape_cast %164 : vector<8xf32> to vector<8x1xf32>
    %166 = vector.broadcast %165 : vector<8x1xf32> to vector<8x8xf32>
    %167 = arith.subf %163, %166 : vector<8x8xf32>
    %168 = math.exp %167 : vector<8x8xf32>
    %cst_88 = arith.constant dense<0.000000e+00> : vector<8xf32>
    %169 = vector.multi_reduction <add>, %168, %cst_88 [1] : vector<8x8xf32> to vector<8xf32>
    %170 = vector.shape_cast %169 : vector<8xf32> to vector<8x1xf32>
    %171 = tpu.reciprocal %170 : vector<8x1xf32> -> vector<8x1xf32>
    %172 = vector.broadcast %171 : vector<8x1xf32> to vector<8x8xf32>
    %173 = arith.mulf %168, %172 : vector<8x8xf32>
    %c1_89 = arith.constant 1 : index
    %c0_90 = arith.constant 0 : index
    %c1_91 = arith.constant 1 : index
    %c0_92 = arith.constant 0 : index
    %c0_93 = arith.constant 0 : index
    %174 = vector.load %arg14[%c1_89, %c0_90, %c1_91, %c0_92, %c0_93] : memref<2x1x2x8x8xf32, #tpu.memory_space<vmem>>, vector<1x1x1x8x8xf32>
    %175 = vector.shape_cast %174 : vector<1x1x1x8x8xf32> to vector<8x8xf32>
    %176 = vector.shape_cast %173 : vector<8x8xf32> to vector<1x1x1x8x8xf32>
    tpu.vector_store %arg14[%c1_89, %c0_90, %c1_91, %c0_92, %c0_93], %176 {strides = array<i32>} : memref<2x1x2x8x8xf32, #tpu.memory_space<vmem>>, vector<1x1x1x8x8xf32>,
    %cst_94 = arith.constant dense<0.000000e+00> : vector<8x64xf32>
    %177 = tpu.matmul %173, %156, %cst_94 {dimension_numbers = #tpu.dot_dimension_numbers<[1], [0], [0], [1], [0, 0, 1, 1], [], []>} : vector<8x8xf32>, vector<8x64xf32>, vector<8x64xf32> -> vector<8x64xf32>
    %178 = tpu.concatenate %153, %177 in 1 : vector<8x64xf32>, vector<8x64xf32> -> vector<8x128xf32>
    %c1_95 = arith.constant 1 : index
    %c0_96 = arith.constant 0 : index
    %c0_97 = arith.constant 0 : index
    %179 = vector.load %arg6[%c1_95, %c0_96, %c0_97] : memref<2x128x32xf32, #tpu.memory_space<vmem>>, vector<1x128x32xf32>
    %180 = vector.shape_cast %179 : vector<1x128x32xf32> to vector<128x32xf32>
    %cst_98 = arith.constant dense<0.000000e+00> : vector<8x32xf32>
    %181 = tpu.matmul %178, %180, %cst_98 {dimension_numbers = #tpu.dot_dimension_numbers<[1], [0], [0], [1], [0, 0, 1, 1], [], []>} : vector<8x128xf32>, vector<128x32xf32>, vector<8x32xf32> -> vector<8x32xf32>
    %182 = arith.addf %181, %126 : vector<8x32xf32>
    %c1_99 = arith.constant 1 : index
    %c0_100 = arith.constant 0 : index
    %c0_101 = arith.constant 0 : index
    %183 = vector.load %arg7[%c1_99, %c0_100, %c0_101] : memref<2x1x32xf32, #tpu.memory_space<vmem>>, vector<1x1x32xf32>
    %184 = vector.shape_cast %183 : vector<1x1x32xf32> to vector<1x32xf32>
    %c1_102 = arith.constant 1 : index
    %c0_103 = arith.constant 0 : index
    %c0_104 = arith.constant 0 : index
    %185 = vector.load %arg8[%c1_102, %c0_103, %c0_104] : memref<2x1x32xf32, #tpu.memory_space<vmem>>, vector<1x1x32xf32>
    %186 = vector.shape_cast %185 : vector<1x1x32xf32> to vector<1x32xf32>
    %cst_105 = arith.constant dense<0.000000e+00> : vector<8xf32>
    %187 = vector.multi_reduction <add>, %182, %cst_105 [1] : vector<8x32xf32> to vector<8xf32>
    %188 = vector.shape_cast %187 : vector<8xf32> to vector<8x1xf32>
    %cst_106 = arith.constant 3.200000e+01 : f32
    %189 = vector.broadcast %cst_106 : f32 to vector<8x1xf32>
    %190 = arith.divf %188, %189 : vector<8x1xf32>
    %191 = vector.broadcast %190 : vector<8x1xf32> to vector<8x32xf32>
    %192 = arith.subf %182, %191 : vector<8x32xf32>
    %193 = arith.mulf %192, %192 : vector<8x32xf32>
    %cst_107 = arith.constant dense<0.000000e+00> : vector<8xf32>
    %194 = vector.multi_reduction <add>, %193, %cst_107 [1] : vector<8x32xf32> to vector<8xf32>
    %195 = vector.shape_cast %194 : vector<8xf32> to vector<8x1xf32>
    %cst_108 = arith.constant 3.200000e+01 : f32
    %196 = vector.broadcast %cst_108 : f32 to vector<8x1xf32>
    %197 = arith.divf %195, %196 : vector<8x1xf32>
    %198 = vector.broadcast %190 : vector<8x1xf32> to vector<8x32xf32>
    %199 = arith.subf %182, %198 : vector<8x32xf32>
    %cst_109 = arith.constant 9.99999974E-6 : f32
    %200 = vector.broadcast %cst_109 : f32 to vector<8x1xf32>
    %201 = arith.addf %197, %200 : vector<8x1xf32>
    %202 = math.rsqrt %201 : vector<8x1xf32>
    %203 = vector.broadcast %202 : vector<8x1xf32> to vector<8x32xf32>
    %204 = arith.mulf %199, %203 : vector<8x32xf32>
    %205 = vector.broadcast %184 : vector<1x32xf32> to vector<8x32xf32>
    %206 = arith.mulf %204, %205 : vector<8x32xf32>
    %207 = vector.broadcast %186 : vector<1x32xf32> to vector<8x32xf32>
    %208 = arith.addf %206, %207 : vector<8x32xf32>
    %c1_110 = arith.constant 1 : index
    %c0_111 = arith.constant 0 : index
    %c0_112 = arith.constant 0 : index
    %209 = vector.load %arg9[%c1_110, %c0_111, %c0_112] : memref<2x32x512xf32, #tpu.memory_space<vmem>>, vector<1x32x512xf32>
    %210 = vector.shape_cast %209 : vector<1x32x512xf32> to vector<32x512xf32>
    %cst_113 = arith.constant dense<0.000000e+00> : vector<8x512xf32>
    %211 = tpu.matmul %208, %210, %cst_113 {dimension_numbers = #tpu.dot_dimension_numbers<[1], [0], [0], [1], [0, 0, 1, 1], [], []>} : vector<8x32xf32>, vector<32x512xf32>, vector<8x512xf32> -> vector<8x512xf32>
    %cst_114 = arith.constant 0.000000e+00 : f32
    %212 = vector.broadcast %cst_114 : f32 to vector<8x512xf32>
    %213 = arith.maximumf %211, %212 : vector<8x512xf32>
    %c1_115 = arith.constant 1 : index
    %c0_116 = arith.constant 0 : index
    %c0_117 = arith.constant 0 : index
    %214 = vector.load %arg10[%c1_115, %c0_116, %c0_117] : memref<2x512x32xf32, #tpu.memory_space<vmem>>, vector<1x512x32xf32>
    %215 = vector.shape_cast %214 : vector<1x512x32xf32> to vector<512x32xf32>
    %cst_118 = arith.constant dense<0.000000e+00> : vector<8x32xf32>
    %216 = tpu.matmul %213, %215, %cst_118 {dimension_numbers = #tpu.dot_dimension_numbers<[1], [0], [0], [1], [0, 0, 1, 1], [], []>} : vector<8x512xf32>, vector<512x32xf32>, vector<8x32xf32> -> vector<8x32xf32>
    %217 = arith.addf %216, %208 : vector<8x32xf32>
    %c1_119 = arith.constant 1 : index
    %c0_120 = arith.constant 0 : index
    %c0_121 = arith.constant 0 : index
    %218 = vector.load %arg11[%c1_119, %c0_120, %c0_121] : memref<2x1x32xf32, #tpu.memory_space<vmem>>, vector<1x1x32xf32>
    %219 = vector.shape_cast %218 : vector<1x1x32xf32> to vector<1x32xf32>
    %c1_122 = arith.constant 1 : index
    %c0_123 = arith.constant 0 : index
    %c0_124 = arith.constant 0 : index
    %220 = vector.load %arg12[%c1_122, %c0_123, %c0_124] : memref<2x1x32xf32, #tpu.memory_space<vmem>>, vector<1x1x32xf32>
    %221 = vector.shape_cast %220 : vector<1x1x32xf32> to vector<1x32xf32>
    %cst_125 = arith.constant dense<0.000000e+00> : vector<8xf32>
    %222 = vector.multi_reduction <add>, %217, %cst_125 [1] : vector<8x32xf32> to vector<8xf32>
    %223 = vector.shape_cast %222 : vector<8xf32> to vector<8x1xf32>
    %cst_126 = arith.constant 3.200000e+01 : f32
    %224 = vector.broadcast %cst_126 : f32 to vector<8x1xf32>
    %225 = arith.divf %223, %224 : vector<8x1xf32>
    %226 = vector.broadcast %225 : vector<8x1xf32> to vector<8x32xf32>
    %227 = arith.subf %217, %226 : vector<8x32xf32>
    %228 = arith.mulf %227, %227 : vector<8x32xf32>
    %cst_127 = arith.constant dense<0.000000e+00> : vector<8xf32>
    %229 = vector.multi_reduction <add>, %228, %cst_127 [1] : vector<8x32xf32> to vector<8xf32>
    %230 = vector.shape_cast %229 : vector<8xf32> to vector<8x1xf32>
    %cst_128 = arith.constant 3.200000e+01 : f32
    %231 = vector.broadcast %cst_128 : f32 to vector<8x1xf32>
    %232 = arith.divf %230, %231 : vector<8x1xf32>
    %233 = vector.broadcast %225 : vector<8x1xf32> to vector<8x32xf32>
    %234 = arith.subf %217, %233 : vector<8x32xf32>
    %cst_129 = arith.constant 9.99999974E-6 : f32
    %235 = vector.broadcast %cst_129 : f32 to vector<8x1xf32>
    %236 = arith.addf %232, %235 : vector<8x1xf32>
    %237 = math.rsqrt %236 : vector<8x1xf32>
    %238 = vector.broadcast %237 : vector<8x1xf32> to vector<8x32xf32>
    %239 = arith.mulf %234, %238 : vector<8x32xf32>
    %240 = vector.broadcast %219 : vector<1x32xf32> to vector<8x32xf32>
    %241 = arith.mulf %239, %240 : vector<8x32xf32>
    %242 = vector.broadcast %221 : vector<1x32xf32> to vector<8x32xf32>
    %243 = arith.addf %241, %242 : vector<8x32xf32>
    %c0_130 = arith.constant 0 : index
    %c0_131 = arith.constant 0 : index
    %c0_132 = arith.constant 0 : index
    %244 = vector.load %arg13[%c0_130, %c0_131, %c0_132] : memref<1x8x32xf32, #tpu.memory_space<vmem>>, vector<1x8x32xf32>
    %245 = vector.shape_cast %244 : vector<1x8x32xf32> to vector<8x32xf32>
    %246 = vector.shape_cast %243 : vector<8x32xf32> to vector<1x8x32xf32>
    tpu.vector_store %arg13[%c0_130, %c0_131, %c0_132], %246 {strides = array<i32>} : memref<1x8x32xf32, #tpu.memory_space<vmem>>, vector<1x8x32xf32>,
    return
  }
  func.func @transform_0(%arg0: i32) -> (i32, i32, i32) {
    %c0_i32 = arith.constant 0 : i32
    %c0_i32_0 = arith.constant 0 : i32
    %c0_i32_1 = arith.constant 0 : i32
    return %arg0, %c0_i32, %c0_i32_0 : i32, i32, i32
  }
  func.func @transform_1(%arg0: i32) -> (i32, i32, i32) {
    %c0_i32 = arith.constant 0 : i32
    %c0_i32_0 = arith.constant 0 : i32
    %c0_i32_1 = arith.constant 0 : i32
    return %arg0, %c0_i32, %c0_i32_0 : i32, i32, i32
  }
  func.func @transform_2(%arg0: i32) -> (i32, i32) {
    %c0_i32 = arith.constant 0 : i32
    %c0_i32_0 = arith.constant 0 : i32
    %c0_i32_1 = arith.constant 0 : i32
    return %c0_i32, %c0_i32_0 : i32, i32
  }
  func.func @transform_3(%arg0: i32) -> (i32, i32) {
    %c0_i32 = arith.constant 0 : i32
    %c0_i32_0 = arith.constant 0 : i32
    %c0_i32_1 = arith.constant 0 : i32
    return %c0_i32, %c0_i32_0 : i32, i32
  }
  func.func @transform_4(%arg0: i32) -> (i32, i32, i32) {
    %c0_i32 = arith.constant 0 : i32
    %c0_i32_0 = arith.constant 0 : i32
    %c0_i32_1 = arith.constant 0 : i32
    %c0_i32_2 = arith.constant 0 : i32
    return %c0_i32, %c0_i32_0, %c0_i32_1 : i32, i32, i32
  }
  func.func @transform_5(%arg0: i32) -> (i32, i32, i32) {
    %c0_i32 = arith.constant 0 : i32
    %c0_i32_0 = arith.constant 0 : i32
    %c0_i32_1 = arith.constant 0 : i32
    %c0_i32_2 = arith.constant 0 : i32
    return %c0_i32, %c0_i32_0, %c0_i32_1 : i32, i32, i32
  }
  func.func @transform_6(%arg0: i32) -> (i32, i32, i32) {
    %c0_i32 = arith.constant 0 : i32
    %c0_i32_0 = arith.constant 0 : i32
    %c0_i32_1 = arith.constant 0 : i32
    %c0_i32_2 = arith.constant 0 : i32
    return %c0_i32, %c0_i32_0, %c0_i32_1 : i32, i32, i32
  }
  func.func @transform_7(%arg0: i32) -> (i32, i32, i32) {
    %c0_i32 = arith.constant 0 : i32
    %c0_i32_0 = arith.constant 0 : i32
    %c0_i32_1 = arith.constant 0 : i32
    %c0_i32_2 = arith.constant 0 : i32
    return %c0_i32, %c0_i32_0, %c0_i32_1 : i32, i32, i32
  }
  func.func @transform_8(%arg0: i32) -> (i32, i32, i32) {
    %c0_i32 = arith.constant 0 : i32
    %c0_i32_0 = arith.constant 0 : i32
    %c0_i32_1 = arith.constant 0 : i32
    %c0_i32_2 = arith.constant 0 : i32
    return %c0_i32, %c0_i32_0, %c0_i32_1 : i32, i32, i32
  }
  func.func @transform_9(%arg0: i32) -> (i32, i32, i32) {
    %c0_i32 = arith.constant 0 : i32
    %c0_i32_0 = arith.constant 0 : i32
    %c0_i32_1 = arith.constant 0 : i32
    %c0_i32_2 = arith.constant 0 : i32
    return %c0_i32, %c0_i32_0, %c0_i32_1 : i32, i32, i32
  }
  func.func @transform_10(%arg0: i32) -> (i32, i32, i32) {
    %c0_i32 = arith.constant 0 : i32
    %c0_i32_0 = arith.constant 0 : i32
    %c0_i32_1 = arith.constant 0 : i32
    %c0_i32_2 = arith.constant 0 : i32
    return %c0_i32, %c0_i32_0, %c0_i32_1 : i32, i32, i32
  }
  func.func @transform_11(%arg0: i32) -> (i32, i32, i32) {
    %c0_i32 = arith.constant 0 : i32
    %c0_i32_0 = arith.constant 0 : i32
    %c0_i32_1 = arith.constant 0 : i32
    %c0_i32_2 = arith.constant 0 : i32
    return %c0_i32, %c0_i32_0, %c0_i32_1 : i32, i32, i32
  }
  func.func @transform_12(%arg0: i32) -> (i32, i32, i32) {
    %c0_i32 = arith.constant 0 : i32
    %c0_i32_0 = arith.constant 0 : i32
    %c0_i32_1 = arith.constant 0 : i32
    return %arg0, %c0_i32, %c0_i32_0 : i32, i32, i32
  }
  func.func @transform_13(%arg0: i32) -> (i32, i32, i32, i32, i32) {
    %c0_i32 = arith.constant 0 : i32
    %c0_i32_0 = arith.constant 0 : i32
    %c0_i32_1 = arith.constant 0 : i32
    %c0_i32_2 = arith.constant 0 : i32
    %c0_i32_3 = arith.constant 0 : i32
    return %c0_i32, %arg0, %c0_i32_0, %c0_i32_1, %c0_i32_2 : i32, i32, i32, i32, i32
  }
}

</mosaic_0001>

<llo_original>
// kernel: tpu_custom_call.1
$region0: #{tpu_custom_call.1}
  #allocation0 [shape = 'u32[]', space=smem, size = 0x4, offset = 0x4, fixed_abs, tag = 'smem constant byte address 0x4 - core index']
  #allocation1 [shape = 'u32[144,128]{1,0:T(1,128)}', space=vmem, size = 0x12000, scoped, tag = 'internal scratch']
  #allocation6 [shape = 's32[]', space=sflag, size = 0x4, offset = 0, fixed_abs, tag = 'sflag constant byte address 0x0 - dummy sync flag']
  %s0 = inlined_call_operand.vmem [shape: f32[2,8,32], index: 0, kind: input, shape index: {}]
  %s1 = inlined_call_operand.vmem [shape: s32[2,1,8], index: 1, kind: input, shape index: {}]
  %s2 = inlined_call_operand.vmem [shape: f32[8,32], index: 2, kind: input, shape index: {}]
  %s3 = inlined_call_operand.vmem [shape: f32[32,32], index: 3, kind: input, shape index: {}]
  %s4 = inlined_call_operand.vmem [shape: f32[2,32,384], index: 4, kind: input, shape index: {}]
  %s5 = inlined_call_operand.vmem [shape: f32[2,128,32], index: 5, kind: input, shape index: {}]
  %s6 = inlined_call_operand.vmem [shape: f32[2,1,32], index: 6, kind: input, shape index: {}]
  %s7 = inlined_call_operand.vmem [shape: f32[2,1,32], index: 7, kind: input, shape index: {}]
  %s8 = inlined_call_operand.vmem [shape: f32[2,32,512], index: 8, kind: input, shape index: {}]
  %s9 = inlined_call_operand.vmem [shape: f32[2,512,32], index: 9, kind: input, shape index: {}]
  %s10 = inlined_call_operand.vmem [shape: f32[2,1,32], index: 10, kind: input, shape index: {}]
  %s11 = inlined_call_operand.vmem [shape: f32[2,1,32], index: 11, kind: input, shape index: {}]
  %s12 = inlined_call_operand.hbm [shape: f32[2,8,32], index: 12, kind: output, shape index: {0}]
  %s13 = inlined_call_operand.hbm [shape: f32[2,2,2,8,8], index: 13, kind: output, shape index: {1}]
  %14 = xla_tuple %s12, %s13
  %s15 = sld [smem:[#allocation0]]
  $region89: #{tpu_custom_call.1} parent=0
    _
  %s17 = ssub.s32 1, %s15
  %s18 = scalar_select 0, %s17, %s15
  $region1: #{tpu_custom_call.1} parent=0
    #allocation2 [shape = 'u8[8192]{0}', space=vmem, size = 0x2000, scoped, tag = 'output window, operand 0']
    #allocation3 [shape = 's32[2]{0}', space=sflag, size = 0x8, scoped, tag = 'scoped memory for tpu_custom_call.1']
    #allocation4 [shape = 'u8[32768]{0}', space=vmem, size = 0x8000, scoped, tag = 'output window, operand 1']
    #allocation5 [shape = 's32[2]{0}', space=sflag, size = 0x8, scoped, tag = 'scoped memory for tpu_custom_call.1']
    %19 = vsyncpa [#allocation3], 0
    %s20 = scalar_lea.sflag [#allocation3], 1
    %21 = vsyncpa %s20, 0
    %22 = vsyncpa [#allocation5], 0
    %s23 = scalar_lea.sflag [#allocation5], 1
    %24 = vsyncpa %s23, 0
    loop: start=0, step=1, limit=4
    $region2: #{tpu_custom_call.1} parent=1 // loop_pre_header
      _
    $region3: #{tpu_custom_call.1} parent=1 // loop_header
      %s26 = sphi 0, %s30
      %p27 = scmp.ge.s32.totalorder %s26, 4
      %s36 = sphi 0, %s38
      %s39 = sphi 0, %s36
      %s40 = sphi 0, %s39
      %s56 = sphi 0, %s40
      %s62 = sphi 0, %s64
      %s65 = sphi 0, %s62
      %s66 = sphi 0, %s65
      %s82 = sphi 0, %s66
      %s86 = sphi 0, %s86
      %s88 = sphi 0, %s86
      %s89 = sphi 0, %s88
      %s103 = sphi 0, %s89
      %s107 = sphi 0, %s107
      %s109 = sphi 0, %s107
      %s110 = sphi 0, %s109
      %s124 = sphi 0, %s110
      %s128 = sphi 0, %s128
      %s130 = sphi 0, %s128
      %s131 = sphi 0, %s130
      %s145 = sphi 0, %s131
      %s149 = sphi 0, %s149
      %s151 = sphi 0, %s149
      %s152 = sphi 0, %s151
      %s166 = sphi 0, %s152
      %s170 = sphi 0, %s170
      %s172 = sphi 0, %s170
      %s173 = sphi 0, %s172
      %s187 = sphi 0, %s173
      %s191 = sphi 0, %s191
      %s193 = sphi 0, %s191
      %s194 = sphi 0, %s193
      %s208 = sphi 0, %s194
      %s212 = sphi 0, %s212
      %s214 = sphi 0, %s212
      %s215 = sphi 0, %s214
      %s229 = sphi 0, %s215
      %s233 = sphi 0, %s233
      %s235 = sphi 0, %s233
      %s236 = sphi 0, %s235
      %s250 = sphi 0, %s236
      %s254 = sphi 0, %s254
      %s256 = sphi 0, %s254
      %s257 = sphi 0, %s256
      %s271 = sphi 0, %s257
      %s275 = sphi 0, %s275
      %s277 = sphi 0, %s275
      %s278 = sphi 0, %s277
      %s292 = sphi 0, %s278
      %s298 = sphi 0, %s300
      %s301 = sphi 0, %s298
      %s302 = sphi 0, %s301
      %s318 = sphi 0, %s302
      %s324 = sphi 0, %s326
      %s327 = sphi 0, %s324
      %s328 = sphi 0, %s327
      %s344 = sphi 0, %s328
    $region4: #{tpu_custom_call.1} parent=1 // loop_header_branch
      %29 = sbr.rel (%p27) target = $region8
    $region5: #{tpu_custom_call.1} parent=1 // loop_body
      %s31 = ssub.s32 %s26, 1
      %s32 = ssub.s32 %s26, 2
      %s33 = sadd.s32 %s26, 1
      %s34 = ssub.s32 %s26, %s33
      %p35 = scmp.eq.s32.totalorder %s34, 0
      %s37 = sadd.s32 %s36, 1
      %s38 = scalar_select %p35, %s36, %s37
      %p41 = pneg %p35
      %p42 = scmp.eq.s32.totalorder %s26, 1
      %p43 = por %p41, %p42
      %p44 = scmp.ne.s32.totalorder %s36, %s39
      %p45 = scmp.eq.s32.totalorder %s26, 0
      %p46 = por %p44, %p45
      %p47 = scmp.ne.s32.totalorder %s36, %s39
      %p48 = scmp.eq.s32.totalorder %s31, 1
      %p49 = por %p47, %p48
      %p50 = scmp.ne.s32.totalorder %s39, %s40
      %p51 = scmp.eq.s32.totalorder %s31, 0
      %p52 = por %p50, %p51
      %p53 = scmp.ne.s32.totalorder %s39, %s40
      %p54 = scmp.eq.s32.totalorder %s32, 1
      %p55 = por %p53, %p54
      %p57 = scmp.ne.s32.totalorder %s40, %s56
      %p58 = scmp.eq.s32.totalorder %s32, 0
      %p59 = por %p57, %p58
      %s60 = ssub.s32 %s26, %s33
      %p61 = scmp.eq.s32.totalorder %s60, 0
      %s63 = sadd.s32 %s62, 1
      %s64 = scalar_select %p61, %s62, %s63
      %p67 = pneg %p61
      %p68 = scmp.eq.s32.totalorder %s26, 1
      %p69 = por %p67, %p68
      %p70 = scmp.ne.s32.totalorder %s62, %s65
      %p71 = scmp.eq.s32.totalorder %s26, 0
      %p72 = por %p70, %p71
      %p73 = scmp.ne.s32.totalorder %s62, %s65
      %p74 = scmp.eq.s32.totalorder %s31, 1
      %p75 = por %p73, %p74
      %p76 = scmp.ne.s32.totalorder %s65, %s66
      %p77 = scmp.eq.s32.totalorder %s31, 0
      %p78 = por %p76, %p77
      %p79 = scmp.ne.s32.totalorder %s65, %s66
      %p80 = scmp.eq.s32.totalorder %s32, 1
      %p81 = por %p79, %p80
      %p83 = scmp.ne.s32.totalorder %s66, %s82
      %p84 = scmp.eq.s32.totalorder %s32, 0
      %p85 = por %p83, %p84
      %s87 = sadd.s32 %s86, 1
      %p90 = scmp.eq.s32.totalorder %s26, 1
      %p91 = scmp.ne.s32.totalorder %s86, %s88
      %p92 = scmp.eq.s32.totalorder %s26, 0
      %p93 = por %p91, %p92
      %p94 = scmp.ne.s32.totalorder %s86, %s88
      %p95 = scmp.eq.s32.totalorder %s31, 1
      %p96 = por %p94, %p95
      %p97 = scmp.ne.s32.totalorder %s88, %s89
      %p98 = scmp.eq.s32.totalorder %s31, 0
      %p99 = por %p97, %p98
      %p100 = scmp.ne.s32.totalorder %s88, %s89
      %p101 = scmp.eq.s32.totalorder %s32, 1
      %p102 = por %p100, %p101
      %p104 = scmp.ne.s32.totalorder %s89, %s103
      %p105 = scmp.eq.s32.totalorder %s32, 0
      %p106 = por %p104, %p105
      %s108 = sadd.s32 %s107, 1
      %p111 = scmp.eq.s32.totalorder %s26, 1
      %p112 = scmp.ne.s32.totalorder %s107, %s109
      %p113 = scmp.eq.s32.totalorder %s26, 0
      %p114 = por %p112, %p113
      %p115 = scmp.ne.s32.totalorder %s107, %s109
      %p116 = scmp.eq.s32.totalorder %s31, 1
      %p117 = por %p115, %p116
      %p118 = scmp.ne.s32.totalorder %s109, %s110
      %p119 = scmp.eq.s32.totalorder %s31, 0
      %p120 = por %p118, %p119
      %p121 = scmp.ne.s32.totalorder %s109, %s110
      %p122 = scmp.eq.s32.totalorder %s32, 1
      %p123 = por %p121, %p122
      %p125 = scmp.ne.s32.totalorder %s110, %s124
      %p126 = scmp.eq.s32.totalorder %s32, 0
      %p127 = por %p125, %p126
      %s129 = sadd.s32 %s128, 1
      %p132 = scmp.eq.s32.totalorder %s26, 1
      %p133 = scmp.ne.s32.totalorder %s128, %s130
      %p134 = scmp.eq.s32.totalorder %s26, 0
      %p135 = por %p133, %p134
      %p136 = scmp.ne.s32.totalorder %s128, %s130
      %p137 = scmp.eq.s32.totalorder %s31, 1
      %p138 = por %p136, %p137
      %p139 = scmp.ne.s32.totalorder %s130, %s131
      %p140 = scmp.eq.s32.totalorder %s31, 0
      %p141 = por %p139, %p140
      %p142 = scmp.ne.s32.totalorder %s130, %s131
      %p143 = scmp.eq.s32.totalorder %s32, 1
      %p144 = por %p142, %p143
      %p146 = scmp.ne.s32.totalorder %s131, %s145
      %p147 = scmp.eq.s32.totalorder %s32, 0
      %p148 = por %p146, %p147
      %s150 = sadd.s32 %s149, 1
      %p153 = scmp.eq.s32.totalorder %s26, 1
      %p154 = scmp.ne.s32.totalorder %s149, %s151
      %p155 = scmp.eq.s32.totalorder %s26, 0
      %p156 = por %p154, %p155
      %p157 = scmp.ne.s32.totalorder %s149, %s151
      %p158 = scmp.eq.s32.totalorder %s31, 1
      %p159 = por %p157, %p158
      %p160 = scmp.ne.s32.totalorder %s151, %s152
      %p161 = scmp.eq.s32.totalorder %s31, 0
      %p162 = por %p160, %p161
      %p163 = scmp.ne.s32.totalorder %s151, %s152
      %p164 = scmp.eq.s32.totalorder %s32, 1
      %p165 = por %p163, %p164
      %p167 = scmp.ne.s32.totalorder %s152, %s166
      %p168 = scmp.eq.s32.totalorder %s32, 0
      %p169 = por %p167, %p168
      %s171 = sadd.s32 %s170, 1
      %p174 = scmp.eq.s32.totalorder %s26, 1
      %p175 = scmp.ne.s32.totalorder %s170, %s172
      %p176 = scmp.eq.s32.totalorder %s26, 0
      %p177 = por %p175, %p176
      %p178 = scmp.ne.s32.totalorder %s170, %s172
      %p179 = scmp.eq.s32.totalorder %s31, 1
      %p180 = por %p178, %p179
      %p181 = scmp.ne.s32.totalorder %s172, %s173
      %p182 = scmp.eq.s32.totalorder %s31, 0
      %p183 = por %p181, %p182
      %p184 = scmp.ne.s32.totalorder %s172, %s173
      %p185 = scmp.eq.s32.totalorder %s32, 1
      %p186 = por %p184, %p185
      %p188 = scmp.ne.s32.totalorder %s173, %s187
      %p189 = scmp.eq.s32.totalorder %s32, 0
      %p190 = por %p188, %p189
      %s192 = sadd.s32 %s191, 1
      %p195 = scmp.eq.s32.totalorder %s26, 1
      %p196 = scmp.ne.s32.totalorder %s191, %s193
      %p197 = scmp.eq.s32.totalorder %s26, 0
      %p198 = por %p196, %p197
      %p199 = scmp.ne.s32.totalorder %s191, %s193
      %p200 = scmp.eq.s32.totalorder %s31, 1
      %p201 = por %p199, %p200
      %p202 = scmp.ne.s32.totalorder %s193, %s194
      %p203 = scmp.eq.s32.totalorder %s31, 0
      %p204 = por %p202, %p203
      %p205 = scmp.ne.s32.totalorder %s193, %s194
      %p206 = scmp.eq.s32.totalorder %s32, 1
      %p207 = por %p205, %p206
      %p209 = scmp.ne.s32.totalorder %s194, %s208
      %p210 = scmp.eq.s32.totalorder %s32, 0
      %p211 = por %p209, %p210
      %s213 = sadd.s32 %s212, 1
      %p216 = scmp.eq.s32.totalorder %s26, 1
      %p217 = scmp.ne.s32.totalorder %s212, %s214
      %p218 = scmp.eq.s32.totalorder %s26, 0
      %p219 = por %p217, %p218
      %p220 = scmp.ne.s32.totalorder %s212, %s214
      %p221 = scmp.eq.s32.totalorder %s31, 1
      %p222 = por %p220, %p221
      %p223 = scmp.ne.s32.totalorder %s214, %s215
      %p224 = scmp.eq.s32.totalorder %s31, 0
      %p225 = por %p223, %p224
      %p226 = scmp.ne.s32.totalorder %s214, %s215
      %p227 = scmp.eq.s32.totalorder %s32, 1
      %p228 = por %p226, %p227
      %p230 = scmp.ne.s32.totalorder %s215, %s229
      %p231 = scmp.eq.s32.totalorder %s32, 0
      %p232 = por %p230, %p231
      %s234 = sadd.s32 %s233, 1
      %p237 = scmp.eq.s32.totalorder %s26, 1
      %p238 = scmp.ne.s32.totalorder %s233, %s235
      %p239 = scmp.eq.s32.totalorder %s26, 0
      %p240 = por %p238, %p239
      %p241 = scmp.ne.s32.totalorder %s233, %s235
      %p242 = scmp.eq.s32.totalorder %s31, 1
      %p243 = por %p241, %p242
      %p244 = scmp.ne.s32.totalorder %s235, %s236
      %p245 = scmp.eq.s32.totalorder %s31, 0
      %p246 = por %p244, %p245
      %p247 = scmp.ne.s32.totalorder %s235, %s236
      %p248 = scmp.eq.s32.totalorder %s32, 1
      %p249 = por %p247, %p248
      %p251 = scmp.ne.s32.totalorder %s236, %s250
      %p252 = scmp.eq.s32.totalorder %s32, 0
      %p253 = por %p251, %p252
      %s255 = sadd.s32 %s254, 1
      %p258 = scmp.eq.s32.totalorder %s26, 1
      %p259 = scmp.ne.s32.totalorder %s254, %s256
      %p260 = scmp.eq.s32.totalorder %s26, 0
      %p261 = por %p259, %p260
      %p262 = scmp.ne.s32.totalorder %s254, %s256
      %p263 = scmp.eq.s32.totalorder %s31, 1
      %p264 = por %p262, %p263
      %p265 = scmp.ne.s32.totalorder %s256, %s257
      %p266 = scmp.eq.s32.totalorder %s31, 0
      %p267 = por %p265, %p266
      %p268 = scmp.ne.s32.totalorder %s256, %s257
      %p269 = scmp.eq.s32.totalorder %s32, 1
      %p270 = por %p268, %p269
      %p272 = scmp.ne.s32.totalorder %s257, %s271
      %p273 = scmp.eq.s32.totalorder %s32, 0
      %p274 = por %p272, %p273
      %s276 = sadd.s32 %s275, 1
      %p279 = scmp.eq.s32.totalorder %s26, 1
      %p280 = scmp.ne.s32.totalorder %s275, %s277
      %p281 = scmp.eq.s32.totalorder %s26, 0
      %p282 = por %p280, %p281
      %p283 = scmp.ne.s32.totalorder %s275, %s277
      %p284 = scmp.eq.s32.totalorder %s31, 1
      %p285 = por %p283, %p284
      %p286 = scmp.ne.s32.totalorder %s277, %s278
      %p287 = scmp.eq.s32.totalorder %s31, 0
      %p288 = por %p286, %p287
      %p289 = scmp.ne.s32.totalorder %s277, %s278
      %p290 = scmp.eq.s32.totalorder %s32, 1
      %p291 = por %p289, %p290
      %p293 = scmp.ne.s32.totalorder %s278, %s292
      %p294 = scmp.eq.s32.totalorder %s32, 0
      %p295 = por %p293, %p294
      %s296 = ssub.s32 %s26, %s33
      %p297 = scmp.eq.s32.totalorder %s296, 0
      %s299 = sadd.s32 %s298, 1
      %s300 = scalar_select %p297, %s298, %s299
      %p303 = pneg %p297
      %p304 = scmp.eq.s32.totalorder %s26, 1
      %p305 = por %p303, %p304
      %p306 = scmp.ne.s32.totalorder %s298, %s301
      %p307 = scmp.eq.s32.totalorder %s26, 0
      %p308 = por %p306, %p307
      %p309 = scmp.ne.s32.totalorder %s298, %s301
      %p310 = scmp.eq.s32.totalorder %s31, 1
      %p311 = por %p309, %p310
      %p312 = scmp.ne.s32.totalorder %s301, %s302
      %p313 = scmp.eq.s32.totalorder %s31, 0
      %p314 = por %p312, %p313
      %p315 = scmp.ne.s32.totalorder %s301, %s302
      %p316 = scmp.eq.s32.totalorder %s32, 1
      %p317 = por %p315, %p316
      %p319 = scmp.ne.s32.totalorder %s302, %s318
      %p320 = scmp.eq.s32.totalorder %s32, 0
      %p321 = por %p319, %p320
      %s322 = ssub.s32 %s26, %s33
      %p323 = scmp.eq.s32.totalorder %s322, 0
      %s325 = sadd.s32 %s324, 1
      %s326 = scalar_select %p323, %s324, %s325
      %p329 = pneg %p323
      %p330 = scmp.eq.s32.totalorder %s26, 1
      %p331 = por %p329, %p330
      %p332 = scmp.ne.s32.totalorder %s324, %s327
      %p333 = scmp.eq.s32.totalorder %s26, 0
      %p334 = por %p332, %p333
      %p335 = scmp.ne.s32.totalorder %s324, %s327
      %p336 = scmp.eq.s32.totalorder %s31, 1
      %p337 = por %p335, %p336
      %p338 = scmp.ne.s32.totalorder %s327, %s328
      %p339 = scmp.eq.s32.totalorder %s31, 0
      %p340 = por %p338, %p339
      %p341 = scmp.ne.s32.totalorder %s327, %s328
      %p342 = scmp.eq.s32.totalorder %s32, 1
      %p343 = por %p341, %p342
      %p345 = scmp.ne.s32.totalorder %s328, %s344
      %p346 = scmp.eq.s32.totalorder %s32, 0
      %p347 = por %p345, %p346
      %p348 = scmp.le.s32.totalorder 1, %s26
      %p349 = scmp.lt.s32.totalorder %s26, 3
      %p350 = pnand %p348, %p349
      %p351 = pneg %p350
      // Predicated region
      $region9: #{tpu_custom_call.1} parent=5 // pred_check
        _
      $region10: #{tpu_custom_call.1} parent=5 // pred_check_branch
        %353 = sbr.rel (%p350) target = $region12
      $region11: #{tpu_custom_call.1} parent=5 // pred_region
        %s354 = ssub.s32 %s26, 1
        // Predicated region
        $region13: #{tpu_custom_call.1} parent=11 // pred_check
          %p355 = pneg %p99
        $region14: #{tpu_custom_call.1} parent=11 // pred_check_branch
          %357 = sbr.rel (%p355) target = $region16
        $region15: #{tpu_custom_call.1} parent=11 // pred_region
          _
        $region16: #{tpu_custom_call.1} parent=11 // pred_fallthru
          _
        // Predicated region
        $region17: #{tpu_custom_call.1} parent=11 // pred_check
          %p358 = pneg %p120
        $region18: #{tpu_custom_call.1} parent=11 // pred_check_branch
          %360 = sbr.rel (%p358) target = $region20
        $region19: #{tpu_custom_call.1} parent=11 // pred_region
          _
        $region20: #{tpu_custom_call.1} parent=11 // pred_fallthru
          _
        // Predicated region
        $region21: #{tpu_custom_call.1} parent=11 // pred_check
          %p361 = pneg %p141
        $region22: #{tpu_custom_call.1} parent=11 // pred_check_branch
          %363 = sbr.rel (%p361) target = $region24
        $region23: #{tpu_custom_call.1} parent=11 // pred_region
          _
        $region24: #{tpu_custom_call.1} parent=11 // pred_fallthru
          _
        // Predicated region
        $region25: #{tpu_custom_call.1} parent=11 // pred_check
          %p364 = pneg %p162
        $region26: #{tpu_custom_call.1} parent=11 // pred_check_branch
          %366 = sbr.rel (%p364) target = $region28
        $region27: #{tpu_custom_call.1} parent=11 // pred_region
          _
        $region28: #{tpu_custom_call.1} parent=11 // pred_fallthru
          _
        // Predicated region
        $region29: #{tpu_custom_call.1} parent=11 // pred_check
          %p367 = pneg %p183
        $region30: #{tpu_custom_call.1} parent=11 // pred_check_branch
          %369 = sbr.rel (%p367) target = $region32
        $region31: #{tpu_custom_call.1} parent=11 // pred_region
          _
        $region32: #{tpu_custom_call.1} parent=11 // pred_fallthru
          _
        // Predicated region
        $region33: #{tpu_custom_call.1} parent=11 // pred_check
          %p370 = pneg %p204
        $region34: #{tpu_custom_call.1} parent=11 // pred_check_branch
          %372 = sbr.rel (%p370) target = $region36
        $region35: #{tpu_custom_call.1} parent=11 // pred_region
          _
        $region36: #{tpu_custom_call.1} parent=11 // pred_fallthru
          _
        // Predicated region
        $region37: #{tpu_custom_call.1} parent=11 // pred_check
          %p373 = pneg %p225
        $region38: #{tpu_custom_call.1} parent=11 // pred_check_branch
          %375 = sbr.rel (%p373) target = $region40
        $region39: #{tpu_custom_call.1} parent=11 // pred_region
          _
        $region40: #{tpu_custom_call.1} parent=11 // pred_fallthru
          _
        // Predicated region
        $region41: #{tpu_custom_call.1} parent=11 // pred_check
          %p376 = pneg %p246
        $region42: #{tpu_custom_call.1} parent=11 // pred_check_branch
          %378 = sbr.rel (%p376) target = $region44
        $region43: #{tpu_custom_call.1} parent=11 // pred_region
          _
        $region44: #{tpu_custom_call.1} parent=11 // pred_fallthru
          _
        // Predicated region
        $region45: #{tpu_custom_call.1} parent=11 // pred_check
          %p379 = pneg %p267
        $region46: #{tpu_custom_call.1} parent=11 // pred_check_branch
          %381 = sbr.rel (%p379) target = $region48
        $region47: #{tpu_custom_call.1} parent=11 // pred_region
          _
        $region48: #{tpu_custom_call.1} parent=11 // pred_fallthru
          _
        // Predicated region
        $region49: #{tpu_custom_call.1} parent=11 // pred_check
          %p382 = pneg %p288
        $region50: #{tpu_custom_call.1} parent=11 // pred_check_branch
          %384 = sbr.rel (%p382) target = $region52
        $region51: #{tpu_custom_call.1} parent=11 // pred_region
          _
        $region52: #{tpu_custom_call.1} parent=11 // pred_fallthru
          _
      $region12: #{tpu_custom_call.1} parent=5 // pred_fallthru
        _
      %p385 = scmp.lt.s32.totalorder %s26, 2
      // Predicated region
      $region53: #{tpu_custom_call.1} parent=5 // pred_check
        %p386 = pneg %p385
      $region54: #{tpu_custom_call.1} parent=5 // pred_check_branch
        %388 = sbr.rel (%p386) target = $region56
      $region55: #{tpu_custom_call.1} parent=5 // pred_region
        // Predicated region
        $region57: #{tpu_custom_call.1} parent=55 // pred_check
          %p389 = pneg %p46
        $region58: #{tpu_custom_call.1} parent=55 // pred_check_branch
          %391 = sbr.rel (%p389) target = $region60
        $region59: #{tpu_custom_call.1} parent=55 // pred_region
          %p392 = scmp.lt.s32.totalorder %s26, 1
          %s393 = scalar_select %p392, %s26, 1
          %s394 = smul.addr %s393, 8
          %s395 = scalar_lea.vmem %s0, %s394
        $region60: #{tpu_custom_call.1} parent=55 // pred_fallthru
          _
        // Predicated region
        $region61: #{tpu_custom_call.1} parent=55 // pred_check
          %p396 = pneg %p72
        $region62: #{tpu_custom_call.1} parent=55 // pred_check_branch
          %398 = sbr.rel (%p396) target = $region64
        $region63: #{tpu_custom_call.1} parent=55 // pred_region
          %p399 = scmp.lt.s32.totalorder %s26, 1
          %s400 = scalar_select %p399, %s26, 1
          %s401 = scalar_lea.vmem %s1, %s400
        $region64: #{tpu_custom_call.1} parent=55 // pred_fallthru
          _
      $region56: #{tpu_custom_call.1} parent=5 // pred_fallthru
        _
      %p402 = scmp.le.s32.totalorder 1, %s26
      %p403 = scmp.lt.s32.totalorder %s26, 3
      %p404 = pnand %p402, %p403
      %p405 = pneg %p404
      // Predicated region
      $region65: #{tpu_custom_call.1} parent=5 // pred_check
        _
      $region66: #{tpu_custom_call.1} parent=5 // pred_check_branch
        %407 = sbr.rel (%p404) target = $region68
      $region67: #{tpu_custom_call.1} parent=5 // pred_region
        %s408 = ssub.s32 %s26, 1
        %p409 = scmp.lt.s32.totalorder %s31, 1
        %s410 = scalar_select %p409, %s31, 1
        %s411 = smul.addr %s410, 8
        %s412 = scalar_lea.vmem %s0, %s411
        %p413 = pneg %p52
        %p414 = pneg %p49
        %p415 = scmp.lt.s32.totalorder %s31, 1
        %s416 = scalar_select %p415, %s31, 1
        %s417 = scalar_lea.vmem %s1, %s416
        %p418 = pneg %p78
        %p419 = pneg %p75
        %p420 = pneg %p99
        %p421 = pneg %p96
        %p422 = pneg %p120
        %p423 = pneg %p117
        %p424 = pneg %p141
        %p425 = pneg %p138
        %p426 = pneg %p162
        %p427 = pneg %p159
        %p428 = pneg %p183
        %p429 = pneg %p180
        %p430 = pneg %p204
        %p431 = pneg %p201
        %p432 = pneg %p225
        %p433 = pneg %p222
        %p434 = pneg %p246
        %p435 = pneg %p243
        %p436 = pneg %p267
        %p437 = pneg %p264
        %p438 = pneg %p288
        %p439 = pneg %p285
        %p440 = pneg %p314
        %p441 = pneg %p311
        %s442 = sand.u32 %s301, 1
        %s443 = scalar_lea.sflag [#allocation3], %s442
        %s444 = sand.u32 %s301, 1
        %s445 = smul.addr %s444, 8
        %s446 = scalar_lea.vmem [#allocation2], %s445
        %p447 = pneg %p340
        %p448 = pneg %p337
        %s449 = sand.u32 %s327, 1
        %s450 = scalar_lea.sflag [#allocation5], %s449
        %s451 = sand.u32 %s327, 1
        %s452 = smul.addr %s451, 32
        %s453 = scalar_lea.vmem [#allocation4], %s452
        %p454 = scmp.lt.s32.totalorder %s31, 1
        %s455 = scalar_select %p454, %s31, 1
        %s456 = smul.addr %s455, 8
        %s457 = scalar_lea.vmem %s0, %s456
        %p458 = scmp.lt.s32.totalorder %s31, 1
        %s459 = scalar_select %p458, %s31, 1
        %s460 = scalar_lea.vmem %s1, %s459
        %v461 = vld [vmem:[%s457] sm:$0xff]
        %v462 = vld [vmem:[%s460] sm:$0x1]
        %vm463 = vcmp.ne.s32.totalorder %v462, 0
        %v464 = vld [vmem:[%s3] sm:$0xff]
        %v465 = vld [vmem:[%s3 + $0x8] sm:$0xff]
        %v466 = vld [vmem:[%s3 + $0x10] sm:$0xff]
        %v467 = vld [vmem:[%s3 + $0x18] sm:$0xff]
        %v468 = vld [vmem:[%s2] sm:$0xff]
        %vm469 = vcmask 261120
        %v471 = vsel %vm469, %v461, 0
        %473 = vmatprep.subr.mxu0 0.0
        %474 = vmatpush1.msra.mxu0 %v464
        %475 = vmatprep.subr.mxu0 0.0
        %476 = vmatpush1.msra.mxu0 %v465
        %477 = vmatprep.subr.mxu0 0.0
        %478 = vmatpush1.msra.mxu0 %v466
        %479 = vmatprep.subr.mxu0 0.0
        %480 = vmatpush1.msra.mxu0 %v467
        %481 = vmatprep.subr.mxu0 0.0
        %482 = vmatpush1.msra.mxu0 0.0
        %483 = vmatprep.subr.mxu0 0.0
        %484 = vmatpush1.msra.mxu0 0.0
        %485 = vmatprep.subr.mxu0 0.0
        %486 = vmatpush1.msra.mxu0 0.0
        %487 = vmatprep.subr.mxu0 0.0
        %488 = vmatpush1.msra.mxu0 0.0
        %489 = vmatprep.subr.mxu0 0.0
        %490 = vmatpush1.msra.mxu0 0.0
        %491 = vmatprep.subr.mxu0 0.0
        %492 = vmatpush1.msra.mxu0 0.0
        %493 = vmatprep.subr.mxu0 0.0
        %494 = vmatpush1.msra.mxu0 0.0
        %495 = vmatprep.subr.mxu0 0.0
        %496 = vmatpush1.msra.mxu0 0.0
        %497 = vmatprep.subr.mxu0 0.0
        %498 = vmatpush1.msra.mxu0 0.0
        %499 = vmatprep.subr.mxu0 0.0
        %500 = vmatpush1.msra.mxu0 0.0
        %501 = vmatprep.subr.mxu0 0.0
        %502 = vmatpush1.msra.mxu0 0.0
        %503 = vmatprep.subr.mxu0 0.0
        %504 = vmatpush1.msra.mxu0 0.0
        %505 = vmatprep.subr.mxu0 0.0
        %506 = vmatpush1.msra.mxu0 0.0
        %507 = vmatprep.subr.mxu0 0.0
        %508 = vmatpush1.msra.mxu0 0.0
        %509 = vmatprep.subr.mxu0 0.0
        %510 = vmatpush1.msra.mxu0 0.0
        %511 = vmatprep.subr.mxu0 0.0
        %512 = vmatpush1.msra.mxu0 0.0
        %513 = vmatprep.subr.mxu0 0.0
        %514 = vmatpush1.msra.mxu0 0.0
        %515 = vmatprep.subr.mxu0 0.0
        %516 = vmatpush1.msra.mxu0 0.0
        %517 = vmatprep.subr.mxu0 0.0
        %518 = vmatpush1.msra.mxu0 0.0
        %519 = vmatprep.subr.mxu0 0.0
        %520 = vmatpush1.msra.mxu0 0.0
        %521 = vmatprep.subr.mxu0 0.0
        %522 = vmatpush1.msra.mxu0 0.0
        %523 = vmatprep.subr.mxu0 0.0
        %524 = vmatpush1.msra.mxu0 0.0
        %525 = vmatprep.subr.mxu0 0.0
        %526 = vmatpush1.msra.mxu0 0.0
        %527 = vmatprep.subr.mxu0 0.0
        %528 = vmatpush1.msra.mxu0 0.0
        %529 = vmatprep.subr.mxu0 0.0
        %530 = vmatpush1.msra.mxu0 0.0
        %531 = vmatprep.subr.mxu0 0.0
        %532 = vmatpush1.msra.mxu0 0.0
        %533 = vmatprep.subr.mxu0 0.0
        %534 = vmatpush1.msra.mxu0 0.0
        %535 = vmatprep.subr.mxu0 0.0
        %536 = vmatpush1.msra.mxu0 0.0
        %537 = vmatprep.mubr.f32.mxu0 0.0
        %538 = vmatmul.mubr.f32.gmra.mrb[0].mxu0 %v471
        %v539 = vpop.f32.mrb[0].mxu0
        %v540 = vadd.f32 %v468, %v539
        %v541 = vpop.f32.mrb[0].mxu0
        %542 = vdwg.mxu0
        %v543 = vld [vmem:[%s4] sm:$0xff]
        %v544 = vld [vmem:[%s4 + $0x8] sm:$0xff]
        %v545 = vld [vmem:[%s4 + $0x10] sm:$0xff]
        %v546 = vld [vmem:[%s4 + $0x18] sm:$0xff]
        %v547 = vld [vmem:[%s4 + $0x20] sm:$0xff]
        %v548 = vld [vmem:[%s4 + $0x28] sm:$0xff]
        %v549 = vld [vmem:[%s4 + $0x30] sm:$0xff]
        %v550 = vld [vmem:[%s4 + $0x38] sm:$0xff]
        %v551 = vld [vmem:[%s4 + $0x40] sm:$0xff]
        %v552 = vld [vmem:[%s4 + $0x48] sm:$0xff]
        %v553 = vld [vmem:[%s4 + $0x50] sm:$0xff]
        %v554 = vld [vmem:[%s4 + $0x58] sm:$0xff]
        %v556 = vsel %vm469, %v540, 0
        %558 = vmatprep.subr.mxu0 %v544
        %559 = vmatpush1.msra.mxu0 %v543
        %560 = vmatprep.subr.mxu0 %v547
        %561 = vmatpush1.msra.mxu0 %v546
        %562 = vmatprep.subr.mxu0 %v550
        %563 = vmatpush1.msra.mxu0 %v549
        %564 = vmatprep.subr.mxu0 %v553
        %565 = vmatpush1.msra.mxu0 %v552
        %566 = vmatprep.subr.mxu0 0.0
        %567 = vmatpush1.msra.mxu0 0.0
        %568 = vmatprep.subr.mxu0 0.0
        %569 = vmatpush1.msra.mxu0 0.0
        %570 = vmatprep.subr.mxu0 0.0
        %571 = vmatpush1.msra.mxu0 0.0
        %572 = vmatprep.subr.mxu0 0.0
        %573 = vmatpush1.msra.mxu0 0.0
        %574 = vmatprep.subr.mxu0 0.0
        %575 = vmatpush1.msra.mxu0 0.0
        %576 = vmatprep.subr.mxu0 0.0
        %577 = vmatpush1.msra.mxu0 0.0
        %578 = vmatprep.subr.mxu0 0.0
        %579 = vmatpush1.msra.mxu0 0.0
        %580 = vmatprep.subr.mxu0 0.0
        %581 = vmatpush1.msra.mxu0 0.0
        %582 = vmatprep.subr.mxu0 0.0
        %583 = vmatpush1.msra.mxu0 0.0
        %584 = vmatprep.subr.mxu0 0.0
        %585 = vmatpush1.msra.mxu0 0.0
        %586 = vmatprep.subr.mxu0 0.0
        %587 = vmatpush1.msra.mxu0 0.0
        %588 = vmatprep.subr.mxu0 0.0
        %589 = vmatpush1.msra.mxu0 0.0
        %590 = vmatprep.subr.mxu0 0.0
        %591 = vmatpush1.msra.mxu0 0.0
        %592 = vmatprep.subr.mxu0 0.0
        %593 = vmatpush1.msra.mxu0 0.0
        %594 = vmatprep.subr.mxu0 0.0
        %595 = vmatpush1.msra.mxu0 0.0
        %596 = vmatprep.subr.mxu0 0.0
        %597 = vmatpush1.msra.mxu0 0.0
        %598 = vmatprep.subr.mxu0 0.0
        %599 = vmatpush1.msra.mxu0 0.0
        %600 = vmatprep.subr.mxu0 0.0
        %601 = vmatpush1.msra.mxu0 0.0
        %602 = vmatprep.subr.mxu0 0.0
        %603 = vmatpush1.msra.mxu0 0.0
        %604 = vmatprep.subr.mxu0 0.0
        %605 = vmatpush1.msra.mxu0 0.0
        %606 = vmatprep.subr.mxu0 0.0
        %607 = vmatpush1.msra.mxu0 0.0
        %608 = vmatprep.subr.mxu0 0.0
        %609 = vmatpush1.msra.mxu0 0.0
        %610 = vmatprep.subr.mxu0 0.0
        %611 = vmatpush1.msra.mxu0 0.0
        %612 = vmatprep.subr.mxu0 0.0
        %613 = vmatpush1.msra.mxu0 0.0
        %614 = vmatprep.subr.mxu0 0.0
        %615 = vmatpush1.msra.mxu0 0.0
        %616 = vmatprep.subr.mxu0 0.0
        %617 = vmatpush1.msra.mxu0 0.0
        %618 = vmatprep.subr.mxu0 0.0
        %619 = vmatpush1.msra.mxu0 0.0
        %620 = vmatprep.subr.mxu0 0.0
        %621 = vmatpush1.msra.mxu0 0.0
        %622 = vmatprep.mubr.f32.mxu0 0.0
        %623 = vmatmul.mubr.f32.gmra.mrb[0].mxu0 %v556
        %v624 = vpop.f32.mrb[0].mxu0
        %v625 = vadd.f32 0.0, %v624
        %v626 = vpop.f32.mrb[0].mxu0
        %v627 = vadd.f32 0.0, %v626
        %628 = vdwg.mxu0
        %629 = vmatprep.subr.mxu0 0.0
        %630 = vmatpush1.msra.mxu0 %v545
        %631 = vmatprep.subr.mxu0 0.0
        %632 = vmatpush1.msra.mxu0 %v548
        %633 = vmatprep.subr.mxu0 0.0
        %634 = vmatpush1.msra.mxu0 %v551
        %635 = vmatprep.subr.mxu0 0.0
        %636 = vmatpush1.msra.mxu0 %v554
        %637 = vmatprep.subr.mxu0 0.0
        %638 = vmatpush1.msra.mxu0 0.0
        %639 = vmatprep.subr.mxu0 0.0
        %640 = vmatpush1.msra.mxu0 0.0
        %641 = vmatprep.subr.mxu0 0.0
        %642 = vmatpush1.msra.mxu0 0.0
        %643 = vmatprep.subr.mxu0 0.0
        %644 = vmatpush1.msra.mxu0 0.0
        %645 = vmatprep.subr.mxu0 0.0
        %646 = vmatpush1.msra.mxu0 0.0
        %647 = vmatprep.subr.mxu0 0.0
        %648 = vmatpush1.msra.mxu0 0.0
        %649 = vmatprep.subr.mxu0 0.0
        %650 = vmatpush1.msra.mxu0 0.0
        %651 = vmatprep.subr.mxu0 0.0
        %652 = vmatpush1.msra.mxu0 0.0
        %653 = vmatprep.subr.mxu0 0.0
        %654 = vmatpush1.msra.mxu0 0.0
        %655 = vmatprep.subr.mxu0 0.0
        %656 = vmatpush1.msra.mxu0 0.0
        %657 = vmatprep.subr.mxu0 0.0
        %658 = vmatpush1.msra.mxu0 0.0
        %659 = vmatprep.subr.mxu0 0.0
        %660 = vmatpush1.msra.mxu0 0.0
        %661 = vmatprep.subr.mxu0 0.0
        %662 = vmatpush1.msra.mxu0 0.0
        %663 = vmatprep.subr.mxu0 0.0
        %664 = vmatpush1.msra.mxu0 0.0
        %665 = vmatprep.subr.mxu0 0.0
        %666 = vmatpush1.msra.mxu0 0.0
        %667 = vmatprep.subr.mxu0 0.0
        %668 = vmatpush1.msra.mxu0 0.0
        %669 = vmatprep.subr.mxu0 0.0
        %670 = vmatpush1.msra.mxu0 0.0
        %671 = vmatprep.subr.mxu0 0.0
        %672 = vmatpush1.msra.mxu0 0.0
        %673 = vmatprep.subr.mxu0 0.0
        %674 = vmatpush1.msra.mxu0 0.0
        %675 = vmatprep.subr.mxu0 0.0
        %676 = vmatpush1.msra.mxu0 0.0
        %677 = vmatprep.subr.mxu0 0.0
        %678 = vmatpush1.msra.mxu0 0.0
        %679 = vmatprep.subr.mxu0 0.0
        %680 = vmatpush1.msra.mxu0 0.0
        %681 = vmatprep.subr.mxu0 0.0
        %682 = vmatpush1.msra.mxu0 0.0
        %683 = vmatprep.subr.mxu0 0.0
        %684 = vmatpush1.msra.mxu0 0.0
        %685 = vmatprep.subr.mxu0 0.0
        %686 = vmatpush1.msra.mxu0 0.0
        %687 = vmatprep.subr.mxu0 0.0
        %688 = vmatpush1.msra.mxu0 0.0
        %689 = vmatprep.subr.mxu0 0.0
        %690 = vmatpush1.msra.mxu0 0.0
        %691 = vmatprep.subr.mxu0 0.0
        %692 = vmatpush1.msra.mxu0 0.0
        %693 = vmatprep.mubr.f32.mxu0 0.0
        %694 = vmatmul.mubr.f32.gmra.mrb[0].mxu0 %v556
        %v695 = vpop.f32.mrb[0].mxu0
        %v696 = vadd.f32 0.0, %v695
        %v697 = vpop.f32.mrb[0].mxu0
        %698 = vdwg.mxu0
        %vm699 = vcmask 523264
        %v701 = vsel %vm699, %v625, 0
        %v704 = vsel %vm699, %v627, 0
        %706 = vmatprep.subr.mxu0 0.0
        %707 = vmatpush1.xpose.msra.mxu0 %v704
        %708 = vmatprep.subr.mxu0 0.0
        %709 = vmatpush1.xpose.msra.mxu0 0.0
        %710 = vmatprep.subr.mxu0 0.0
        %711 = vmatpush1.xpose.msra.mxu0 0.0
        %712 = vmatprep.subr.mxu0 0.0
        %713 = vmatpush1.xpose.msra.mxu0 0.0
        %714 = vmatprep.subr.mxu0 0.0
        %715 = vmatpush1.xpose.msra.mxu0 0.0
        %716 = vmatprep.subr.mxu0 0.0
        %717 = vmatpush1.xpose.msra.mxu0 0.0
        %718 = vmatprep.subr.mxu0 0.0
        %719 = vmatpush1.xpose.msra.mxu0 0.0
        %720 = vmatprep.subr.mxu0 0.0
        %721 = vmatpush1.xpose.msra.mxu0 0.0
        %722 = vmatprep.subr.mxu0 0.0
        %723 = vmatpush1.xpose.msra.mxu0 0.0
        %724 = vmatprep.subr.mxu0 0.0
        %725 = vmatpush1.xpose.msra.mxu0 0.0
        %726 = vmatprep.subr.mxu0 0.0
        %727 = vmatpush1.xpose.msra.mxu0 0.0
        %728 = vmatprep.subr.mxu0 0.0
        %729 = vmatpush1.xpose.msra.mxu0 0.0
        %730 = vmatprep.subr.mxu0 0.0
        %731 = vmatpush1.xpose.msra.mxu0 0.0
        %732 = vmatprep.subr.mxu0 0.0
        %733 = vmatpush1.xpose.msra.mxu0 0.0
        %734 = vmatprep.subr.mxu0 0.0
        %735 = vmatpush1.xpose.msra.mxu0 0.0
        %736 = vmatprep.subr.mxu0 0.0
        %737 = vmatpush1.xpose.msra.mxu0 0.0
        %738 = vmatprep.subr.mxu0 0.0
        %739 = vmatpush1.xpose.msra.mxu0 0.0
        %740 = vmatprep.subr.mxu0 0.0
        %741 = vmatpush1.xpose.msra.mxu0 0.0
        %742 = vmatprep.subr.mxu0 0.0
        %743 = vmatpush1.xpose.msra.mxu0 0.0
        %744 = vmatprep.subr.mxu0 0.0
        %745 = vmatpush1.xpose.msra.mxu0 0.0
        %746 = vmatprep.subr.mxu0 0.0
        %747 = vmatpush1.xpose.msra.mxu0 0.0
        %748 = vmatprep.subr.mxu0 0.0
        %749 = vmatpush1.xpose.msra.mxu0 0.0
        %750 = vmatprep.subr.mxu0 0.0
        %751 = vmatpush1.xpose.msra.mxu0 0.0
        %752 = vmatprep.subr.mxu0 0.0
        %753 = vmatpush1.xpose.msra.mxu0 0.0
        %754 = vmatprep.subr.mxu0 0.0
        %755 = vmatpush1.xpose.msra.mxu0 0.0
        %756 = vmatprep.subr.mxu0 0.0
        %757 = vmatpush1.xpose.msra.mxu0 0.0
        %758 = vmatprep.subr.mxu0 0.0
        %759 = vmatpush1.xpose.msra.mxu0 0.0
        %760 = vmatprep.subr.mxu0 0.0
        %761 = vmatpush1.xpose.msra.mxu0 0.0
        %762 = vmatprep.subr.mxu0 0.0
        %763 = vmatpush1.xpose.msra.mxu0 0.0
        %764 = vmatprep.subr.mxu0 0.0
        %765 = vmatpush1.xpose.msra.mxu0 0.0
        %766 = vmatprep.subr.mxu0 0.0
        %767 = vmatpush1.xpose.msra.mxu0 0.0
        %768 = vmatprep.subr.mxu0 0.0
        %769 = vmatpush1.xpose.msra.mxu0 0.0
        %770 = vmatprep.mubr.f32.mxu0 0.0
        %771 = vmatmul.mubr.f32.gmra.mrb[0].mxu0 %v701
        %v772 = vpop.f32.mrb[0].mxu0
        %v773 = vadd.f32 0.0, %v772
        %v774 = vpop.f32.mrb[0].mxu0
        %775 = vdwg.mxu0
        %v776 = vmul.f32 %v773, 0.125
        %v777 = vsel %vm463, 1, 0
        %v778 = vlaneseq
        %v779 = vshrl.u32 %v778, 7
        %v780 = vsub.s32 0, %v779
        %v781 = vrot.slane %v777, %v780
        %vm782 = vcmp.eq.s32.totalorder %v781, 1
        %v783 = vsel %vm782, -1e+09, %v776
        %vm784 = vcmask 64512
        %v785 = vsel %vm784, %v783, -inf
        %786 = vmax.xlane.f32.xlu0 %v785
        %v787 = vpop.xlane.xlu0 %786
        %v788 = vsub.f32 %v783, %v787
        %v789 = vmul.f32 %v788, 1.442695
        %v790 = vpow.pop %v789
        %v791 = vsel %vm784, %v790, 0.0
        %792 = vadd.xlane.f32.xlu0 %v791
        %v793 = vpop.xlane.xlu0 %792
        %v794 = vrcp.pop %v793
        %v795 = vmul.f32 %v790, %v794
        %796 = vst.msk [vmem:[%s453] sm:$0xff] %vm784, %v795
        %v798 = vsel %vm784, %v795, 0
        %800 = vmatprep.subr.mxu0 0.0
        %801 = vmatpush1.msra.mxu0 %v696
        %802 = vmatprep.subr.mxu0 0.0
        %803 = vmatpush1.msra.mxu0 0.0
        %804 = vmatprep.subr.mxu0 0.0
        %805 = vmatpush1.msra.mxu0 0.0
        %806 = vmatprep.subr.mxu0 0.0
        %807 = vmatpush1.msra.mxu0 0.0
        %808 = vmatprep.subr.mxu0 0.0
        %809 = vmatpush1.msra.mxu0 0.0
        %810 = vmatprep.subr.mxu0 0.0
        %811 = vmatpush1.msra.mxu0 0.0
        %812 = vmatprep.subr.mxu0 0.0
        %813 = vmatpush1.msra.mxu0 0.0
        %814 = vmatprep.subr.mxu0 0.0
        %815 = vmatpush1.msra.mxu0 0.0
        %816 = vmatprep.subr.mxu0 0.0
        %817 = vmatpush1.msra.mxu0 0.0
        %818 = vmatprep.subr.mxu0 0.0
        %819 = vmatpush1.msra.mxu0 0.0
        %820 = vmatprep.subr.mxu0 0.0
        %821 = vmatpush1.msra.mxu0 0.0
        %822 = vmatprep.subr.mxu0 0.0
        %823 = vmatpush1.msra.mxu0 0.0
        %824 = vmatprep.subr.mxu0 0.0
        %825 = vmatpush1.msra.mxu0 0.0
        %826 = vmatprep.subr.mxu0 0.0
        %827 = vmatpush1.msra.mxu0 0.0
        %828 = vmatprep.subr.mxu0 0.0
        %829 = vmatpush1.msra.mxu0 0.0
        %830 = vmatprep.subr.mxu0 0.0
        %831 = vmatpush1.msra.mxu0 0.0
        %832 = vmatprep.subr.mxu0 0.0
        %833 = vmatpush1.msra.mxu0 0.0
        %834 = vmatprep.subr.mxu0 0.0
        %835 = vmatpush1.msra.mxu0 0.0
        %836 = vmatprep.subr.mxu0 0.0
        %837 = vmatpush1.msra.mxu0 0.0
        %838 = vmatprep.subr.mxu0 0.0
        %839 = vmatpush1.msra.mxu0 0.0
        %840 = vmatprep.subr.mxu0 0.0
        %841 = vmatpush1.msra.mxu0 0.0
        %842 = vmatprep.subr.mxu0 0.0
        %843 = vmatpush1.msra.mxu0 0.0
        %844 = vmatprep.subr.mxu0 0.0
        %845 = vmatpush1.msra.mxu0 0.0
        %846 = vmatprep.subr.mxu0 0.0
        %847 = vmatpush1.msra.mxu0 0.0
        %848 = vmatprep.subr.mxu0 0.0
        %849 = vmatpush1.msra.mxu0 0.0
        %850 = vmatprep.subr.mxu0 0.0
        %851 = vmatpush1.msra.mxu0 0.0
        %852 = vmatprep.subr.mxu0 0.0
        %853 = vmatpush1.msra.mxu0 0.0
        %854 = vmatprep.subr.mxu0 0.0
        %855 = vmatpush1.msra.mxu0 0.0
        %856 = vmatprep.subr.mxu0 0.0
        %857 = vmatpush1.msra.mxu0 0.0
        %858 = vmatprep.subr.mxu0 0.0
        %859 = vmatpush1.msra.mxu0 0.0
        %860 = vmatprep.subr.mxu0 0.0
        %861 = vmatpush1.msra.mxu0 0.0
        %862 = vmatprep.subr.mxu0 0.0
        %863 = vmatpush1.msra.mxu0 0.0
        %864 = vmatprep.mubr.f32.mxu0 0.0
        %865 = vmatmul.mubr.f32.gmra.mrb[0].mxu0 %v798
        %v866 = vpop.f32.mrb[0].mxu0
        %v867 = vadd.f32 0.0, %v866
        %v868 = vpop.f32.mrb[0].mxu0
        %869 = vdwg.mxu0
        %870 = vrot.lane.b32.xlu0 %v625, 64
        %v871 = vpop.permute.xlu0 %870
        %872 = vrot.lane.b32.xlu0 %v627, 64
        %v873 = vpop.permute.xlu0 %872
        %v874 = vsel %vm699, %v871, 0
        %v876 = vsel %vm699, %v873, 0
        %878 = vmatprep.subr.mxu0 0.0
        %879 = vmatpush1.xpose.msra.mxu0 %v876
        %880 = vmatprep.subr.mxu0 0.0
        %881 = vmatpush1.xpose.msra.mxu0 0.0
        %882 = vmatprep.subr.mxu0 0.0
        %883 = vmatpush1.xpose.msra.mxu0 0.0
        %884 = vmatprep.subr.mxu0 0.0
        %885 = vmatpush1.xpose.msra.mxu0 0.0
        %886 = vmatprep.subr.mxu0 0.0
        %887 = vmatpush1.xpose.msra.mxu0 0.0
        %888 = vmatprep.subr.mxu0 0.0
        %889 = vmatpush1.xpose.msra.mxu0 0.0
        %890 = vmatprep.subr.mxu0 0.0
        %891 = vmatpush1.xpose.msra.mxu0 0.0
        %892 = vmatprep.subr.mxu0 0.0
        %893 = vmatpush1.xpose.msra.mxu0 0.0
        %894 = vmatprep.subr.mxu0 0.0
        %895 = vmatpush1.xpose.msra.mxu0 0.0
        %896 = vmatprep.subr.mxu0 0.0
        %897 = vmatpush1.xpose.msra.mxu0 0.0
        %898 = vmatprep.subr.mxu0 0.0
        %899 = vmatpush1.xpose.msra.mxu0 0.0
        %900 = vmatprep.subr.mxu0 0.0
        %901 = vmatpush1.xpose.msra.mxu0 0.0
        %902 = vmatprep.subr.mxu0 0.0
        %903 = vmatpush1.xpose.msra.mxu0 0.0
        %904 = vmatprep.subr.mxu0 0.0
        %905 = vmatpush1.xpose.msra.mxu0 0.0
        %906 = vmatprep.subr.mxu0 0.0
        %907 = vmatpush1.xpose.msra.mxu0 0.0
        %908 = vmatprep.subr.mxu0 0.0
        %909 = vmatpush1.xpose.msra.mxu0 0.0
        %910 = vmatprep.subr.mxu0 0.0
        %911 = vmatpush1.xpose.msra.mxu0 0.0
        %912 = vmatprep.subr.mxu0 0.0
        %913 = vmatpush1.xpose.msra.mxu0 0.0
        %914 = vmatprep.subr.mxu0 0.0
        %915 = vmatpush1.xpose.msra.mxu0 0.0
        %916 = vmatprep.subr.mxu0 0.0
        %917 = vmatpush1.xpose.msra.mxu0 0.0
        %918 = vmatprep.subr.mxu0 0.0
        %919 = vmatpush1.xpose.msra.mxu0 0.0
        %920 = vmatprep.subr.mxu0 0.0
        %921 = vmatpush1.xpose.msra.mxu0 0.0
        %922 = vmatprep.subr.mxu0 0.0
        %923 = vmatpush1.xpose.msra.mxu0 0.0
        %924 = vmatprep.subr.mxu0 0.0
        %925 = vmatpush1.xpose.msra.mxu0 0.0
        %926 = vmatprep.subr.mxu0 0.0
        %927 = vmatpush1.xpose.msra.mxu0 0.0
        %928 = vmatprep.subr.mxu0 0.0
        %929 = vmatpush1.xpose.msra.mxu0 0.0
        %930 = vmatprep.subr.mxu0 0.0
        %931 = vmatpush1.xpose.msra.mxu0 0.0
        %932 = vmatprep.subr.mxu0 0.0
        %933 = vmatpush1.xpose.msra.mxu0 0.0
        %934 = vmatprep.subr.mxu0 0.0
        %935 = vmatpush1.xpose.msra.mxu0 0.0
        %936 = vmatprep.subr.mxu0 0.0
        %937 = vmatpush1.xpose.msra.mxu0 0.0
        %938 = vmatprep.subr.mxu0 0.0
        %939 = vmatpush1.xpose.msra.mxu0 0.0
        %940 = vmatprep.subr.mxu0 0.0
        %941 = vmatpush1.xpose.msra.mxu0 0.0
        %942 = vmatprep.mubr.f32.mxu0 0.0
        %943 = vmatmul.mubr.f32.gmra.mrb[0].mxu0 %v874
        %v944 = vpop.f32.mrb[0].mxu0
        %v945 = vadd.f32 0.0, %v944
        %v946 = vpop.f32.mrb[0].mxu0
        %947 = vdwg.mxu0
        %v948 = vmul.f32 %v945, 0.125
        %v949 = vsel %vm782, -1e+09, %v948
        %v950 = vsel %vm784, %v949, -inf
        %951 = vmax.xlane.f32.xlu0 %v950
        %v952 = vpop.xlane.xlu0 %951
        %v953 = vsub.f32 %v949, %v952
        %v954 = vmul.f32 %v953, 1.442695
        %v955 = vpow.pop %v954
        %v956 = vsel %vm784, %v955, 0.0
        %957 = vadd.xlane.f32.xlu0 %v956
        %v958 = vpop.xlane.xlu0 %957
        %v959 = vrcp.pop %v958
        %v960 = vmul.f32 %v955, %v959
        %s961 = scalar_lea.vmem %s453, 8 [#allocation4]
        %962 = vst.msk [vmem:[%s961] sm:$0xff] %vm784, %v960
        %964 = vrot.lane.b32.xlu0 %v696, 64
        %v965 = vpop.permute.xlu0 %964
        %v968 = vsel %vm784, %v960, 0
        %970 = vmatprep.subr.mxu0 0.0
        %971 = vmatpush1.msra.mxu0 %v965
        %972 = vmatprep.subr.mxu0 0.0
        %973 = vmatpush1.msra.mxu0 0.0
        %974 = vmatprep.subr.mxu0 0.0
        %975 = vmatpush1.msra.mxu0 0.0
        %976 = vmatprep.subr.mxu0 0.0
        %977 = vmatpush1.msra.mxu0 0.0
        %978 = vmatprep.subr.mxu0 0.0
        %979 = vmatpush1.msra.mxu0 0.0
        %980 = vmatprep.subr.mxu0 0.0
        %981 = vmatpush1.msra.mxu0 0.0
        %982 = vmatprep.subr.mxu0 0.0
        %983 = vmatpush1.msra.mxu0 0.0
        %984 = vmatprep.subr.mxu0 0.0
        %985 = vmatpush1.msra.mxu0 0.0
        %986 = vmatprep.subr.mxu0 0.0
        %987 = vmatpush1.msra.mxu0 0.0
        %988 = vmatprep.subr.mxu0 0.0
        %989 = vmatpush1.msra.mxu0 0.0
        %990 = vmatprep.subr.mxu0 0.0
        %991 = vmatpush1.msra.mxu0 0.0
        %992 = vmatprep.subr.mxu0 0.0
        %993 = vmatpush1.msra.mxu0 0.0
        %994 = vmatprep.subr.mxu0 0.0
        %995 = vmatpush1.msra.mxu0 0.0
        %996 = vmatprep.subr.mxu0 0.0
        %997 = vmatpush1.msra.mxu0 0.0
        %998 = vmatprep.subr.mxu0 0.0
        %999 = vmatpush1.msra.mxu0 0.0
        %1000 = vmatprep.subr.mxu0 0.0
        %1001 = vmatpush1.msra.mxu0 0.0
        %1002 = vmatprep.subr.mxu0 0.0
        %1003 = vmatpush1.msra.mxu0 0.0
        %1004 = vmatprep.subr.mxu0 0.0
        %1005 = vmatpush1.msra.mxu0 0.0
        %1006 = vmatprep.subr.mxu0 0.0
        %1007 = vmatpush1.msra.mxu0 0.0
        %1008 = vmatprep.subr.mxu0 0.0
        %1009 = vmatpush1.msra.mxu0 0.0
        %1010 = vmatprep.subr.mxu0 0.0
        %1011 = vmatpush1.msra.mxu0 0.0
        %1012 = vmatprep.subr.mxu0 0.0
        %1013 = vmatpush1.msra.mxu0 0.0
        %1014 = vmatprep.subr.mxu0 0.0
        %1015 = vmatpush1.msra.mxu0 0.0
        %1016 = vmatprep.subr.mxu0 0.0
        %1017 = vmatpush1.msra.mxu0 0.0
        %1018 = vmatprep.subr.mxu0 0.0
        %1019 = vmatpush1.msra.mxu0 0.0
        %1020 = vmatprep.subr.mxu0 0.0
        %1021 = vmatpush1.msra.mxu0 0.0
        %1022 = vmatprep.subr.mxu0 0.0
        %1023 = vmatpush1.msra.mxu0 0.0
        %1024 = vmatprep.subr.mxu0 0.0
        %1025 = vmatpush1.msra.mxu0 0.0
        %1026 = vmatprep.subr.mxu0 0.0
        %1027 = vmatpush1.msra.mxu0 0.0
        %1028 = vmatprep.subr.mxu0 0.0
        %1029 = vmatpush1.msra.mxu0 0.0
        %1030 = vmatprep.subr.mxu0 0.0
        %1031 = vmatpush1.msra.mxu0 0.0
        %1032 = vmatprep.subr.mxu0 0.0
        %1033 = vmatpush1.msra.mxu0 0.0
        %1034 = vmatprep.mubr.f32.mxu0 0.0
        %1035 = vmatmul.mubr.f32.gmra.mrb[0].mxu0 %v968
        %v1036 = vpop.f32.mrb[0].mxu0
        %v1037 = vadd.f32 0.0, %v1036
        %v1038 = vpop.f32.mrb[0].mxu0
        %1039 = vdwg.mxu0
        %1041 = vrot.lane.b32.xlu0 %v1037, 64
        %v1042 = vpop.permute.xlu0 %1041
        %v1044 = vsel %vm699, %v867, %v1042
        %v1045 = vld [vmem:[%s5] sm:$0xff]
        %v1046 = vld [vmem:[%s5 + $0x8] sm:$0xff]
        %v1047 = vld [vmem:[%s5 + $0x10] sm:$0xff]
        %v1048 = vld [vmem:[%s5 + $0x18] sm:$0xff]
        %v1049 = vld [vmem:[%s5 + $0x20] sm:$0xff]
        %v1050 = vld [vmem:[%s5 + $0x28] sm:$0xff]
        %v1051 = vld [vmem:[%s5 + $0x30] sm:$0xff]
        %v1052 = vld [vmem:[%s5 + $0x38] sm:$0xff]
        %v1053 = vld [vmem:[%s5 + $0x40] sm:$0xff]
        %v1054 = vld [vmem:[%s5 + $0x48] sm:$0xff]
        %v1055 = vld [vmem:[%s5 + $0x50] sm:$0xff]
        %v1056 = vld [vmem:[%s5 + $0x58] sm:$0xff]
        %v1057 = vld [vmem:[%s5 + $0x60] sm:$0xff]
        %v1058 = vld [vmem:[%s5 + $0x68] sm:$0xff]
        %v1059 = vld [vmem:[%s5 + $0x70] sm:$0xff]
        %v1060 = vld [vmem:[%s5 + $0x78] sm:$0xff]
        %1061 = vmatprep.subr.mxu0 0.0
        %1062 = vmatpush1.msra.mxu0 %v1045
        %1063 = vmatprep.subr.mxu0 0.0
        %1064 = vmatpush1.msra.mxu0 %v1046
        %1065 = vmatprep.subr.mxu0 0.0
        %1066 = vmatpush1.msra.mxu0 %v1047
        %1067 = vmatprep.subr.mxu0 0.0
        %1068 = vmatpush1.msra.mxu0 %v1048
        %1069 = vmatprep.subr.mxu0 0.0
        %1070 = vmatpush1.msra.mxu0 %v1049
        %1071 = vmatprep.subr.mxu0 0.0
        %1072 = vmatpush1.msra.mxu0 %v1050
        %1073 = vmatprep.subr.mxu0 0.0
        %1074 = vmatpush1.msra.mxu0 %v1051
        %1075 = vmatprep.subr.mxu0 0.0
        %1076 = vmatpush1.msra.mxu0 %v1052
        %1077 = vmatprep.subr.mxu0 0.0
        %1078 = vmatpush1.msra.mxu0 %v1053
        %1079 = vmatprep.subr.mxu0 0.0
        %1080 = vmatpush1.msra.mxu0 %v1054
        %1081 = vmatprep.subr.mxu0 0.0
        %1082 = vmatpush1.msra.mxu0 %v1055
        %1083 = vmatprep.subr.mxu0 0.0
        %1084 = vmatpush1.msra.mxu0 %v1056
        %1085 = vmatprep.subr.mxu0 0.0
        %1086 = vmatpush1.msra.mxu0 %v1057
        %1087 = vmatprep.subr.mxu0 0.0
        %1088 = vmatpush1.msra.mxu0 %v1058
        %1089 = vmatprep.subr.mxu0 0.0
        %1090 = vmatpush1.msra.mxu0 %v1059
        %1091 = vmatprep.subr.mxu0 0.0
        %1092 = vmatpush1.msra.mxu0 %v1060
        %1093 = vmatprep.subr.mxu0 0.0
        %1094 = vmatpush1.msra.mxu0 0.0
        %1095 = vmatprep.subr.mxu0 0.0
        %1096 = vmatpush1.msra.mxu0 0.0
        %1097 = vmatprep.subr.mxu0 0.0
        %1098 = vmatpush1.msra.mxu0 0.0
        %1099 = vmatprep.subr.mxu0 0.0
        %1100 = vmatpush1.msra.mxu0 0.0
        %1101 = vmatprep.subr.mxu0 0.0
        %1102 = vmatpush1.msra.mxu0 0.0
        %1103 = vmatprep.subr.mxu0 0.0
        %1104 = vmatpush1.msra.mxu0 0.0
        %1105 = vmatprep.subr.mxu0 0.0
        %1106 = vmatpush1.msra.mxu0 0.0
        %1107 = vmatprep.subr.mxu0 0.0
        %1108 = vmatpush1.msra.mxu0 0.0
        %1109 = vmatprep.subr.mxu0 0.0
        %1110 = vmatpush1.msra.mxu0 0.0
        %1111 = vmatprep.subr.mxu0 0.0
        %1112 = vmatpush1.msra.mxu0 0.0
        %1113 = vmatprep.subr.mxu0 0.0
        %1114 = vmatpush1.msra.mxu0 0.0
        %1115 = vmatprep.subr.mxu0 0.0
        %1116 = vmatpush1.msra.mxu0 0.0
        %1117 = vmatprep.subr.mxu0 0.0
        %1118 = vmatpush1.msra.mxu0 0.0
        %1119 = vmatprep.subr.mxu0 0.0
        %1120 = vmatpush1.msra.mxu0 0.0
        %1121 = vmatprep.subr.mxu0 0.0
        %1122 = vmatpush1.msra.mxu0 0.0
        %1123 = vmatprep.subr.mxu0 0.0
        %1124 = vmatpush1.msra.mxu0 0.0
        %1125 = vmatprep.mubr.f32.mxu0 0.0
        %1126 = vmatmul.mubr.f32.gmra.mrb[0].mxu0 %v1044
        %v1127 = vpop.f32.mrb[0].mxu0
        %v1128 = vadd.f32 %v540, %v1127
        %v1129 = vpop.f32.mrb[0].mxu0
        %1130 = vdwg.mxu0
        %v1131 = vld [vmem:[%s6] sm:$0x1]
        %v1132 = vld [vmem:[%s7] sm:$0x1]
        %v1133 = vsel %vm469, %v1128, 0.0
        %1134 = vadd.xlane.f32.xlu0 %v1133
        %v1135 = vpop.xlane.xlu0 %1134
        %v1136 = vrcp.pop 32.0
        %v1137 = vmul.f32 %v1135, %v1136
        %v1138 = vsub.f32 %v1128, %v1137
        %v1139 = vmul.f32 %v1138, %v1138
        %v1140 = vsel %vm469, %v1139, 0.0
        %1141 = vadd.xlane.f32.xlu0 %v1140
        %v1142 = vpop.xlane.xlu0 %1141
        %v1143 = vmul.f32 %v1142, %v1136
        %v1144 = vadd.f32 %v1143, 1e-05
        %v1145 = vrsqrt.pop %v1144
        %v1146 = vmul.f32 %v1138, %v1145
        %v1148 = vlaneseq
        %v1149 = vshrl.u32 %v1148, 7
        %v1150 = vsub.s32 0, %v1149
        %v1151 = vrot.slane %v1131, %v1150
        %v1153 = vmul.f32 %v1146, %v1151
        %v1155 = vlaneseq
        %v1156 = vshrl.u32 %v1155, 7
        %v1157 = vsub.s32 0, %v1156
        %v1158 = vrot.slane %v1132, %v1157
        %v1160 = vadd.f32 %v1153, %v1158
        %v1161 = vld [vmem:[%s8] sm:$0xff]
        %v1162 = vld [vmem:[%s8 + $0x8] sm:$0xff]
        %v1163 = vld [vmem:[%s8 + $0x10] sm:$0xff]
        %v1164 = vld [vmem:[%s8 + $0x18] sm:$0xff]
        %v1165 = vld [vmem:[%s8 + $0x20] sm:$0xff]
        %v1166 = vld [vmem:[%s8 + $0x28] sm:$0xff]
        %v1167 = vld [vmem:[%s8 + $0x30] sm:$0xff]
        %v1168 = vld [vmem:[%s8 + $0x38] sm:$0xff]
        %v1169 = vld [vmem:[%s8 + $0x40] sm:$0xff]
        %v1170 = vld [vmem:[%s8 + $0x48] sm:$0xff]
        %v1171 = vld [vmem:[%s8 + $0x50] sm:$0xff]
        %v1172 = vld [vmem:[%s8 + $0x58] sm:$0xff]
        %v1173 = vld [vmem:[%s8 + $0x60] sm:$0xff]
        %v1174 = vld [vmem:[%s8 + $0x68] sm:$0xff]
        %v1175 = vld [vmem:[%s8 + $0x70] sm:$0xff]
        %v1176 = vld [vmem:[%s8 + $0x78] sm:$0xff]
        %v1178 = vsel %vm469, %v1160, 0
        %1180 = vmatprep.subr.mxu0 %v1162
        %1181 = vmatpush1.msra.mxu0 %v1161
        %1182 = vmatprep.subr.mxu0 %v1166
        %1183 = vmatpush1.msra.mxu0 %v1165
        %1184 = vmatprep.subr.mxu0 %v1170
        %1185 = vmatpush1.msra.mxu0 %v1169
        %1186 = vmatprep.subr.mxu0 %v1174
        %1187 = vmatpush1.msra.mxu0 %v1173
        %1188 = vmatprep.subr.mxu0 0.0
        %1189 = vmatpush1.msra.mxu0 0.0
        %1190 = vmatprep.subr.mxu0 0.0
        %1191 = vmatpush1.msra.mxu0 0.0
        %1192 = vmatprep.subr.mxu0 0.0
        %1193 = vmatpush1.msra.mxu0 0.0
        %1194 = vmatprep.subr.mxu0 0.0
        %1195 = vmatpush1.msra.mxu0 0.0
        %1196 = vmatprep.subr.mxu0 0.0
        %1197 = vmatpush1.msra.mxu0 0.0
        %1198 = vmatprep.subr.mxu0 0.0
        %1199 = vmatpush1.msra.mxu0 0.0
        %1200 = vmatprep.subr.mxu0 0.0
        %1201 = vmatpush1.msra.mxu0 0.0
        %1202 = vmatprep.subr.mxu0 0.0
        %1203 = vmatpush1.msra.mxu0 0.0
        %1204 = vmatprep.subr.mxu0 0.0
        %1205 = vmatpush1.msra.mxu0 0.0
        %1206 = vmatprep.subr.mxu0 0.0
        %1207 = vmatpush1.msra.mxu0 0.0
        %1208 = vmatprep.subr.mxu0 0.0
        %1209 = vmatpush1.msra.mxu0 0.0
        %1210 = vmatprep.subr.mxu0 0.0
        %1211 = vmatpush1.msra.mxu0 0.0
        %1212 = vmatprep.subr.mxu0 0.0
        %1213 = vmatpush1.msra.mxu0 0.0
        %1214 = vmatprep.subr.mxu0 0.0
        %1215 = vmatpush1.msra.mxu0 0.0
        %1216 = vmatprep.subr.mxu0 0.0
        %1217 = vmatpush1.msra.mxu0 0.0
        %1218 = vmatprep.subr.mxu0 0.0
        %1219 = vmatpush1.msra.mxu0 0.0
        %1220 = vmatprep.subr.mxu0 0.0
        %1221 = vmatpush1.msra.mxu0 0.0
        %1222 = vmatprep.subr.mxu0 0.0
        %1223 = vmatpush1.msra.mxu0 0.0
        %1224 = vmatprep.subr.mxu0 0.0
        %1225 = vmatpush1.msra.mxu0 0.0
        %1226 = vmatprep.subr.mxu0 0.0
        %1227 = vmatpush1.msra.mxu0 0.0
        %1228 = vmatprep.subr.mxu0 0.0
        %1229 = vmatpush1.msra.mxu0 0.0
        %1230 = vmatprep.subr.mxu0 0.0
        %1231 = vmatpush1.msra.mxu0 0.0
        %1232 = vmatprep.subr.mxu0 0.0
        %1233 = vmatpush1.msra.mxu0 0.0
        %1234 = vmatprep.subr.mxu0 0.0
        %1235 = vmatpush1.msra.mxu0 0.0
        %1236 = vmatprep.subr.mxu0 0.0
        %1237 = vmatpush1.msra.mxu0 0.0
        %1238 = vmatprep.subr.mxu0 0.0
        %1239 = vmatpush1.msra.mxu0 0.0
        %1240 = vmatprep.subr.mxu0 0.0
        %1241 = vmatpush1.msra.mxu0 0.0
        %1242 = vmatprep.subr.mxu0 0.0
        %1243 = vmatpush1.msra.mxu0 0.0
        %1244 = vmatprep.mubr.f32.mxu0 0.0
        %1245 = vmatmul.mubr.f32.gmra.mrb[0].mxu0 %v1178
        %v1246 = vpop.f32.mrb[0].mxu0
        %v1247 = vadd.f32 0.0, %v1246
        %v1248 = vpop.f32.mrb[0].mxu0
        %v1249 = vadd.f32 0.0, %v1248
        %1250 = vdwg.mxu0
        %1251 = vmatprep.subr.mxu0 %v1164
        %1252 = vmatpush1.msra.mxu0 %v1163
        %1253 = vmatprep.subr.mxu0 %v1168
        %1254 = vmatpush1.msra.mxu0 %v1167
        %1255 = vmatprep.subr.mxu0 %v1172
        %1256 = vmatpush1.msra.mxu0 %v1171
        %1257 = vmatprep.subr.mxu0 %v1176
        %1258 = vmatpush1.msra.mxu0 %v1175
        %1259 = vmatprep.subr.mxu0 0.0
        %1260 = vmatpush1.msra.mxu0 0.0
        %1261 = vmatprep.subr.mxu0 0.0
        %1262 = vmatpush1.msra.mxu0 0.0
        %1263 = vmatprep.subr.mxu0 0.0
        %1264 = vmatpush1.msra.mxu0 0.0
        %1265 = vmatprep.subr.mxu0 0.0
        %1266 = vmatpush1.msra.mxu0 0.0
        %1267 = vmatprep.subr.mxu0 0.0
        %1268 = vmatpush1.msra.mxu0 0.0
        %1269 = vmatprep.subr.mxu0 0.0
        %1270 = vmatpush1.msra.mxu0 0.0
        %1271 = vmatprep.subr.mxu0 0.0
        %1272 = vmatpush1.msra.mxu0 0.0
        %1273 = vmatprep.subr.mxu0 0.0
        %1274 = vmatpush1.msra.mxu0 0.0
        %1275 = vmatprep.subr.mxu0 0.0
        %1276 = vmatpush1.msra.mxu0 0.0
        %1277 = vmatprep.subr.mxu0 0.0
        %1278 = vmatpush1.msra.mxu0 0.0
        %1279 = vmatprep.subr.mxu0 0.0
        %1280 = vmatpush1.msra.mxu0 0.0
        %1281 = vmatprep.subr.mxu0 0.0
        %1282 = vmatpush1.msra.mxu0 0.0
        %1283 = vmatprep.subr.mxu0 0.0
        %1284 = vmatpush1.msra.mxu0 0.0
        %1285 = vmatprep.subr.mxu0 0.0
        %1286 = vmatpush1.msra.mxu0 0.0
        %1287 = vmatprep.subr.mxu0 0.0
        %1288 = vmatpush1.msra.mxu0 0.0
        %1289 = vmatprep.subr.mxu0 0.0
        %1290 = vmatpush1.msra.mxu0 0.0
        %1291 = vmatprep.subr.mxu0 0.0
        %1292 = vmatpush1.msra.mxu0 0.0
        %1293 = vmatprep.subr.mxu0 0.0
        %1294 = vmatpush1.msra.mxu0 0.0
        %1295 = vmatprep.subr.mxu0 0.0
        %1296 = vmatpush1.msra.mxu0 0.0
        %1297 = vmatprep.subr.mxu0 0.0
        %1298 = vmatpush1.msra.mxu0 0.0
        %1299 = vmatprep.subr.mxu0 0.0
        %1300 = vmatpush1.msra.mxu0 0.0
        %1301 = vmatprep.subr.mxu0 0.0
        %1302 = vmatpush1.msra.mxu0 0.0
        %1303 = vmatprep.subr.mxu0 0.0
        %1304 = vmatpush1.msra.mxu0 0.0
        %1305 = vmatprep.subr.mxu0 0.0
        %1306 = vmatpush1.msra.mxu0 0.0
        %1307 = vmatprep.subr.mxu0 0.0
        %1308 = vmatpush1.msra.mxu0 0.0
        %1309 = vmatprep.subr.mxu0 0.0
        %1310 = vmatpush1.msra.mxu0 0.0
        %1311 = vmatprep.subr.mxu0 0.0
        %1312 = vmatpush1.msra.mxu0 0.0
        %1313 = vmatprep.subr.mxu0 0.0
        %1314 = vmatpush1.msra.mxu0 0.0
        %1315 = vmatprep.mubr.f32.mxu0 0.0
        %1316 = vmatmul.mubr.f32.gmra.mrb[0].mxu0 %v1178
        %v1317 = vpop.f32.mrb[0].mxu0
        %v1318 = vadd.f32 0.0, %v1317
        %v1319 = vpop.f32.mrb[0].mxu0
        %v1320 = vadd.f32 0.0, %v1319
        %1321 = vdwg.mxu0
        %v1322 = vmax.f32 %v1247, 0.0
        %v1323 = vmax.f32 %v1249, 0.0
        %v1324 = vmax.f32 %v1318, 0.0
        %v1325 = vmax.f32 %v1320, 0.0
        %v1326 = vld [vmem:[%s9] sm:$0xff]
        %v1327 = vld [vmem:[%s9 + $0x8] sm:$0xff]
        %v1328 = vld [vmem:[%s9 + $0x10] sm:$0xff]
        %v1329 = vld [vmem:[%s9 + $0x18] sm:$0xff]
        %v1330 = vld [vmem:[%s9 + $0x20] sm:$0xff]
        %v1331 = vld [vmem:[%s9 + $0x28] sm:$0xff]
        %v1332 = vld [vmem:[%s9 + $0x30] sm:$0xff]
        %v1333 = vld [vmem:[%s9 + $0x38] sm:$0xff]
        %v1334 = vld [vmem:[%s9 + $0x40] sm:$0xff]
        %v1335 = vld [vmem:[%s9 + $0x48] sm:$0xff]
        %v1336 = vld [vmem:[%s9 + $0x50] sm:$0xff]
        %v1337 = vld [vmem:[%s9 + $0x58] sm:$0xff]
        %v1338 = vld [vmem:[%s9 + $0x60] sm:$0xff]
        %v1339 = vld [vmem:[%s9 + $0x68] sm:$0xff]
        %v1340 = vld [vmem:[%s9 + $0x70] sm:$0xff]
        %v1341 = vld [vmem:[%s9 + $0x78] sm:$0xff]
        %v1342 = vld [vmem:[%s9 + $0x80] sm:$0xff]
        %v1343 = vld [vmem:[%s9 + $0x88] sm:$0xff]
        %v1344 = vld [vmem:[%s9 + $0x90] sm:$0xff]
        %v1345 = vld [vmem:[%s9 + $0x98] sm:$0xff]
        %v1346 = vld [vmem:[%s9 + $0xa0] sm:$0xff]
        %v1347 = vld [vmem:[%s9 + $0xa8] sm:$0xff]
        %v1348 = vld [vmem:[%s9 + $0xb0] sm:$0xff]
        %v1349 = vld [vmem:[%s9 + $0xb8] sm:$0xff]
        %v1350 = vld [vmem:[%s9 + $0xc0] sm:$0xff]
        %v1351 = vld [vmem:[%s9 + $0xc8] sm:$0xff]
        %v1352 = vld [vmem:[%s9 + $0xd0] sm:$0xff]
        %v1353 = vld [vmem:[%s9 + $0xd8] sm:$0xff]
        %v1354 = vld [vmem:[%s9 + $0xe0] sm:$0xff]
        %v1355 = vld [vmem:[%s9 + $0xe8] sm:$0xff]
        %v1356 = vld [vmem:[%s9 + $0xf0] sm:$0xff]
        %v1357 = vld [vmem:[%s9 + $0xf8] sm:$0xff]
        %v1358 = vld [vmem:[%s9 + $0x100] sm:$0xff]
        %v1359 = vld [vmem:[%s9 + $0x108] sm:$0xff]
        %v1360 = vld [vmem:[%s9 + $0x110] sm:$0xff]
        %v1361 = vld [vmem:[%s9 + $0x118] sm:$0xff]
        %v1362 = vld [vmem:[%s9 + $0x120] sm:$0xff]
        %v1363 = vld [vmem:[%s9 + $0x128] sm:$0xff]
        %v1364 = vld [vmem:[%s9 + $0x130] sm:$0xff]
        %v1365 = vld [vmem:[%s9 + $0x138] sm:$0xff]
        %v1366 = vld [vmem:[%s9 + $0x140] sm:$0xff]
        %v1367 = vld [vmem:[%s9 + $0x148] sm:$0xff]
        %v1368 = vld [vmem:[%s9 + $0x150] sm:$0xff]
        %v1369 = vld [vmem:[%s9 + $0x158] sm:$0xff]
        %v1370 = vld [vmem:[%s9 + $0x160] sm:$0xff]
        %v1371 = vld [vmem:[%s9 + $0x168] sm:$0xff]
        %v1372 = vld [vmem:[%s9 + $0x170] sm:$0xff]
        %v1373 = vld [vmem:[%s9 + $0x178] sm:$0xff]
        %v1374 = vld [vmem:[%s9 + $0x180] sm:$0xff]
        %v1375 = vld [vmem:[%s9 + $0x188] sm:$0xff]
        %v1376 = vld [vmem:[%s9 + $0x190] sm:$0xff]
        %v1377 = vld [vmem:[%s9 + $0x198] sm:$0xff]
        %v1378 = vld [vmem:[%s9 + $0x1a0] sm:$0xff]
        %v1379 = vld [vmem:[%s9 + $0x1a8] sm:$0xff]
        %v1380 = vld [vmem:[%s9 + $0x1b0] sm:$0xff]
        %v1381 = vld [vmem:[%s9 + $0x1b8] sm:$0xff]
        %v1382 = vld [vmem:[%s9 + $0x1c0] sm:$0xff]
        %v1383 = vld [vmem:[%s9 + $0x1c8] sm:$0xff]
        %v1384 = vld [vmem:[%s9 + $0x1d0] sm:$0xff]
        %v1385 = vld [vmem:[%s9 + $0x1d8] sm:$0xff]
        %v1386 = vld [vmem:[%s9 + $0x1e0] sm:$0xff]
        %v1387 = vld [vmem:[%s9 + $0x1e8] sm:$0xff]
        %v1388 = vld [vmem:[%s9 + $0x1f0] sm:$0xff]
        %v1389 = vld [vmem:[%s9 + $0x1f8] sm:$0xff]
        %1390 = vmatprep.subr.mxu0 0.0
        %1391 = vmatpush1.msra.mxu0 %v1326
        %1392 = vmatprep.subr.mxu0 0.0
        %1393 = vmatpush1.msra.mxu0 %v1327
        %1394 = vmatprep.subr.mxu0 0.0
        %1395 = vmatpush1.msra.mxu0 %v1328
        %1396 = vmatprep.subr.mxu0 0.0
        %1397 = vmatpush1.msra.mxu0 %v1329
        %1398 = vmatprep.subr.mxu0 0.0
        %1399 = vmatpush1.msra.mxu0 %v1330
        %1400 = vmatprep.subr.mxu0 0.0
        %1401 = vmatpush1.msra.mxu0 %v1331
        %1402 = vmatprep.subr.mxu0 0.0
        %1403 = vmatpush1.msra.mxu0 %v1332
        %1404 = vmatprep.subr.mxu0 0.0
        %1405 = vmatpush1.msra.mxu0 %v1333
        %1406 = vmatprep.subr.mxu0 0.0
        %1407 = vmatpush1.msra.mxu0 %v1334
        %1408 = vmatprep.subr.mxu0 0.0
        %1409 = vmatpush1.msra.mxu0 %v1335
        %1410 = vmatprep.subr.mxu0 0.0
        %1411 = vmatpush1.msra.mxu0 %v1336
        %1412 = vmatprep.subr.mxu0 0.0
        %1413 = vmatpush1.msra.mxu0 %v1337
        %1414 = vmatprep.subr.mxu0 0.0
        %1415 = vmatpush1.msra.mxu0 %v1338
        %1416 = vmatprep.subr.mxu0 0.0
        %1417 = vmatpush1.msra.mxu0 %v1339
        %1418 = vmatprep.subr.mxu0 0.0
        %1419 = vmatpush1.msra.mxu0 %v1340
        %1420 = vmatprep.subr.mxu0 0.0
        %1421 = vmatpush1.msra.mxu0 %v1341
        %1422 = vmatprep.subr.mxu0 0.0
        %1423 = vmatpush1.msra.mxu0 %v1342
        %1424 = vmatprep.subr.mxu0 0.0
        %1425 = vmatpush1.msra.mxu0 %v1343
        %1426 = vmatprep.subr.mxu0 0.0
        %1427 = vmatpush1.msra.mxu0 %v1344
        %1428 = vmatprep.subr.mxu0 0.0
        %1429 = vmatpush1.msra.mxu0 %v1345
        %1430 = vmatprep.subr.mxu0 0.0
        %1431 = vmatpush1.msra.mxu0 %v1346
        %1432 = vmatprep.subr.mxu0 0.0
        %1433 = vmatpush1.msra.mxu0 %v1347
        %1434 = vmatprep.subr.mxu0 0.0
        %1435 = vmatpush1.msra.mxu0 %v1348
        %1436 = vmatprep.subr.mxu0 0.0
        %1437 = vmatpush1.msra.mxu0 %v1349
        %1438 = vmatprep.subr.mxu0 0.0
        %1439 = vmatpush1.msra.mxu0 %v1350
        %1440 = vmatprep.subr.mxu0 0.0
        %1441 = vmatpush1.msra.mxu0 %v1351
        %1442 = vmatprep.subr.mxu0 0.0
        %1443 = vmatpush1.msra.mxu0 %v1352
        %1444 = vmatprep.subr.mxu0 0.0
        %1445 = vmatpush1.msra.mxu0 %v1353
        %1446 = vmatprep.subr.mxu0 0.0
        %1447 = vmatpush1.msra.mxu0 %v1354
        %1448 = vmatprep.subr.mxu0 0.0
        %1449 = vmatpush1.msra.mxu0 %v1355
        %1450 = vmatprep.subr.mxu0 0.0
        %1451 = vmatpush1.msra.mxu0 %v1356
        %1452 = vmatprep.subr.mxu0 0.0
        %1453 = vmatpush1.msra.mxu0 %v1357
        %1454 = vmatprep.mubr.f32.mxu0 %v1323
        %1455 = vmatmul.mubr.f32.gmra.mrb[0].mxu0 %v1322
        %v1456 = vpop.f32.mrb[0].mxu0
        %v1457 = vadd.f32 %v1160, %v1456
        %v1458 = vpop.f32.mrb[0].mxu0
        %1459 = vdwg.mxu0
        %1460 = vmatprep.subr.mxu0 0.0
        %1461 = vmatpush1.msra.mxu0 %v1358
        %1462 = vmatprep.subr.mxu0 0.0
        %1463 = vmatpush1.msra.mxu0 %v1359
        %1464 = vmatprep.subr.mxu0 0.0
        %1465 = vmatpush1.msra.mxu0 %v1360
        %1466 = vmatprep.subr.mxu0 0.0
        %1467 = vmatpush1.msra.mxu0 %v1361
        %1468 = vmatprep.subr.mxu0 0.0
        %1469 = vmatpush1.msra.mxu0 %v1362
        %1470 = vmatprep.subr.mxu0 0.0
        %1471 = vmatpush1.msra.mxu0 %v1363
        %1472 = vmatprep.subr.mxu0 0.0
        %1473 = vmatpush1.msra.mxu0 %v1364
        %1474 = vmatprep.subr.mxu0 0.0
        %1475 = vmatpush1.msra.mxu0 %v1365
        %1476 = vmatprep.subr.mxu0 0.0
        %1477 = vmatpush1.msra.mxu0 %v1366
        %1478 = vmatprep.subr.mxu0 0.0
        %1479 = vmatpush1.msra.mxu0 %v1367
        %1480 = vmatprep.subr.mxu0 0.0
        %1481 = vmatpush1.msra.mxu0 %v1368
        %1482 = vmatprep.subr.mxu0 0.0
        %1483 = vmatpush1.msra.mxu0 %v1369
        %1484 = vmatprep.subr.mxu0 0.0
        %1485 = vmatpush1.msra.mxu0 %v1370
        %1486 = vmatprep.subr.mxu0 0.0
        %1487 = vmatpush1.msra.mxu0 %v1371
        %1488 = vmatprep.subr.mxu0 0.0
        %1489 = vmatpush1.msra.mxu0 %v1372
        %1490 = vmatprep.subr.mxu0 0.0
        %1491 = vmatpush1.msra.mxu0 %v1373
        %1492 = vmatprep.subr.mxu0 0.0
        %1493 = vmatpush1.msra.mxu0 %v1374
        %1494 = vmatprep.subr.mxu0 0.0
        %1495 = vmatpush1.msra.mxu0 %v1375
        %1496 = vmatprep.subr.mxu0 0.0
        %1497 = vmatpush1.msra.mxu0 %v1376
        %1498 = vmatprep.subr.mxu0 0.0
        %1499 = vmatpush1.msra.mxu0 %v1377
        %1500 = vmatprep.subr.mxu0 0.0
        %1501 = vmatpush1.msra.mxu0 %v1378
        %1502 = vmatprep.subr.mxu0 0.0
        %1503 = vmatpush1.msra.mxu0 %v1379
        %1504 = vmatprep.subr.mxu0 0.0
        %1505 = vmatpush1.msra.mxu0 %v1380
        %1506 = vmatprep.subr.mxu0 0.0
        %1507 = vmatpush1.msra.mxu0 %v1381
        %1508 = vmatprep.subr.mxu0 0.0
        %1509 = vmatpush1.msra.mxu0 %v1382
        %1510 = vmatprep.subr.mxu0 0.0
        %1511 = vmatpush1.msra.mxu0 %v1383
        %1512 = vmatprep.subr.mxu0 0.0
        %1513 = vmatpush1.msra.mxu0 %v1384
        %1514 = vmatprep.subr.mxu0 0.0
        %1515 = vmatpush1.msra.mxu0 %v1385
        %1516 = vmatprep.subr.mxu0 0.0
        %1517 = vmatpush1.msra.mxu0 %v1386
        %1518 = vmatprep.subr.mxu0 0.0
        %1519 = vmatpush1.msra.mxu0 %v1387
        %1520 = vmatprep.subr.mxu0 0.0
        %1521 = vmatpush1.msra.mxu0 %v1388
        %1522 = vmatprep.subr.mxu0 0.0
        %1523 = vmatpush1.msra.mxu0 %v1389
        %1524 = vmatprep.mubr.f32.mxu0 %v1325
        %1525 = vmatmul.mubr.f32.gmra.mrb[0].mxu0 %v1324
        %v1526 = vpop.f32.mrb[0].mxu0
        %v1527 = vadd.f32 %v1457, %v1526
        %v1528 = vpop.f32.mrb[0].mxu0
        %1529 = vdwg.mxu0
        %v1530 = vld [vmem:[%s10] sm:$0x1]
        %v1531 = vld [vmem:[%s11] sm:$0x1]
        %v1532 = vsel %vm469, %v1527, 0.0
        %1533 = vadd.xlane.f32.xlu0 %v1532
        %v1534 = vpop.xlane.xlu0 %1533
        %v1535 = vmul.f32 %v1534, %v1136
        %v1536 = vsub.f32 %v1527, %v1535
        %v1537 = vmul.f32 %v1536, %v1536
        %v1538 = vsel %vm469, %v1537, 0.0
        %1539 = vadd.xlane.f32.xlu0 %v1538
        %v1540 = vpop.xlane.xlu0 %1539
        %v1541 = vmul.f32 %v1540, %v1136
        %v1542 = vadd.f32 %v1541, 1e-05
        %v1543 = vrsqrt.pop %v1542
        %v1544 = vmul.f32 %v1536, %v1543
        %v1546 = vlaneseq
        %v1547 = vshrl.u32 %v1546, 7
        %v1548 = vsub.s32 0, %v1547
        %v1549 = vrot.slane %v1530, %v1548
        %v1551 = vmul.f32 %v1544, %v1549
        %v1553 = vlaneseq
        %v1554 = vshrl.u32 %v1553, 7
        %v1555 = vsub.s32 0, %v1554
        %v1556 = vrot.slane %v1531, %v1555
        %v1558 = vadd.f32 %v1551, %v1556
        %s1559 = scalar_lea.vmem %s4, 96
        %v1560 = vld [vmem:[%s1559] sm:$0xff]
        %v1561 = vld [vmem:[%s1559 + $0x8] sm:$0xff]
        %v1562 = vld [vmem:[%s1559 + $0x10] sm:$0xff]
        %v1563 = vld [vmem:[%s1559 + $0x18] sm:$0xff]
        %v1564 = vld [vmem:[%s1559 + $0x20] sm:$0xff]
        %v1565 = vld [vmem:[%s1559 + $0x28] sm:$0xff]
        %v1566 = vld [vmem:[%s1559 + $0x30] sm:$0xff]
        %v1567 = vld [vmem:[%s1559 + $0x38] sm:$0xff]
        %v1568 = vld [vmem:[%s1559 + $0x40] sm:$0xff]
        %v1569 = vld [vmem:[%s1559 + $0x48] sm:$0xff]
        %v1570 = vld [vmem:[%s1559 + $0x50] sm:$0xff]
        %v1571 = vld [vmem:[%s1559 + $0x58] sm:$0xff]
        %v1573 = vsel %vm469, %v1558, 0
        %1575 = vmatprep.subr.mxu0 %v1561
        %1576 = vmatpush1.msra.mxu0 %v1560
        %1577 = vmatprep.subr.mxu0 %v1564
        %1578 = vmatpush1.msra.mxu0 %v1563
        %1579 = vmatprep.subr.mxu0 %v1567
        %1580 = vmatpush1.msra.mxu0 %v1566
        %1581 = vmatprep.subr.mxu0 %v1570
        %1582 = vmatpush1.msra.mxu0 %v1569
        %1583 = vmatprep.subr.mxu0 0.0
        %1584 = vmatpush1.msra.mxu0 0.0
        %1585 = vmatprep.subr.mxu0 0.0
        %1586 = vmatpush1.msra.mxu0 0.0
        %1587 = vmatprep.subr.mxu0 0.0
        %1588 = vmatpush1.msra.mxu0 0.0
        %1589 = vmatprep.subr.mxu0 0.0
        %1590 = vmatpush1.msra.mxu0 0.0
        %1591 = vmatprep.subr.mxu0 0.0
        %1592 = vmatpush1.msra.mxu0 0.0
        %1593 = vmatprep.subr.mxu0 0.0
        %1594 = vmatpush1.msra.mxu0 0.0
        %1595 = vmatprep.subr.mxu0 0.0
        %1596 = vmatpush1.msra.mxu0 0.0
        %1597 = vmatprep.subr.mxu0 0.0
        %1598 = vmatpush1.msra.mxu0 0.0
        %1599 = vmatprep.subr.mxu0 0.0
        %1600 = vmatpush1.msra.mxu0 0.0
        %1601 = vmatprep.subr.mxu0 0.0
        %1602 = vmatpush1.msra.mxu0 0.0
        %1603 = vmatprep.subr.mxu0 0.0
        %1604 = vmatpush1.msra.mxu0 0.0
        %1605 = vmatprep.subr.mxu0 0.0
        %1606 = vmatpush1.msra.mxu0 0.0
        %1607 = vmatprep.subr.mxu0 0.0
        %1608 = vmatpush1.msra.mxu0 0.0
        %1609 = vmatprep.subr.mxu0 0.0
        %1610 = vmatpush1.msra.mxu0 0.0
        %1611 = vmatprep.subr.mxu0 0.0
        %1612 = vmatpush1.msra.mxu0 0.0
        %1613 = vmatprep.subr.mxu0 0.0
        %1614 = vmatpush1.msra.mxu0 0.0
        %1615 = vmatprep.subr.mxu0 0.0
        %1616 = vmatpush1.msra.mxu0 0.0
        %1617 = vmatprep.subr.mxu0 0.0
        %1618 = vmatpush1.msra.mxu0 0.0
        %1619 = vmatprep.subr.mxu0 0.0
        %1620 = vmatpush1.msra.mxu0 0.0
        %1621 = vmatprep.subr.mxu0 0.0
        %1622 = vmatpush1.msra.mxu0 0.0
        %1623 = vmatprep.subr.mxu0 0.0
        %1624 = vmatpush1.msra.mxu0 0.0
        %1625 = vmatprep.subr.mxu0 0.0
        %1626 = vmatpush1.msra.mxu0 0.0
        %1627 = vmatprep.subr.mxu0 0.0
        %1628 = vmatpush1.msra.mxu0 0.0
        %1629 = vmatprep.subr.mxu0 0.0
        %1630 = vmatpush1.msra.mxu0 0.0
        %1631 = vmatprep.subr.mxu0 0.0
        %1632 = vmatpush1.msra.mxu0 0.0
        %1633 = vmatprep.subr.mxu0 0.0
        %1634 = vmatpush1.msra.mxu0 0.0
        %1635 = vmatprep.subr.mxu0 0.0
        %1636 = vmatpush1.msra.mxu0 0.0
        %1637 = vmatprep.subr.mxu0 0.0
        %1638 = vmatpush1.msra.mxu0 0.0
        %1639 = vmatprep.mubr.f32.mxu0 0.0
        %1640 = vmatmul.mubr.f32.gmra.mrb[0].mxu0 %v1573
        %v1641 = vpop.f32.mrb[0].mxu0
        %v1642 = vadd.f32 0.0, %v1641
        %v1643 = vpop.f32.mrb[0].mxu0
        %v1644 = vadd.f32 0.0, %v1643
        %1645 = vdwg.mxu0
        %1646 = vmatprep.subr.mxu0 0.0
        %1647 = vmatpush1.msra.mxu0 %v1562
        %1648 = vmatprep.subr.mxu0 0.0
        %1649 = vmatpush1.msra.mxu0 %v1565
        %1650 = vmatprep.subr.mxu0 0.0
        %1651 = vmatpush1.msra.mxu0 %v1568
        %1652 = vmatprep.subr.mxu0 0.0
        %1653 = vmatpush1.msra.mxu0 %v1571
        %1654 = vmatprep.subr.mxu0 0.0
        %1655 = vmatpush1.msra.mxu0 0.0
        %1656 = vmatprep.subr.mxu0 0.0
        %1657 = vmatpush1.msra.mxu0 0.0
        %1658 = vmatprep.subr.mxu0 0.0
        %1659 = vmatpush1.msra.mxu0 0.0
        %1660 = vmatprep.subr.mxu0 0.0
        %1661 = vmatpush1.msra.mxu0 0.0
        %1662 = vmatprep.subr.mxu0 0.0
        %1663 = vmatpush1.msra.mxu0 0.0
        %1664 = vmatprep.subr.mxu0 0.0
        %1665 = vmatpush1.msra.mxu0 0.0
        %1666 = vmatprep.subr.mxu0 0.0
        %1667 = vmatpush1.msra.mxu0 0.0
        %1668 = vmatprep.subr.mxu0 0.0
        %1669 = vmatpush1.msra.mxu0 0.0
        %1670 = vmatprep.subr.mxu0 0.0
        %1671 = vmatpush1.msra.mxu0 0.0
        %1672 = vmatprep.subr.mxu0 0.0
        %1673 = vmatpush1.msra.mxu0 0.0
        %1674 = vmatprep.subr.mxu0 0.0
        %1675 = vmatpush1.msra.mxu0 0.0
        %1676 = vmatprep.subr.mxu0 0.0
        %1677 = vmatpush1.msra.mxu0 0.0
        %1678 = vmatprep.subr.mxu0 0.0
        %1679 = vmatpush1.msra.mxu0 0.0
        %1680 = vmatprep.subr.mxu0 0.0
        %1681 = vmatpush1.msra.mxu0 0.0
        %1682 = vmatprep.subr.mxu0 0.0
        %1683 = vmatpush1.msra.mxu0 0.0
        %1684 = vmatprep.subr.mxu0 0.0
        %1685 = vmatpush1.msra.mxu0 0.0
        %1686 = vmatprep.subr.mxu0 0.0
        %1687 = vmatpush1.msra.mxu0 0.0
        %1688 = vmatprep.subr.mxu0 0.0
        %1689 = vmatpush1.msra.mxu0 0.0
        %1690 = vmatprep.subr.mxu0 0.0
        %1691 = vmatpush1.msra.mxu0 0.0
        %1692 = vmatprep.subr.mxu0 0.0
        %1693 = vmatpush1.msra.mxu0 0.0
        %1694 = vmatprep.subr.mxu0 0.0
        %1695 = vmatpush1.msra.mxu0 0.0
        %1696 = vmatprep.subr.mxu0 0.0
        %1697 = vmatpush1.msra.mxu0 0.0
        %1698 = vmatprep.subr.mxu0 0.0
        %1699 = vmatpush1.msra.mxu0 0.0
        %1700 = vmatprep.subr.mxu0 0.0
        %1701 = vmatpush1.msra.mxu0 0.0
        %1702 = vmatprep.subr.mxu0 0.0
        %1703 = vmatpush1.msra.mxu0 0.0
        %1704 = vmatprep.subr.mxu0 0.0
        %1705 = vmatpush1.msra.mxu0 0.0
        %1706 = vmatprep.subr.mxu0 0.0
        %1707 = vmatpush1.msra.mxu0 0.0
        %1708 = vmatprep.subr.mxu0 0.0
        %1709 = vmatpush1.msra.mxu0 0.0
        %1710 = vmatprep.mubr.f32.mxu0 0.0
        %1711 = vmatmul.mubr.f32.gmra.mrb[0].mxu0 %v1573
        %v1712 = vpop.f32.mrb[0].mxu0
        %v1713 = vadd.f32 0.0, %v1712
        %v1714 = vpop.f32.mrb[0].mxu0
        %1715 = vdwg.mxu0
        %v1717 = vsel %vm699, %v1642, 0
        %v1720 = vsel %vm699, %v1644, 0
        %1722 = vmatprep.subr.mxu0 0.0
        %1723 = vmatpush1.xpose.msra.mxu0 %v1720
        %1724 = vmatprep.subr.mxu0 0.0
        %1725 = vmatpush1.xpose.msra.mxu0 0.0
        %1726 = vmatprep.subr.mxu0 0.0
        %1727 = vmatpush1.xpose.msra.mxu0 0.0
        %1728 = vmatprep.subr.mxu0 0.0
        %1729 = vmatpush1.xpose.msra.mxu0 0.0
        %1730 = vmatprep.subr.mxu0 0.0
        %1731 = vmatpush1.xpose.msra.mxu0 0.0
        %1732 = vmatprep.subr.mxu0 0.0
        %1733 = vmatpush1.xpose.msra.mxu0 0.0
        %1734 = vmatprep.subr.mxu0 0.0
        %1735 = vmatpush1.xpose.msra.mxu0 0.0
        %1736 = vmatprep.subr.mxu0 0.0
        %1737 = vmatpush1.xpose.msra.mxu0 0.0
        %1738 = vmatprep.subr.mxu0 0.0
        %1739 = vmatpush1.xpose.msra.mxu0 0.0
        %1740 = vmatprep.subr.mxu0 0.0
        %1741 = vmatpush1.xpose.msra.mxu0 0.0
        %1742 = vmatprep.subr.mxu0 0.0
        %1743 = vmatpush1.xpose.msra.mxu0 0.0
        %1744 = vmatprep.subr.mxu0 0.0
        %1745 = vmatpush1.xpose.msra.mxu0 0.0
        %1746 = vmatprep.subr.mxu0 0.0
        %1747 = vmatpush1.xpose.msra.mxu0 0.0
        %1748 = vmatprep.subr.mxu0 0.0
        %1749 = vmatpush1.xpose.msra.mxu0 0.0
        %1750 = vmatprep.subr.mxu0 0.0
        %1751 = vmatpush1.xpose.msra.mxu0 0.0
        %1752 = vmatprep.subr.mxu0 0.0
        %1753 = vmatpush1.xpose.msra.mxu0 0.0
        %1754 = vmatprep.subr.mxu0 0.0
        %1755 = vmatpush1.xpose.msra.mxu0 0.0
        %1756 = vmatprep.subr.mxu0 0.0
        %1757 = vmatpush1.xpose.msra.mxu0 0.0
        %1758 = vmatprep.subr.mxu0 0.0
        %1759 = vmatpush1.xpose.msra.mxu0 0.0
        %1760 = vmatprep.subr.mxu0 0.0
        %1761 = vmatpush1.xpose.msra.mxu0 0.0
        %1762 = vmatprep.subr.mxu0 0.0
        %1763 = vmatpush1.xpose.msra.mxu0 0.0
        %1764 = vmatprep.subr.mxu0 0.0
        %1765 = vmatpush1.xpose.msra.mxu0 0.0
        %1766 = vmatprep.subr.mxu0 0.0
        %1767 = vmatpush1.xpose.msra.mxu0 0.0
        %1768 = vmatprep.subr.mxu0 0.0
        %1769 = vmatpush1.xpose.msra.mxu0 0.0
        %1770 = vmatprep.subr.mxu0 0.0
        %1771 = vmatpush1.xpose.msra.mxu0 0.0
        %1772 = vmatprep.subr.mxu0 0.0
        %1773 = vmatpush1.xpose.msra.mxu0 0.0
        %1774 = vmatprep.subr.mxu0 0.0
        %1775 = vmatpush1.xpose.msra.mxu0 0.0
        %1776 = vmatprep.subr.mxu0 0.0
        %1777 = vmatpush1.xpose.msra.mxu0 0.0
        %1778 = vmatprep.subr.mxu0 0.0
        %1779 = vmatpush1.xpose.msra.mxu0 0.0
        %1780 = vmatprep.subr.mxu0 0.0
        %1781 = vmatpush1.xpose.msra.mxu0 0.0
        %1782 = vmatprep.subr.mxu0 0.0
        %1783 = vmatpush1.xpose.msra.mxu0 0.0
        %1784 = vmatprep.subr.mxu0 0.0
        %1785 = vmatpush1.xpose.msra.mxu0 0.0
        %1786 = vmatprep.mubr.f32.mxu0 0.0
        %1787 = vmatmul.mubr.f32.gmra.mrb[0].mxu0 %v1717
        %v1788 = vpop.f32.mrb[0].mxu0
        %v1789 = vadd.f32 0.0, %v1788
        %v1790 = vpop.f32.mrb[0].mxu0
        %1791 = vdwg.mxu0
        %v1792 = vmul.f32 %v1789, 0.125
        %v1793 = vsel %vm782, -1e+09, %v1792
        %v1794 = vsel %vm784, %v1793, -inf
        %1795 = vmax.xlane.f32.xlu0 %v1794
        %v1796 = vpop.xlane.xlu0 %1795
        %v1797 = vsub.f32 %v1793, %v1796
        %v1798 = vmul.f32 %v1797, 1.442695
        %v1799 = vpow.pop %v1798
        %v1800 = vsel %vm784, %v1799, 0.0
        %1801 = vadd.xlane.f32.xlu0 %v1800
        %v1802 = vpop.xlane.xlu0 %1801
        %v1803 = vrcp.pop %v1802
        %v1804 = vmul.f32 %v1799, %v1803
        %s1805 = scalar_lea.vmem %s453, 16 [#allocation4]
        %1806 = vst.msk [vmem:[%s1805] sm:$0xff] %vm784, %v1804
        %v1808 = vsel %vm784, %v1804, 0
        %1810 = vmatprep.subr.mxu0 0.0
        %1811 = vmatpush1.msra.mxu0 %v1713
        %1812 = vmatprep.subr.mxu0 0.0
        %1813 = vmatpush1.msra.mxu0 0.0
        %1814 = vmatprep.subr.mxu0 0.0
        %1815 = vmatpush1.msra.mxu0 0.0
        %1816 = vmatprep.subr.mxu0 0.0
        %1817 = vmatpush1.msra.mxu0 0.0
        %1818 = vmatprep.subr.mxu0 0.0
        %1819 = vmatpush1.msra.mxu0 0.0
        %1820 = vmatprep.subr.mxu0 0.0
        %1821 = vmatpush1.msra.mxu0 0.0
        %1822 = vmatprep.subr.mxu0 0.0
        %1823 = vmatpush1.msra.mxu0 0.0
        %1824 = vmatprep.subr.mxu0 0.0
        %1825 = vmatpush1.msra.mxu0 0.0
        %1826 = vmatprep.subr.mxu0 0.0
        %1827 = vmatpush1.msra.mxu0 0.0
        %1828 = vmatprep.subr.mxu0 0.0
        %1829 = vmatpush1.msra.mxu0 0.0
        %1830 = vmatprep.subr.mxu0 0.0
        %1831 = vmatpush1.msra.mxu0 0.0
        %1832 = vmatprep.subr.mxu0 0.0
        %1833 = vmatpush1.msra.mxu0 0.0
        %1834 = vmatprep.subr.mxu0 0.0
        %1835 = vmatpush1.msra.mxu0 0.0
        %1836 = vmatprep.subr.mxu0 0.0
        %1837 = vmatpush1.msra.mxu0 0.0
        %1838 = vmatprep.subr.mxu0 0.0
        %1839 = vmatpush1.msra.mxu0 0.0
        %1840 = vmatprep.subr.mxu0 0.0
        %1841 = vmatpush1.msra.mxu0 0.0
        %1842 = vmatprep.subr.mxu0 0.0
        %1843 = vmatpush1.msra.mxu0 0.0
        %1844 = vmatprep.subr.mxu0 0.0
        %1845 = vmatpush1.msra.mxu0 0.0
        %1846 = vmatprep.subr.mxu0 0.0
        %1847 = vmatpush1.msra.mxu0 0.0
        %1848 = vmatprep.subr.mxu0 0.0
        %1849 = vmatpush1.msra.mxu0 0.0
        %1850 = vmatprep.subr.mxu0 0.0
        %1851 = vmatpush1.msra.mxu0 0.0
        %1852 = vmatprep.subr.mxu0 0.0
        %1853 = vmatpush1.msra.mxu0 0.0
        %1854 = vmatprep.subr.mxu0 0.0
        %1855 = vmatpush1.msra.mxu0 0.0
        %1856 = vmatprep.subr.mxu0 0.0
        %1857 = vmatpush1.msra.mxu0 0.0
        %1858 = vmatprep.subr.mxu0 0.0
        %1859 = vmatpush1.msra.mxu0 0.0
        %1860 = vmatprep.subr.mxu0 0.0
        %1861 = vmatpush1.msra.mxu0 0.0
        %1862 = vmatprep.subr.mxu0 0.0
        %1863 = vmatpush1.msra.mxu0 0.0
        %1864 = vmatprep.subr.mxu0 0.0
        %1865 = vmatpush1.msra.mxu0 0.0
        %1866 = vmatprep.subr.mxu0 0.0
        %1867 = vmatpush1.msra.mxu0 0.0
        %1868 = vmatprep.subr.mxu0 0.0
        %1869 = vmatpush1.msra.mxu0 0.0
        %1870 = vmatprep.subr.mxu0 0.0
        %1871 = vmatpush1.msra.mxu0 0.0
        %1872 = vmatprep.subr.mxu0 0.0
        %1873 = vmatpush1.msra.mxu0 0.0
        %1874 = vmatprep.mubr.f32.mxu0 0.0
        %1875 = vmatmul.mubr.f32.gmra.mrb[0].mxu0 %v1808
        %v1876 = vpop.f32.mrb[0].mxu0
        %v1877 = vadd.f32 0.0, %v1876
        %v1878 = vpop.f32.mrb[0].mxu0
        %1879 = vdwg.mxu0
        %1880 = vrot.lane.b32.xlu0 %v1642, 64
        %v1881 = vpop.permute.xlu0 %1880
        %1882 = vrot.lane.b32.xlu0 %v1644, 64
        %v1883 = vpop.permute.xlu0 %1882
        %v1884 = vsel %vm699, %v1881, 0
        %v1886 = vsel %vm699, %v1883, 0
        %1888 = vmatprep.subr.mxu0 0.0
        %1889 = vmatpush1.xpose.msra.mxu0 %v1886
        %1890 = vmatprep.subr.mxu0 0.0
        %1891 = vmatpush1.xpose.msra.mxu0 0.0
        %1892 = vmatprep.subr.mxu0 0.0
        %1893 = vmatpush1.xpose.msra.mxu0 0.0
        %1894 = vmatprep.subr.mxu0 0.0
        %1895 = vmatpush1.xpose.msra.mxu0 0.0
        %1896 = vmatprep.subr.mxu0 0.0
        %1897 = vmatpush1.xpose.msra.mxu0 0.0
        %1898 = vmatprep.subr.mxu0 0.0
        %1899 = vmatpush1.xpose.msra.mxu0 0.0
        %1900 = vmatprep.subr.mxu0 0.0
        %1901 = vmatpush1.xpose.msra.mxu0 0.0
        %1902 = vmatprep.subr.mxu0 0.0
        %1903 = vmatpush1.xpose.msra.mxu0 0.0
        %1904 = vmatprep.subr.mxu0 0.0
        %1905 = vmatpush1.xpose.msra.mxu0 0.0
        %1906 = vmatprep.subr.mxu0 0.0
        %1907 = vmatpush1.xpose.msra.mxu0 0.0
        %1908 = vmatprep.subr.mxu0 0.0
        %1909 = vmatpush1.xpose.msra.mxu0 0.0
        %1910 = vmatprep.subr.mxu0 0.0
        %1911 = vmatpush1.xpose.msra.mxu0 0.0
        %1912 = vmatprep.subr.mxu0 0.0
        %1913 = vmatpush1.xpose.msra.mxu0 0.0
        %1914 = vmatprep.subr.mxu0 0.0
        %1915 = vmatpush1.xpose.msra.mxu0 0.0
        %1916 = vmatprep.subr.mxu0 0.0
        %1917 = vmatpush1.xpose.msra.mxu0 0.0
        %1918 = vmatprep.subr.mxu0 0.0
        %1919 = vmatpush1.xpose.msra.mxu0 0.0
        %1920 = vmatprep.subr.mxu0 0.0
        %1921 = vmatpush1.xpose.msra.mxu0 0.0
        %1922 = vmatprep.subr.mxu0 0.0
        %1923 = vmatpush1.xpose.msra.mxu0 0.0
        %1924 = vmatprep.subr.mxu0 0.0
        %1925 = vmatpush1.xpose.msra.mxu0 0.0
        %1926 = vmatprep.subr.mxu0 0.0
        %1927 = vmatpush1.xpose.msra.mxu0 0.0
        %1928 = vmatprep.subr.mxu0 0.0
        %1929 = vmatpush1.xpose.msra.mxu0 0.0
        %1930 = vmatprep.subr.mxu0 0.0
        %1931 = vmatpush1.xpose.msra.mxu0 0.0
        %1932 = vmatprep.subr.mxu0 0.0
        %1933 = vmatpush1.xpose.msra.mxu0 0.0
        %1934 = vmatprep.subr.mxu0 0.0
        %1935 = vmatpush1.xpose.msra.mxu0 0.0
        %1936 = vmatprep.subr.mxu0 0.0
        %1937 = vmatpush1.xpose.msra.mxu0 0.0
        %1938 = vmatprep.subr.mxu0 0.0
        %1939 = vmatpush1.xpose.msra.mxu0 0.0
        %1940 = vmatprep.subr.mxu0 0.0
        %1941 = vmatpush1.xpose.msra.mxu0 0.0
        %1942 = vmatprep.subr.mxu0 0.0
        %1943 = vmatpush1.xpose.msra.mxu0 0.0
        %1944 = vmatprep.subr.mxu0 0.0
        %1945 = vmatpush1.xpose.msra.mxu0 0.0
        %1946 = vmatprep.subr.mxu0 0.0
        %1947 = vmatpush1.xpose.msra.mxu0 0.0
        %1948 = vmatprep.subr.mxu0 0.0
        %1949 = vmatpush1.xpose.msra.mxu0 0.0
        %1950 = vmatprep.subr.mxu0 0.0
        %1951 = vmatpush1.xpose.msra.mxu0 0.0
        %1952 = vmatprep.mubr.f32.mxu0 0.0
        %1953 = vmatmul.mubr.f32.gmra.mrb[0].mxu0 %v1884
        %v1954 = vpop.f32.mrb[0].mxu0
        %v1955 = vadd.f32 0.0, %v1954
        %v1956 = vpop.f32.mrb[0].mxu0
        %1957 = vdwg.mxu0
        %v1958 = vmul.f32 %v1955, 0.125
        %v1959 = vsel %vm782, -1e+09, %v1958
        %v1960 = vsel %vm784, %v1959, -inf
        %1961 = vmax.xlane.f32.xlu0 %v1960
        %v1962 = vpop.xlane.xlu0 %1961
        %v1963 = vsub.f32 %v1959, %v1962
        %v1964 = vmul.f32 %v1963, 1.442695
        %v1965 = vpow.pop %v1964
        %v1966 = vsel %vm784, %v1965, 0.0
        %1967 = vadd.xlane.f32.xlu0 %v1966
        %v1968 = vpop.xlane.xlu0 %1967
        %v1969 = vrcp.pop %v1968
        %v1970 = vmul.f32 %v1965, %v1969
        %s1971 = scalar_lea.vmem %s453, 24 [#allocation4]
        %1972 = vst.msk [vmem:[%s1971] sm:$0xff] %vm784, %v1970
        %1974 = vrot.lane.b32.xlu0 %v1713, 64
        %v1975 = vpop.permute.xlu0 %1974
        %v1978 = vsel %vm784, %v1970, 0
        %1980 = vmatprep.subr.mxu0 0.0
        %1981 = vmatpush1.msra.mxu0 %v1975
        %1982 = vmatprep.subr.mxu0 0.0
        %1983 = vmatpush1.msra.mxu0 0.0
        %1984 = vmatprep.subr.mxu0 0.0
        %1985 = vmatpush1.msra.mxu0 0.0
        %1986 = vmatprep.subr.mxu0 0.0
        %1987 = vmatpush1.msra.mxu0 0.0
        %1988 = vmatprep.subr.mxu0 0.0
        %1989 = vmatpush1.msra.mxu0 0.0
        %1990 = vmatprep.subr.mxu0 0.0
        %1991 = vmatpush1.msra.mxu0 0.0
        %1992 = vmatprep.subr.mxu0 0.0
        %1993 = vmatpush1.msra.mxu0 0.0
        %1994 = vmatprep.subr.mxu0 0.0
        %1995 = vmatpush1.msra.mxu0 0.0
        %1996 = vmatprep.subr.mxu0 0.0
        %1997 = vmatpush1.msra.mxu0 0.0
        %1998 = vmatprep.subr.mxu0 0.0
        %1999 = vmatpush1.msra.mxu0 0.0
        %2000 = vmatprep.subr.mxu0 0.0
        %2001 = vmatpush1.msra.mxu0 0.0
        %2002 = vmatprep.subr.mxu0 0.0
        %2003 = vmatpush1.msra.mxu0 0.0
        %2004 = vmatprep.subr.mxu0 0.0
        %2005 = vmatpush1.msra.mxu0 0.0
        %2006 = vmatprep.subr.mxu0 0.0
        %2007 = vmatpush1.msra.mxu0 0.0
        %2008 = vmatprep.subr.mxu0 0.0
        %2009 = vmatpush1.msra.mxu0 0.0
        %2010 = vmatprep.subr.mxu0 0.0
        %2011 = vmatpush1.msra.mxu0 0.0
        %2012 = vmatprep.subr.mxu0 0.0
        %2013 = vmatpush1.msra.mxu0 0.0
        %2014 = vmatprep.subr.mxu0 0.0
        %2015 = vmatpush1.msra.mxu0 0.0
        %2016 = vmatprep.subr.mxu0 0.0
        %2017 = vmatpush1.msra.mxu0 0.0
        %2018 = vmatprep.subr.mxu0 0.0
        %2019 = vmatpush1.msra.mxu0 0.0
        %2020 = vmatprep.subr.mxu0 0.0
        %2021 = vmatpush1.msra.mxu0 0.0
        %2022 = vmatprep.subr.mxu0 0.0
        %2023 = vmatpush1.msra.mxu0 0.0
        %2024 = vmatprep.subr.mxu0 0.0
        %2025 = vmatpush1.msra.mxu0 0.0
        %2026 = vmatprep.subr.mxu0 0.0
        %2027 = vmatpush1.msra.mxu0 0.0
        %2028 = vmatprep.subr.mxu0 0.0
        %2029 = vmatpush1.msra.mxu0 0.0
        %2030 = vmatprep.subr.mxu0 0.0
        %2031 = vmatpush1.msra.mxu0 0.0
        %2032 = vmatprep.subr.mxu0 0.0
        %2033 = vmatpush1.msra.mxu0 0.0
        %2034 = vmatprep.subr.mxu0 0.0
        %2035 = vmatpush1.msra.mxu0 0.0
        %2036 = vmatprep.subr.mxu0 0.0
        %2037 = vmatpush1.msra.mxu0 0.0
        %2038 = vmatprep.subr.mxu0 0.0
        %2039 = vmatpush1.msra.mxu0 0.0
        %2040 = vmatprep.subr.mxu0 0.0
        %2041 = vmatpush1.msra.mxu0 0.0
        %2042 = vmatprep.subr.mxu0 0.0
        %2043 = vmatpush1.msra.mxu0 0.0
        %2044 = vmatprep.mubr.f32.mxu0 0.0
        %2045 = vmatmul.mubr.f32.gmra.mrb[0].mxu0 %v1978
        %v2046 = vpop.f32.mrb[0].mxu0
        %v2047 = vadd.f32 0.0, %v2046
        %v2048 = vpop.f32.mrb[0].mxu0
        %2049 = vdwg.mxu0
        %2051 = vrot.lane.b32.xlu0 %v2047, 64
        %v2052 = vpop.permute.xlu0 %2051
        %v2054 = vsel %vm699, %v1877, %v2052
        %s2055 = scalar_lea.vmem %s5, 128
        %v2056 = vld [vmem:[%s2055] sm:$0xff]
        %v2057 = vld [vmem:[%s2055 + $0x8] sm:$0xff]
        %v2058 = vld [vmem:[%s2055 + $0x10] sm:$0xff]
        %v2059 = vld [vmem:[%s2055 + $0x18] sm:$0xff]
        %v2060 = vld [vmem:[%s2055 + $0x20] sm:$0xff]
        %v2061 = vld [vmem:[%s2055 + $0x28] sm:$0xff]
        %v2062 = vld [vmem:[%s2055 + $0x30] sm:$0xff]
        %v2063 = vld [vmem:[%s2055 + $0x38] sm:$0xff]
        %v2064 = vld [vmem:[%s2055 + $0x40] sm:$0xff]
        %v2065 = vld [vmem:[%s2055 + $0x48] sm:$0xff]
        %v2066 = vld [vmem:[%s2055 + $0x50] sm:$0xff]
        %v2067 = vld [vmem:[%s2055 + $0x58] sm:$0xff]
        %v2068 = vld [vmem:[%s2055 + $0x60] sm:$0xff]
        %v2069 = vld [vmem:[%s2055 + $0x68] sm:$0xff]
        %v2070 = vld [vmem:[%s2055 + $0x70] sm:$0xff]
        %v2071 = vld [vmem:[%s2055 + $0x78] sm:$0xff]
        %2072 = vmatprep.subr.mxu0 0.0
        %2073 = vmatpush1.msra.mxu0 %v2056
        %2074 = vmatprep.subr.mxu0 0.0
        %2075 = vmatpush1.msra.mxu0 %v2057
        %2076 = vmatprep.subr.mxu0 0.0
        %2077 = vmatpush1.msra.mxu0 %v2058
        %2078 = vmatprep.subr.mxu0 0.0
        %2079 = vmatpush1.msra.mxu0 %v2059
        %2080 = vmatprep.subr.mxu0 0.0
        %2081 = vmatpush1.msra.mxu0 %v2060
        %2082 = vmatprep.subr.mxu0 0.0
        %2083 = vmatpush1.msra.mxu0 %v2061
        %2084 = vmatprep.subr.mxu0 0.0
        %2085 = vmatpush1.msra.mxu0 %v2062
        %2086 = vmatprep.subr.mxu0 0.0
        %2087 = vmatpush1.msra.mxu0 %v2063
        %2088 = vmatprep.subr.mxu0 0.0
        %2089 = vmatpush1.msra.mxu0 %v2064
        %2090 = vmatprep.subr.mxu0 0.0
        %2091 = vmatpush1.msra.mxu0 %v2065
        %2092 = vmatprep.subr.mxu0 0.0
        %2093 = vmatpush1.msra.mxu0 %v2066
        %2094 = vmatprep.subr.mxu0 0.0
        %2095 = vmatpush1.msra.mxu0 %v2067
        %2096 = vmatprep.subr.mxu0 0.0
        %2097 = vmatpush1.msra.mxu0 %v2068
        %2098 = vmatprep.subr.mxu0 0.0
        %2099 = vmatpush1.msra.mxu0 %v2069
        %2100 = vmatprep.subr.mxu0 0.0
        %2101 = vmatpush1.msra.mxu0 %v2070
        %2102 = vmatprep.subr.mxu0 0.0
        %2103 = vmatpush1.msra.mxu0 %v2071
        %2104 = vmatprep.subr.mxu0 0.0
        %2105 = vmatpush1.msra.mxu0 0.0
        %2106 = vmatprep.subr.mxu0 0.0
        %2107 = vmatpush1.msra.mxu0 0.0
        %2108 = vmatprep.subr.mxu0 0.0
        %2109 = vmatpush1.msra.mxu0 0.0
        %2110 = vmatprep.subr.mxu0 0.0
        %2111 = vmatpush1.msra.mxu0 0.0
        %2112 = vmatprep.subr.mxu0 0.0
        %2113 = vmatpush1.msra.mxu0 0.0
        %2114 = vmatprep.subr.mxu0 0.0
        %2115 = vmatpush1.msra.mxu0 0.0
        %2116 = vmatprep.subr.mxu0 0.0
        %2117 = vmatpush1.msra.mxu0 0.0
        %2118 = vmatprep.subr.mxu0 0.0
        %2119 = vmatpush1.msra.mxu0 0.0
        %2120 = vmatprep.subr.mxu0 0.0
        %2121 = vmatpush1.msra.mxu0 0.0
        %2122 = vmatprep.subr.mxu0 0.0
        %2123 = vmatpush1.msra.mxu0 0.0
        %2124 = vmatprep.subr.mxu0 0.0
        %2125 = vmatpush1.msra.mxu0 0.0
        %2126 = vmatprep.subr.mxu0 0.0
        %2127 = vmatpush1.msra.mxu0 0.0
        %2128 = vmatprep.subr.mxu0 0.0
        %2129 = vmatpush1.msra.mxu0 0.0
        %2130 = vmatprep.subr.mxu0 0.0
        %2131 = vmatpush1.msra.mxu0 0.0
        %2132 = vmatprep.subr.mxu0 0.0
        %2133 = vmatpush1.msra.mxu0 0.0
        %2134 = vmatprep.subr.mxu0 0.0
        %2135 = vmatpush1.msra.mxu0 0.0
        %2136 = vmatprep.mubr.f32.mxu0 0.0
        %2137 = vmatmul.mubr.f32.gmra.mrb[0].mxu0 %v2054
        %v2138 = vpop.f32.mrb[0].mxu0
        %v2139 = vadd.f32 %v1558, %v2138
        %v2140 = vpop.f32.mrb[0].mxu0
        %2141 = vdwg.mxu0
        %s2142 = scalar_lea.vmem %s6, 1
        %v2143 = vld [vmem:[%s2142] sm:$0x1]
        %s2144 = scalar_lea.vmem %s7, 1
        %v2145 = vld [vmem:[%s2144] sm:$0x1]
        %v2146 = vsel %vm469, %v2139, 0.0
        %2147 = vadd.xlane.f32.xlu0 %v2146
        %v2148 = vpop.xlane.xlu0 %2147
        %v2149 = vmul.f32 %v2148, %v1136
        %v2150 = vsub.f32 %v2139, %v2149
        %v2151 = vmul.f32 %v2150, %v2150
        %v2152 = vsel %vm469, %v2151, 0.0
        %2153 = vadd.xlane.f32.xlu0 %v2152
        %v2154 = vpop.xlane.xlu0 %2153
        %v2155 = vmul.f32 %v2154, %v1136
        %v2156 = vadd.f32 %v2155, 1e-05
        %v2157 = vrsqrt.pop %v2156
        %v2158 = vmul.f32 %v2150, %v2157
        %v2160 = vlaneseq
        %v2161 = vshrl.u32 %v2160, 7
        %v2162 = vsub.s32 0, %v2161
        %v2163 = vrot.slane %v2143, %v2162
        %v2165 = vmul.f32 %v2158, %v2163
        %v2167 = vlaneseq
        %v2168 = vshrl.u32 %v2167, 7
        %v2169 = vsub.s32 0, %v2168
        %v2170 = vrot.slane %v2145, %v2169
        %v2172 = vadd.f32 %v2165, %v2170
        %s2173 = scalar_lea.vmem %s8, 128
        %v2174 = vld [vmem:[%s2173] sm:$0xff]
        %v2175 = vld [vmem:[%s2173 + $0x8] sm:$0xff]
        %v2176 = vld [vmem:[%s2173 + $0x10] sm:$0xff]
        %v2177 = vld [vmem:[%s2173 + $0x18] sm:$0xff]
        %v2178 = vld [vmem:[%s2173 + $0x20] sm:$0xff]
        %v2179 = vld [vmem:[%s2173 + $0x28] sm:$0xff]
        %v2180 = vld [vmem:[%s2173 + $0x30] sm:$0xff]
        %v2181 = vld [vmem:[%s2173 + $0x38] sm:$0xff]
        %v2182 = vld [vmem:[%s2173 + $0x40] sm:$0xff]
        %v2183 = vld [vmem:[%s2173 + $0x48] sm:$0xff]
        %v2184 = vld [vmem:[%s2173 + $0x50] sm:$0xff]
        %v2185 = vld [vmem:[%s2173 + $0x58] sm:$0xff]
        %v2186 = vld [vmem:[%s2173 + $0x60] sm:$0xff]
        %v2187 = vld [vmem:[%s2173 + $0x68] sm:$0xff]
        %v2188 = vld [vmem:[%s2173 + $0x70] sm:$0xff]
        %v2189 = vld [vmem:[%s2173 + $0x78] sm:$0xff]
        %v2191 = vsel %vm469, %v2172, 0
        %2193 = vmatprep.subr.mxu0 %v2175
        %2194 = vmatpush1.msra.mxu0 %v2174
        %2195 = vmatprep.subr.mxu0 %v2179
        %2196 = vmatpush1.msra.mxu0 %v2178
        %2197 = vmatprep.subr.mxu0 %v2183
        %2198 = vmatpush1.msra.mxu0 %v2182
        %2199 = vmatprep.subr.mxu0 %v2187
        %2200 = vmatpush1.msra.mxu0 %v2186
        %2201 = vmatprep.subr.mxu0 0.0
        %2202 = vmatpush1.msra.mxu0 0.0
        %2203 = vmatprep.subr.mxu0 0.0
        %2204 = vmatpush1.msra.mxu0 0.0
        %2205 = vmatprep.subr.mxu0 0.0
        %2206 = vmatpush1.msra.mxu0 0.0
        %2207 = vmatprep.subr.mxu0 0.0
        %2208 = vmatpush1.msra.mxu0 0.0
        %2209 = vmatprep.subr.mxu0 0.0
        %2210 = vmatpush1.msra.mxu0 0.0
        %2211 = vmatprep.subr.mxu0 0.0
        %2212 = vmatpush1.msra.mxu0 0.0
        %2213 = vmatprep.subr.mxu0 0.0
        %2214 = vmatpush1.msra.mxu0 0.0
        %2215 = vmatprep.subr.mxu0 0.0
        %2216 = vmatpush1.msra.mxu0 0.0
        %2217 = vmatprep.subr.mxu0 0.0
        %2218 = vmatpush1.msra.mxu0 0.0
        %2219 = vmatprep.subr.mxu0 0.0
        %2220 = vmatpush1.msra.mxu0 0.0
        %2221 = vmatprep.subr.mxu0 0.0
        %2222 = vmatpush1.msra.mxu0 0.0
        %2223 = vmatprep.subr.mxu0 0.0
        %2224 = vmatpush1.msra.mxu0 0.0
        %2225 = vmatprep.subr.mxu0 0.0
        %2226 = vmatpush1.msra.mxu0 0.0
        %2227 = vmatprep.subr.mxu0 0.0
        %2228 = vmatpush1.msra.mxu0 0.0
        %2229 = vmatprep.subr.mxu0 0.0
        %2230 = vmatpush1.msra.mxu0 0.0
        %2231 = vmatprep.subr.mxu0 0.0
        %2232 = vmatpush1.msra.mxu0 0.0
        %2233 = vmatprep.subr.mxu0 0.0
        %2234 = vmatpush1.msra.mxu0 0.0
        %2235 = vmatprep.subr.mxu0 0.0
        %2236 = vmatpush1.msra.mxu0 0.0
        %2237 = vmatprep.subr.mxu0 0.0
        %2238 = vmatpush1.msra.mxu0 0.0
        %2239 = vmatprep.subr.mxu0 0.0
        %2240 = vmatpush1.msra.mxu0 0.0
        %2241 = vmatprep.subr.mxu0 0.0
        %2242 = vmatpush1.msra.mxu0 0.0
        %2243 = vmatprep.subr.mxu0 0.0
        %2244 = vmatpush1.msra.mxu0 0.0
        %2245 = vmatprep.subr.mxu0 0.0
        %2246 = vmatpush1.msra.mxu0 0.0
        %2247 = vmatprep.subr.mxu0 0.0
        %2248 = vmatpush1.msra.mxu0 0.0
        %2249 = vmatprep.subr.mxu0 0.0
        %2250 = vmatpush1.msra.mxu0 0.0
        %2251 = vmatprep.subr.mxu0 0.0
        %2252 = vmatpush1.msra.mxu0 0.0
        %2253 = vmatprep.subr.mxu0 0.0
        %2254 = vmatpush1.msra.mxu0 0.0
        %2255 = vmatprep.subr.mxu0 0.0
        %2256 = vmatpush1.msra.mxu0 0.0
        %2257 = vmatprep.mubr.f32.mxu0 0.0
        %2258 = vmatmul.mubr.f32.gmra.mrb[0].mxu0 %v2191
        %v2259 = vpop.f32.mrb[0].mxu0
        %v2260 = vadd.f32 0.0, %v2259
        %v2261 = vpop.f32.mrb[0].mxu0
        %v2262 = vadd.f32 0.0, %v2261
        %2263 = vdwg.mxu0
        %2264 = vmatprep.subr.mxu0 %v2177
        %2265 = vmatpush1.msra.mxu0 %v2176
        %2266 = vmatprep.subr.mxu0 %v2181
        %2267 = vmatpush1.msra.mxu0 %v2180
        %2268 = vmatprep.subr.mxu0 %v2185
        %2269 = vmatpush1.msra.mxu0 %v2184
        %2270 = vmatprep.subr.mxu0 %v2189
        %2271 = vmatpush1.msra.mxu0 %v2188
        %2272 = vmatprep.subr.mxu0 0.0
        %2273 = vmatpush1.msra.mxu0 0.0
        %2274 = vmatprep.subr.mxu0 0.0
        %2275 = vmatpush1.msra.mxu0 0.0
        %2276 = vmatprep.subr.mxu0 0.0
        %2277 = vmatpush1.msra.mxu0 0.0
        %2278 = vmatprep.subr.mxu0 0.0
        %2279 = vmatpush1.msra.mxu0 0.0
        %2280 = vmatprep.subr.mxu0 0.0
        %2281 = vmatpush1.msra.mxu0 0.0
        %2282 = vmatprep.subr.mxu0 0.0
        %2283 = vmatpush1.msra.mxu0 0.0
        %2284 = vmatprep.subr.mxu0 0.0
        %2285 = vmatpush1.msra.mxu0 0.0
        %2286 = vmatprep.subr.mxu0 0.0
        %2287 = vmatpush1.msra.mxu0 0.0
        %2288 = vmatprep.subr.mxu0 0.0
        %2289 = vmatpush1.msra.mxu0 0.0
        %2290 = vmatprep.subr.mxu0 0.0
        %2291 = vmatpush1.msra.mxu0 0.0
        %2292 = vmatprep.subr.mxu0 0.0
        %2293 = vmatpush1.msra.mxu0 0.0
        %2294 = vmatprep.subr.mxu0 0.0
        %2295 = vmatpush1.msra.mxu0 0.0
        %2296 = vmatprep.subr.mxu0 0.0
        %2297 = vmatpush1.msra.mxu0 0.0
        %2298 = vmatprep.subr.mxu0 0.0
        %2299 = vmatpush1.msra.mxu0 0.0
        %2300 = vmatprep.subr.mxu0 0.0
        %2301 = vmatpush1.msra.mxu0 0.0
        %2302 = vmatprep.subr.mxu0 0.0
        %2303 = vmatpush1.msra.mxu0 0.0
        %2304 = vmatprep.subr.mxu0 0.0
        %2305 = vmatpush1.msra.mxu0 0.0
        %2306 = vmatprep.subr.mxu0 0.0
        %2307 = vmatpush1.msra.mxu0 0.0
        %2308 = vmatprep.subr.mxu0 0.0
        %2309 = vmatpush1.msra.mxu0 0.0
        %2310 = vmatprep.subr.mxu0 0.0
        %2311 = vmatpush1.msra.mxu0 0.0
        %2312 = vmatprep.subr.mxu0 0.0
        %2313 = vmatpush1.msra.mxu0 0.0
        %2314 = vmatprep.subr.mxu0 0.0
        %2315 = vmatpush1.msra.mxu0 0.0
        %2316 = vmatprep.subr.mxu0 0.0
        %2317 = vmatpush1.msra.mxu0 0.0
        %2318 = vmatprep.subr.mxu0 0.0
        %2319 = vmatpush1.msra.mxu0 0.0
        %2320 = vmatprep.subr.mxu0 0.0
        %2321 = vmatpush1.msra.mxu0 0.0
        %2322 = vmatprep.subr.mxu0 0.0
        %2323 = vmatpush1.msra.mxu0 0.0
        %2324 = vmatprep.subr.mxu0 0.0
        %2325 = vmatpush1.msra.mxu0 0.0
        %2326 = vmatprep.subr.mxu0 0.0
        %2327 = vmatpush1.msra.mxu0 0.0
        %2328 = vmatprep.mubr.f32.mxu0 0.0
        %2329 = vmatmul.mubr.f32.gmra.mrb[0].mxu0 %v2191
        %v2330 = vpop.f32.mrb[0].mxu0
        %v2331 = vadd.f32 0.0, %v2330
        %v2332 = vpop.f32.mrb[0].mxu0
        %v2333 = vadd.f32 0.0, %v2332
        %2334 = vdwg.mxu0
        %v2335 = vmax.f32 %v2260, 0.0
        %v2336 = vmax.f32 %v2262, 0.0
        %v2337 = vmax.f32 %v2331, 0.0
        %v2338 = vmax.f32 %v2333, 0.0
        %s2339 = scalar_lea.vmem %s9, 512
        %v2340 = vld [vmem:[%s2339] sm:$0xff]
        %v2341 = vld [vmem:[%s2339 + $0x8] sm:$0xff]
        %v2342 = vld [vmem:[%s2339 + $0x10] sm:$0xff]
        %v2343 = vld [vmem:[%s2339 + $0x18] sm:$0xff]
        %v2344 = vld [vmem:[%s2339 + $0x20] sm:$0xff]
        %v2345 = vld [vmem:[%s2339 + $0x28] sm:$0xff]
        %v2346 = vld [vmem:[%s2339 + $0x30] sm:$0xff]
        %v2347 = vld [vmem:[%s2339 + $0x38] sm:$0xff]
        %v2348 = vld [vmem:[%s2339 + $0x40] sm:$0xff]
        %v2349 = vld [vmem:[%s2339 + $0x48] sm:$0xff]
        %v2350 = vld [vmem:[%s2339 + $0x50] sm:$0xff]
        %v2351 = vld [vmem:[%s2339 + $0x58] sm:$0xff]
        %v2352 = vld [vmem:[%s2339 + $0x60] sm:$0xff]
        %v2353 = vld [vmem:[%s2339 + $0x68] sm:$0xff]
        %v2354 = vld [vmem:[%s2339 + $0x70] sm:$0xff]
        %v2355 = vld [vmem:[%s2339 + $0x78] sm:$0xff]
        %v2356 = vld [vmem:[%s2339 + $0x80] sm:$0xff]
        %v2357 = vld [vmem:[%s2339 + $0x88] sm:$0xff]
        %v2358 = vld [vmem:[%s2339 + $0x90] sm:$0xff]
        %v2359 = vld [vmem:[%s2339 + $0x98] sm:$0xff]
        %v2360 = vld [vmem:[%s2339 + $0xa0] sm:$0xff]
        %v2361 = vld [vmem:[%s2339 + $0xa8] sm:$0xff]
        %v2362 = vld [vmem:[%s2339 + $0xb0] sm:$0xff]
        %v2363 = vld [vmem:[%s2339 + $0xb8] sm:$0xff]
        %v2364 = vld [vmem:[%s2339 + $0xc0] sm:$0xff]
        %v2365 = vld [vmem:[%s2339 + $0xc8] sm:$0xff]
        %v2366 = vld [vmem:[%s2339 + $0xd0] sm:$0xff]
        %v2367 = vld [vmem:[%s2339 + $0xd8] sm:$0xff]
        %v2368 = vld [vmem:[%s2339 + $0xe0] sm:$0xff]
        %v2369 = vld [vmem:[%s2339 + $0xe8] sm:$0xff]
        %v2370 = vld [vmem:[%s2339 + $0xf0] sm:$0xff]
        %v2371 = vld [vmem:[%s2339 + $0xf8] sm:$0xff]
        %v2372 = vld [vmem:[%s2339 + $0x100] sm:$0xff]
        %v2373 = vld [vmem:[%s2339 + $0x108] sm:$0xff]
        %v2374 = vld [vmem:[%s2339 + $0x110] sm:$0xff]
        %v2375 = vld [vmem:[%s2339 + $0x118] sm:$0xff]
        %v2376 = vld [vmem:[%s2339 + $0x120] sm:$0xff]
        %v2377 = vld [vmem:[%s2339 + $0x128] sm:$0xff]
        %v2378 = vld [vmem:[%s2339 + $0x130] sm:$0xff]
        %v2379 = vld [vmem:[%s2339 + $0x138] sm:$0xff]
        %v2380 = vld [vmem:[%s2339 + $0x140] sm:$0xff]
        %v2381 = vld [vmem:[%s2339 + $0x148] sm:$0xff]
        %v2382 = vld [vmem:[%s2339 + $0x150] sm:$0xff]
        %v2383 = vld [vmem:[%s2339 + $0x158] sm:$0xff]
        %v2384 = vld [vmem:[%s2339 + $0x160] sm:$0xff]
        %v2385 = vld [vmem:[%s2339 + $0x168] sm:$0xff]
        %v2386 = vld [vmem:[%s2339 + $0x170] sm:$0xff]
        %v2387 = vld [vmem:[%s2339 + $0x178] sm:$0xff]
        %v2388 = vld [vmem:[%s2339 + $0x180] sm:$0xff]
        %v2389 = vld [vmem:[%s2339 + $0x188] sm:$0xff]
        %v2390 = vld [vmem:[%s2339 + $0x190] sm:$0xff]
        %v2391 = vld [vmem:[%s2339 + $0x198] sm:$0xff]
        %v2392 = vld [vmem:[%s2339 + $0x1a0] sm:$0xff]
        %v2393 = vld [vmem:[%s2339 + $0x1a8] sm:$0xff]
        %v2394 = vld [vmem:[%s2339 + $0x1b0] sm:$0xff]
        %v2395 = vld [vmem:[%s2339 + $0x1b8] sm:$0xff]
        %v2396 = vld [vmem:[%s2339 + $0x1c0] sm:$0xff]
        %v2397 = vld [vmem:[%s2339 + $0x1c8] sm:$0xff]
        %v2398 = vld [vmem:[%s2339 + $0x1d0] sm:$0xff]
        %v2399 = vld [vmem:[%s2339 + $0x1d8] sm:$0xff]
        %v2400 = vld [vmem:[%s2339 + $0x1e0] sm:$0xff]
        %v2401 = vld [vmem:[%s2339 + $0x1e8] sm:$0xff]
        %v2402 = vld [vmem:[%s2339 + $0x1f0] sm:$0xff]
        %v2403 = vld [vmem:[%s2339 + $0x1f8] sm:$0xff]
        %2404 = vmatprep.subr.mxu0 0.0
        %2405 = vmatpush1.msra.mxu0 %v2340
        %2406 = vmatprep.subr.mxu0 0.0
        %2407 = vmatpush1.msra.mxu0 %v2341
        %2408 = vmatprep.subr.mxu0 0.0
        %2409 = vmatpush1.msra.mxu0 %v2342
        %2410 = vmatprep.subr.mxu0 0.0
        %2411 = vmatpush1.msra.mxu0 %v2343
        %2412 = vmatprep.subr.mxu0 0.0
        %2413 = vmatpush1.msra.mxu0 %v2344
        %2414 = vmatprep.subr.mxu0 0.0
        %2415 = vmatpush1.msra.mxu0 %v2345
        %2416 = vmatprep.subr.mxu0 0.0
        %2417 = vmatpush1.msra.mxu0 %v2346
        %2418 = vmatprep.subr.mxu0 0.0
        %2419 = vmatpush1.msra.mxu0 %v2347
        %2420 = vmatprep.subr.mxu0 0.0
        %2421 = vmatpush1.msra.mxu0 %v2348
        %2422 = vmatprep.subr.mxu0 0.0
        %2423 = vmatpush1.msra.mxu0 %v2349
        %2424 = vmatprep.subr.mxu0 0.0
        %2425 = vmatpush1.msra.mxu0 %v2350
        %2426 = vmatprep.subr.mxu0 0.0
        %2427 = vmatpush1.msra.mxu0 %v2351
        %2428 = vmatprep.subr.mxu0 0.0
        %2429 = vmatpush1.msra.mxu0 %v2352
        %2430 = vmatprep.subr.mxu0 0.0
        %2431 = vmatpush1.msra.mxu0 %v2353
        %2432 = vmatprep.subr.mxu0 0.0
        %2433 = vmatpush1.msra.mxu0 %v2354
        %2434 = vmatprep.subr.mxu0 0.0
        %2435 = vmatpush1.msra.mxu0 %v2355
        %2436 = vmatprep.subr.mxu0 0.0
        %2437 = vmatpush1.msra.mxu0 %v2356
        %2438 = vmatprep.subr.mxu0 0.0
        %2439 = vmatpush1.msra.mxu0 %v2357
        %2440 = vmatprep.subr.mxu0 0.0
        %2441 = vmatpush1.msra.mxu0 %v2358
        %2442 = vmatprep.subr.mxu0 0.0
        %2443 = vmatpush1.msra.mxu0 %v2359
        %2444 = vmatprep.subr.mxu0 0.0
        %2445 = vmatpush1.msra.mxu0 %v2360
        %2446 = vmatprep.subr.mxu0 0.0
        %2447 = vmatpush1.msra.mxu0 %v2361
        %2448 = vmatprep.subr.mxu0 0.0
        %2449 = vmatpush1.msra.mxu0 %v2362
        %2450 = vmatprep.subr.mxu0 0.0
        %2451 = vmatpush1.msra.mxu0 %v2363
        %2452 = vmatprep.subr.mxu0 0.0
        %2453 = vmatpush1.msra.mxu0 %v2364
        %2454 = vmatprep.subr.mxu0 0.0
        %2455 = vmatpush1.msra.mxu0 %v2365
        %2456 = vmatprep.subr.mxu0 0.0
        %2457 = vmatpush1.msra.mxu0 %v2366
        %2458 = vmatprep.subr.mxu0 0.0
        %2459 = vmatpush1.msra.mxu0 %v2367
        %2460 = vmatprep.subr.mxu0 0.0
        %2461 = vmatpush1.msra.mxu0 %v2368
        %2462 = vmatprep.subr.mxu0 0.0
        %2463 = vmatpush1.msra.mxu0 %v2369
        %2464 = vmatprep.subr.mxu0 0.0
        %2465 = vmatpush1.msra.mxu0 %v2370
        %2466 = vmatprep.subr.mxu0 0.0
        %2467 = vmatpush1.msra.mxu0 %v2371
        %2468 = vmatprep.mubr.f32.mxu0 %v2336
        %2469 = vmatmul.mubr.f32.gmra.mrb[0].mxu0 %v2335
        %v2470 = vpop.f32.mrb[0].mxu0
        %v2471 = vadd.f32 %v2172, %v2470
        %v2472 = vpop.f32.mrb[0].mxu0
        %2473 = vdwg.mxu0
        %2474 = vmatprep.subr.mxu0 0.0
        %2475 = vmatpush1.msra.mxu0 %v2372
        %2476 = vmatprep.subr.mxu0 0.0
        %2477 = vmatpush1.msra.mxu0 %v2373
        %2478 = vmatprep.subr.mxu0 0.0
        %2479 = vmatpush1.msra.mxu0 %v2374
        %2480 = vmatprep.subr.mxu0 0.0
        %2481 = vmatpush1.msra.mxu0 %v2375
        %2482 = vmatprep.subr.mxu0 0.0
        %2483 = vmatpush1.msra.mxu0 %v2376
        %2484 = vmatprep.subr.mxu0 0.0
        %2485 = vmatpush1.msra.mxu0 %v2377
        %2486 = vmatprep.subr.mxu0 0.0
        %2487 = vmatpush1.msra.mxu0 %v2378
        %2488 = vmatprep.subr.mxu0 0.0
        %2489 = vmatpush1.msra.mxu0 %v2379
        %2490 = vmatprep.subr.mxu0 0.0
        %2491 = vmatpush1.msra.mxu0 %v2380
        %2492 = vmatprep.subr.mxu0 0.0
        %2493 = vmatpush1.msra.mxu0 %v2381
        %2494 = vmatprep.subr.mxu0 0.0
        %2495 = vmatpush1.msra.mxu0 %v2382
        %2496 = vmatprep.subr.mxu0 0.0
        %2497 = vmatpush1.msra.mxu0 %v2383
        %2498 = vmatprep.subr.mxu0 0.0
        %2499 = vmatpush1.msra.mxu0 %v2384
        %2500 = vmatprep.subr.mxu0 0.0
        %2501 = vmatpush1.msra.mxu0 %v2385
        %2502 = vmatprep.subr.mxu0 0.0
        %2503 = vmatpush1.msra.mxu0 %v2386
        %2504 = vmatprep.subr.mxu0 0.0
        %2505 = vmatpush1.msra.mxu0 %v2387
        %2506 = vmatprep.subr.mxu0 0.0
        %2507 = vmatpush1.msra.mxu0 %v2388
        %2508 = vmatprep.subr.mxu0 0.0
        %2509 = vmatpush1.msra.mxu0 %v2389
        %2510 = vmatprep.subr.mxu0 0.0
        %2511 = vmatpush1.msra.mxu0 %v2390
        %2512 = vmatprep.subr.mxu0 0.0
        %2513 = vmatpush1.msra.mxu0 %v2391
        %2514 = vmatprep.subr.mxu0 0.0
        %2515 = vmatpush1.msra.mxu0 %v2392
        %2516 = vmatprep.subr.mxu0 0.0
        %2517 = vmatpush1.msra.mxu0 %v2393
        %2518 = vmatprep.subr.mxu0 0.0
        %2519 = vmatpush1.msra.mxu0 %v2394
        %2520 = vmatprep.subr.mxu0 0.0
        %2521 = vmatpush1.msra.mxu0 %v2395
        %2522 = vmatprep.subr.mxu0 0.0
        %2523 = vmatpush1.msra.mxu0 %v2396
        %2524 = vmatprep.subr.mxu0 0.0
        %2525 = vmatpush1.msra.mxu0 %v2397
        %2526 = vmatprep.subr.mxu0 0.0
        %2527 = vmatpush1.msra.mxu0 %v2398
        %2528 = vmatprep.subr.mxu0 0.0
        %2529 = vmatpush1.msra.mxu0 %v2399
        %2530 = vmatprep.subr.mxu0 0.0
        %2531 = vmatpush1.msra.mxu0 %v2400
        %2532 = vmatprep.subr.mxu0 0.0
        %2533 = vmatpush1.msra.mxu0 %v2401
        %2534 = vmatprep.subr.mxu0 0.0
        %2535 = vmatpush1.msra.mxu0 %v2402
        %2536 = vmatprep.subr.mxu0 0.0
        %2537 = vmatpush1.msra.mxu0 %v2403
        %2538 = vmatprep.mubr.f32.mxu0 %v2338
        %2539 = vmatmul.mubr.f32.gmra.mrb[0].mxu0 %v2337
        %v2540 = vpop.f32.mrb[0].mxu0
        %v2541 = vadd.f32 %v2471, %v2540
        %v2542 = vpop.f32.mrb[0].mxu0
        %2543 = vdwg.mxu0
        %s2544 = scalar_lea.vmem %s10, 1
        %v2545 = vld [vmem:[%s2544] sm:$0x1]
        %s2546 = scalar_lea.vmem %s11, 1
        %v2547 = vld [vmem:[%s2546] sm:$0x1]
        %v2548 = vsel %vm469, %v2541, 0.0
        %2549 = vadd.xlane.f32.xlu0 %v2548
        %v2550 = vpop.xlane.xlu0 %2549
        %v2551 = vmul.f32 %v2550, %v1136
        %v2552 = vsub.f32 %v2541, %v2551
        %v2553 = vmul.f32 %v2552, %v2552
        %v2554 = vsel %vm469, %v2553, 0.0
        %2555 = vadd.xlane.f32.xlu0 %v2554
        %v2556 = vpop.xlane.xlu0 %2555
        %v2557 = vmul.f32 %v2556, %v1136
        %v2558 = vadd.f32 %v2557, 1e-05
        %v2559 = vrsqrt.pop %v2558
        %v2560 = vmul.f32 %v2552, %v2559
        %v2562 = vlaneseq
        %v2563 = vshrl.u32 %v2562, 7
        %v2564 = vsub.s32 0, %v2563
        %v2565 = vrot.slane %v2545, %v2564
        %v2567 = vmul.f32 %v2560, %v2565
        %v2569 = vlaneseq
        %v2570 = vshrl.u32 %v2569, 7
        %v2571 = vsub.s32 0, %v2570
        %v2572 = vrot.slane %v2547, %v2571
        %v2574 = vadd.f32 %v2567, %v2572
        %2575 = vst.msk [vmem:[%s446] sm:$0xff] %vm469, %v2574
        %s2576 = sand.u32 %s301, 1
        %s2577 = scalar_lea.sflag [#allocation3], %s2576
        %s2578 = sand.u32 %s301, 1
        %s2579 = smul.addr %s2578, 8
        %s2580 = scalar_lea.vmem [#allocation2], %s2579
        %s2581 = sand.u32 %s327, 1
        %s2582 = scalar_lea.sflag [#allocation5], %s2581
        %s2583 = sand.u32 %s327, 1
        %s2584 = smul.addr %s2583, 32
        %s2585 = scalar_lea.vmem [#allocation4], %s2584
        // Predicated region
        $region69: #{tpu_custom_call.1} parent=67 // pred_check
          %p2586 = pneg %p311
        $region70: #{tpu_custom_call.1} parent=67 // pred_check_branch
          %2588 = sbr.rel (%p2586) target = $region72
        $region71: #{tpu_custom_call.1} parent=67 // pred_region
          %s2590 = ssub.s32 128, 128
          %2591 = vsyncadd %s2577, %s2590
          %s2592 = smul.addr %s31, 128
          %s2593 = scalar_lea.hbm %s12, %s2592
          %s2595 = sshll.u32 %s2580, 4
          %s2596 = int_to_ptr.vmem [resolvable:$true] %s2595
          %2598 = dma.vmem_to_hbm [thread:$0]  %s2596, 128, %s2593, %s2577
        $region72: #{tpu_custom_call.1} parent=67 // pred_fallthru
          _
        // Predicated region
        $region73: #{tpu_custom_call.1} parent=67 // pred_check
          %p2599 = pneg %p337
        $region74: #{tpu_custom_call.1} parent=67 // pred_check_branch
          %2601 = sbr.rel (%p2599) target = $region76
        $region75: #{tpu_custom_call.1} parent=67 // pred_region
          #allocation7 [shape = 'u32[6]{0}', space=smem, size = 0x18, scoped, tag = 'DMA stride descriptor']
          %s2603 = ssub.s32 512, 512
          %2604 = vsyncadd %s2582, %s2603
          %s2605 = smul.addr %s31, 2
          %s2606 = smul.addr %s2605, 128
          %s2607 = scalar_lea.hbm %s13, %s2606
          %s2609 = sshll.u32 1, 14
          %s2610 = sxor.u32 4294967295, %s2609
          %s2613 = sshll.u32 7, 18
          %s2614 = sxor.u32 4294967295, %s2613
          %s2615 = sand.u32 0, %s2614
          %s2617 = sor.u32 %s2615, 0
          %s2619 = sshll.u32 3, 24
          %s2620 = sxor.u32 4294967295, %s2619
          %s2621 = sand.u32 %s2617, %s2620
          %s2623 = sor.u32 %s2621, 0
          %s2624 = sshll.u32 %s2585, 4
          %s2625 = int_to_ptr.vmem [resolvable:$true] %s2624
          %2631 = sst [smem:[#allocation7]] 256
          %s2632 = scalar_lea.smem [#allocation7], 1
          %2633 = sst [smem:[%s2632]] 512
          %s2634 = scalar_lea.smem [#allocation7], 2
          %2635 = sst [smem:[%s2634]] 2
          %s2636 = scalar_lea.smem [#allocation7], 3
          %2637 = sst [smem:[%s2636]] 128
          %s2638 = scalar_lea.smem [#allocation7], 4
          %2639 = sst [smem:[%s2638]] 128
          %s2640 = scalar_lea.smem [#allocation7], 5
          %2641 = sst [smem:[%s2640]] 8
          %2643 = dma.general %s2625, 512, %s2607, %s2582, [#allocation6], [#allocation7], %s2623, 0
        $region76: #{tpu_custom_call.1} parent=67 // pred_fallthru
          _
      $region68: #{tpu_custom_call.1} parent=5 // pred_fallthru
        _
      %p2644 = scmp.le.s32.totalorder 2, %s26
      // Predicated region
      $region77: #{tpu_custom_call.1} parent=5 // pred_check
        %p2645 = pneg %p2644
      $region78: #{tpu_custom_call.1} parent=5 // pred_check_branch
        %2647 = sbr.rel (%p2645) target = $region80
      $region79: #{tpu_custom_call.1} parent=5 // pred_region
        %s2648 = ssub.s32 %s26, 2
        // Predicated region
        $region81: #{tpu_custom_call.1} parent=79 // pred_check
          %p2649 = pneg %p317
        $region82: #{tpu_custom_call.1} parent=79 // pred_check_branch
          %2651 = sbr.rel (%p2649) target = $region84
        $region83: #{tpu_custom_call.1} parent=79 // pred_region
          %s2652 = sand.u32 %s302, 1
          %s2653 = scalar_lea.sflag [#allocation3], %s2652
          %s2654 = sand.u32 %s302, 1
          %s2655 = smul.addr %s2654, 8
          %s2656 = scalar_lea.vmem [#allocation2], %s2655
          %2657 = dma.done %s2653, 128
        $region84: #{tpu_custom_call.1} parent=79 // pred_fallthru
          _
        // Predicated region
        $region85: #{tpu_custom_call.1} parent=79 // pred_check
          %p2658 = pneg %p343
        $region86: #{tpu_custom_call.1} parent=79 // pred_check_branch
          %2660 = sbr.rel (%p2658) target = $region88
        $region87: #{tpu_custom_call.1} parent=79 // pred_region
          %s2661 = sand.u32 %s328, 1
          %s2662 = scalar_lea.sflag [#allocation5], %s2661
          %s2663 = sand.u32 %s328, 1
          %s2664 = smul.addr %s2663, 32
          %s2665 = scalar_lea.vmem [#allocation4], %s2664
          %2666 = dma.done %s2662, 512
        $region88: #{tpu_custom_call.1} parent=79 // pred_fallthru
          _
      $region80: #{tpu_custom_call.1} parent=5 // pred_fallthru
        _
    $region6: #{tpu_custom_call.1} parent=1 // loop_footer
      %s30 = sadd.s32 1, %s26
    $region7: #{tpu_custom_call.1} parent=1 // loop_footer_branch
      %25 = sbr.rel target = $region3
    $region8: #{tpu_custom_call.1} parent=1 // loop_exit
      _
    %2667 = vsyncpa [#allocation3], 1
    %s2668 = scalar_lea.sflag [#allocation3], 1
    %2669 = vsyncpa %s2668, 1
    %2670 = vsyncpa [#allocation5], 1
    %s2671 = scalar_lea.sflag [#allocation5], 1
    %2672 = vsyncpa %s2671, 1

</llo_original>
